<compile_context>
chip_gen: v7x
topology: tpu7x:2x2x1
jax: 0.10.0
libtpu: 0.0.40
codegen_flags: <defaults>
</compile_context>

<pallas_src>
import functools

import jax
import jax.numpy as jnp
import numpy as np
from jax.experimental import pallas as pl
from jax.experimental.pallas import tpu as pltpu


def _attn_kernel(*refs, eps, heads, dim_head, q_tile, use_mask):
    if use_mask:
        (x_ref, mask_ref, gamma_ref, beta_ref,
         wq_ref, wk_ref, wv_ref, wo_ref,
         o_ref, xn_sc, k_sc, v_sc) = refs
    else:
        (x_ref, gamma_ref, beta_ref,
         wq_ref, wk_ref, wv_ref, wo_ref,
         o_ref, xn_sc, k_sc, v_sc) = refs
        mask_ref = None

    qi = pl.program_id(1)

    # ---- once per batch: LayerNorm over the full sequence + K/V projection,
    # cached in bf16 VMEM scratch and reused by every q-tile of this batch.
    @pl.when(qi == 0)
    def _():
        gamma = gamma_ref[...].astype(jnp.float32)           # (1, D)
        beta = beta_ref[...].astype(jnp.float32)             # (1, D)
        x = x_ref[0].astype(jnp.float32)                     # (N, D)
        mu = jnp.mean(x, axis=-1, keepdims=True)
        ex2 = jnp.mean(x * x, axis=-1, keepdims=True)        # independent reductions
        var = ex2 - mu * mu
        xn = (x - mu) * jax.lax.rsqrt(var + eps) * gamma + beta
        xn_bf = xn.astype(jnp.bfloat16)
        xn_sc[...] = xn_bf
        # Full-width K / V projections: (N, D) @ (D, heads*dh), f32 accumulate.
        k_sc[...] = jnp.dot(xn_bf, wk_ref[...],
                            preferred_element_type=jnp.float32).astype(jnp.bfloat16)
        v_sc[...] = jnp.dot(xn_bf, wv_ref[...],
                            preferred_element_type=jnp.float32).astype(jnp.bfloat16)

    # ---- per q-tile: slice the q rows out of the cached LayerNorm output.
    row0 = pl.multiple_of(qi * q_tile, q_tile)
    xn_q = xn_sc[pl.ds(row0, q_tile), :]                     # (tq, D) bf16

    # Full-width Q projection; softmax scale already folded into Wq.
    q = jnp.dot(xn_q, wq_ref[...],
                preferred_element_type=jnp.float32).astype(jnp.bfloat16)  # (tq, I)
    k = k_sc[...]                                            # (N, I) bf16
    v = v_sc[...]                                            # (N, I) bf16

    if use_mask:
        keep = mask_ref[0] != 0                              # (tq, N) bool, once

    outs = []
    for h in range(heads):                                   # heads is small; unrolled
        sl = slice(h * dim_head, (h + 1) * dim_head)
        # q_h @ k_h^T without materializing a transpose (contract last dims).
        s = jax.lax.dot_general(
            q[:, sl], k[:, sl],
            dimension_numbers=(((1,), (1,)), ((), ())),
            preferred_element_type=jnp.float32)              # (tq, N) f32
        if use_mask:
            # cmp + select; finite bias keeps fully-masked rows NaN-free.
            s = jnp.where(keep, s, jnp.float32(-1e30))
        m = jnp.max(s, axis=-1, keepdims=True)
        p = jnp.exp(s - m)
        l = jnp.sum(p, axis=-1, keepdims=True)
        o_h = jnp.dot(p.astype(jnp.bfloat16), v[:, sl],
                      preferred_element_type=jnp.float32)    # (tq, dh)
        o_h = o_h * pl.reciprocal(l, approx=True)            # EUP, off the VALU
        outs.append(o_h.astype(jnp.bfloat16))

    # Single full-width output projection over concatenated heads.
    o_cat = jnp.concatenate(outs, axis=-1)                   # (tq, heads*dh) bf16
    out = jnp.dot(o_cat, wo_ref[...],
                  preferred_element_type=jnp.float32)        # (tq, D) f32
    o_ref[0] = out.astype(o_ref.dtype)


def masked_attention(x, mask, params, *, heads, dim_head, q_tile=None):
    """x: (B, N, D); mask: (B, N, N) (0 = masked) or None.

    params: gamma/beta (D,), wqkv (D, 3*heads*dim_head) stored (in, out),
    wout (heads*dim_head, D).  Weights may be f32 or bf16; the MXU consumes bf16.
    """
    B, N, D = x.shape
    inner = heads * dim_head
    if q_tile is None:
        q_tile = min(N, 128)                                 # fill the MXU M dim
    assert N % q_tile == 0 and q_tile % 8 == 0
    n_q = N // q_tile

    gamma = params["gamma"].reshape(1, D)
    beta = params["beta"].reshape(1, D)

    scale = dim_head ** (-0.5)
    wqkv = params["wqkv"].astype(jnp.float32)                # (D, 3*inner)
    wq = (wqkv[:, 0 * inner:1 * inner] * scale).astype(jnp.bfloat16)  # scale folded
    wk = wqkv[:, 1 * inner:2 * inner].astype(jnp.bfloat16)
    wv = wqkv[:, 2 * inner:3 * inner].astype(jnp.bfloat16)
    wo = params["wout"].astype(jnp.float32).astype(jnp.bfloat16)       # (inner, D)

    use_mask = mask is not None

    idx_x = lambda b, qi: (b, 0, 0)        # full sequence, changes once per batch
    idx_q = lambda b, qi: (b, qi, 0)       # q-tile of mask / output
    idx_w = lambda b, qi: (0, 0)           # resident weights / LN params

    inputs = [x]
    in_specs = [pl.BlockSpec((1, N, D), idx_x)]
    if use_mask:
        inputs.append((mask != 0).astype(jnp.int8))          # int8: 4x less HBM traffic
        in_specs.append(pl.BlockSpec((1, q_tile, N), idx_q))
    inputs += [gamma, beta, wq, wk, wv, wo]
    in_specs += [
        pl.BlockSpec((1, D), idx_w),
        pl.BlockSpec((1, D), idx_w),
        pl.BlockSpec((D, inner), idx_w),
        pl.BlockSpec((D, inner), idx_w),
        pl.BlockSpec((D, inner), idx_w),
        pl.BlockSpec((inner, D), idx_w),
    ]

    kernel = functools.partial(
        _attn_kernel, eps=1e-5, heads=heads, dim_head=dim_head,
        q_tile=q_tile, use_mask=use_mask)

    return pl.pallas_call(
        kernel,
        out_shape=jax.ShapeDtypeStruct((B, N, D), x.dtype),
        grid=(B, n_q),
        in_specs=in_specs,
        out_specs=pl.BlockSpec((1, q_tile, D), idx_q),
        scratch_shapes=[
            pltpu.VMEM((N, D), jnp.bfloat16),       # cached LayerNorm(x)
            pltpu.VMEM((N, inner), jnp.bfloat16),   # cached K
            pltpu.VMEM((N, inner), jnp.bfloat16),   # cached V
        ],
        compiler_params=pltpu.CompilerParams(
            # batch axis is independent (megacore / v7x 2 TCs); the q-tile axis
            # must run in order because it reuses the per-batch KV cache.
            dimension_semantics=("parallel", "arbitrary"),
            # Per-step VMEM footprint is well under 1 MiB at these sizes;
            # 32 MiB leaves headroom on every generation including v7x (64 MiB).
            vmem_limit_bytes=32 * 1024 * 1024,
        ),
    )(*inputs)


def _reference(x, mask, params, *, heads, dim_head):
    """Pure-JAX f32 reference mirroring the PyTorch forward."""
    B, N, D = x.shape
    inner = heads * dim_head
    gamma = params["gamma"].astype(jnp.float32)
    beta = params["beta"].astype(jnp.float32)
    wqkv = params["wqkv"].astype(jnp.float32)
    wout = params["wout"].astype(jnp.float32)
    mu = jnp.mean(x, axis=-1, keepdims=True)
    var = jnp.mean((x - mu) ** 2, axis=-1, keepdims=True)
    xn = (x - mu) / jnp.sqrt(var + 1e-5) * gamma + beta
    qkv = xn @ wqkv
    q, k, v = jnp.split(qkv, 3, axis=-1)

    def to_heads(t):
        return jnp.transpose(t.reshape(B, N, heads, dim_head), (0, 2, 1, 3))

    q, k, v = map(to_heads, (q, k, v))
    dots = jnp.einsum("bhnd,bhmd->bhnm", q, k) * (dim_head ** -0.5)
    if mask is not None:
        dots = jnp.where(mask[:, None, :, :] == 0, -jnp.inf, dots)
    attn = jax.nn.softmax(dots, axis=-1)
    out = jnp.einsum("bhnm,bhmd->bhnd", attn, v)
    out = jnp.transpose(out, (0, 2, 1, 3)).reshape(B, N, inner)
    return out @ wout


if __name__ == "__main__":
    B, N, D = 2, 128, 128
    heads, dim_head = 4, 32
    inner = heads * dim_head

    key = jax.random.PRNGKey(0)
    kx, kq, ko, kg, kb = jax.random.split(key, 5)

    x = jax.random.normal(kx, (B, N, D), dtype=jnp.float32)
    # causal mask (every row has at least one valid entry)
    mask = jnp.tril(jnp.ones((N, N), dtype=jnp.int32))[None].repeat(B, axis=0)

    params = {
        "gamma": jax.random.normal(kg, (D,), dtype=jnp.float32) * 0.1 + 1.0,
        "beta": jax.random.normal(kb, (D,), dtype=jnp.float32) * 0.1,
        # weights stored bf16 (MXU-native); the reference upcasts the same values
        "wqkv": (jax.random.normal(kq, (D, 3 * inner), dtype=jnp.float32)
                 / np.sqrt(D)).astype(jnp.bfloat16),
        "wout": (jax.random.normal(ko, (inner, D), dtype=jnp.float32)
                 / np.sqrt(inner)).astype(jnp.bfloat16),
    }

    ref_masked = _reference(x, mask, params, heads=heads, dim_head=dim_head)
    ref_nomask = _reference(x, None, params, heads=heads, dim_head=dim_head)

    # 1) default q_tile = 128 (single q-tile per batch, masked)
    out = jax.block_until_ready(
        masked_attention(x, mask, params, heads=heads, dim_head=dim_head))
    np.testing.assert_allclose(np.asarray(out), np.asarray(ref_masked),
                               rtol=5e-2, atol=5e-2)

    # 2) q_tile = 64: exercises the per-batch KV/LayerNorm cache reuse (qi > 0)
    out = jax.block_until_ready(
        masked_attention(x, mask, params, heads=heads, dim_head=dim_head,
                         q_tile=64))
    np.testing.assert_allclose(np.asarray(out), np.asarray(ref_masked),
                               rtol=5e-2, atol=5e-2)

    # 3) no-mask path (mask input dropped entirely from the pallas_call)
    out = jax.block_until_ready(
        masked_attention(x, None, params, heads=heads, dim_head=dim_head))
    np.testing.assert_allclose(np.asarray(out), np.asarray(ref_nomask),
                               rtol=5e-2, atol=5e-2)

    print("KERNEL_OK")
</pallas_src>

<mosaic_0001>
module attributes {stable_mosaic.version = 11 : i64} {
  func.func @_attn_kernel(%arg0: i32, %arg1: i32, %arg2: memref<1x128x128xf32, #tpu.memory_space<vmem>>, %arg3: memref<1x128x128xi8, #tpu.memory_space<vmem>>, %arg4: memref<1x128xf32, #tpu.memory_space<vmem>>, %arg5: memref<1x128xf32, #tpu.memory_space<vmem>>, %arg6: memref<128x128xbf16, #tpu.memory_space<vmem>>, %arg7: memref<128x128xbf16, #tpu.memory_space<vmem>>, %arg8: memref<128x128xbf16, #tpu.memory_space<vmem>>, %arg9: memref<128x128xbf16, #tpu.memory_space<vmem>>, %arg10: memref<1x128x128xf32, #tpu.memory_space<vmem>>, %arg11: memref<128x128xbf16, #tpu.memory_space<vmem>>, %arg12: memref<128x128xbf16, #tpu.memory_space<vmem>>, %arg13: memref<128x128xbf16, #tpu.memory_space<vmem>>) attributes {dimension_semantics = [#tpu.dimension_semantics<parallel>, #tpu.dimension_semantics<arbitrary>], iteration_bounds = array<i64: 2, 1>, scalar_prefetch = 0 : i64, scratch_operands = 3 : i64, tpu.core_type = #tpu.core_type<tc>, window_params = [{transform_indices = @transform_0, window_bounds = array<i64: 1, 128, 128>}, {transform_indices = @transform_1, window_bounds = array<i64: 1, 128, 128>}, {pipeline_mode = #tpu.pipeline_mode<synchronous>, transform_indices = @transform_2, window_bounds = array<i64: 1, 128>}, {pipeline_mode = #tpu.pipeline_mode<synchronous>, transform_indices = @transform_3, window_bounds = array<i64: 1, 128>}, {pipeline_mode = #tpu.pipeline_mode<synchronous>, transform_indices = @transform_4, window_bounds = array<i64: 128, 128>}, {pipeline_mode = #tpu.pipeline_mode<synchronous>, transform_indices = @transform_5, window_bounds = array<i64: 128, 128>}, {pipeline_mode = #tpu.pipeline_mode<synchronous>, transform_indices = @transform_6, window_bounds = array<i64: 128, 128>}, {pipeline_mode = #tpu.pipeline_mode<synchronous>, transform_indices = @transform_7, window_bounds = array<i64: 128, 128>}, {transform_indices = @transform_8, window_bounds = array<i64: 1, 128, 128>}]} {
    %c0_i32 = arith.constant 0 : i32
    %0 = arith.cmpi eq, %arg1, %c0_i32 : i32
    %1 = arith.extui %0 : i1 to i32
    %c0_i32_0 = arith.constant 0 : i32
    %2 = arith.cmpi ne, %1, %c0_i32_0 : i32
    scf.if %2 {
      %c0_36 = arith.constant 0 : index
      %c0_37 = arith.constant 0 : index
      %98 = vector.load %arg4[%c0_36, %c0_37] : memref<1x128xf32, #tpu.memory_space<vmem>>, vector<1x128xf32>
      %c0_38 = arith.constant 0 : index
      %c0_39 = arith.constant 0 : index
      %99 = vector.load %arg5[%c0_38, %c0_39] : memref<1x128xf32, #tpu.memory_space<vmem>>, vector<1x128xf32>
      %c0_40 = arith.constant 0 : index
      %c0_41 = arith.constant 0 : index
      %c0_42 = arith.constant 0 : index
      %100 = vector.load %arg2[%c0_40, %c0_41, %c0_42] : memref<1x128x128xf32, #tpu.memory_space<vmem>>, vector<1x128x128xf32>
      %101 = vector.shape_cast %100 : vector<1x128x128xf32> to vector<128x128xf32>
      %cst_43 = arith.constant dense<0.000000e+00> : vector<128xf32>
      %102 = vector.multi_reduction <add>, %101, %cst_43 [1] : vector<128x128xf32> to vector<128xf32>
      %103 = vector.shape_cast %102 : vector<128xf32> to vector<128x1xf32>
      %cst_44 = arith.constant 1.280000e+02 : f32
      %104 = vector.broadcast %cst_44 : f32 to vector<128x1xf32>
      %105 = arith.divf %103, %104 : vector<128x1xf32>
      %106 = arith.mulf %101, %101 : vector<128x128xf32>
      %cst_45 = arith.constant dense<0.000000e+00> : vector<128xf32>
      %107 = vector.multi_reduction <add>, %106, %cst_45 [1] : vector<128x128xf32> to vector<128xf32>
      %108 = vector.shape_cast %107 : vector<128xf32> to vector<128x1xf32>
      %cst_46 = arith.constant 1.280000e+02 : f32
      %109 = vector.broadcast %cst_46 : f32 to vector<128x1xf32>
      %110 = arith.divf %108, %109 : vector<128x1xf32>
      %111 = arith.mulf %105, %105 : vector<128x1xf32>
      %112 = arith.subf %110, %111 : vector<128x1xf32>
      %113 = vector.broadcast %105 : vector<128x1xf32> to vector<128x128xf32>
      %114 = arith.subf %101, %113 : vector<128x128xf32>
      %cst_47 = arith.constant 9.99999974E-6 : f32
      %115 = vector.broadcast %cst_47 : f32 to vector<128x1xf32>
      %116 = arith.addf %112, %115 : vector<128x1xf32>
      %117 = math.rsqrt %116 : vector<128x1xf32>
      %118 = vector.broadcast %117 : vector<128x1xf32> to vector<128x128xf32>
      %119 = arith.mulf %114, %118 : vector<128x128xf32>
      %120 = vector.broadcast %98 : vector<1x128xf32> to vector<128x128xf32>
      %121 = arith.mulf %119, %120 : vector<128x128xf32>
      %122 = vector.broadcast %99 : vector<1x128xf32> to vector<128x128xf32>
      %123 = arith.addf %121, %122 : vector<128x128xf32>
      %124 = arith.truncf %123 : vector<128x128xf32> to vector<128x128xbf16>
      %c0_48 = arith.constant 0 : index
      %c0_49 = arith.constant 0 : index
      %125 = vector.load %arg11[%c0_48, %c0_49] : memref<128x128xbf16, #tpu.memory_space<vmem>>, vector<128x128xbf16>
      tpu.vector_store %arg11[%c0_48, %c0_49], %124 {strides = array<i32>} : memref<128x128xbf16, #tpu.memory_space<vmem>>, vector<128x128xbf16>,
      %c0_50 = arith.constant 0 : index
      %c0_51 = arith.constant 0 : index
      %126 = vector.load %arg7[%c0_50, %c0_51] : memref<128x128xbf16, #tpu.memory_space<vmem>>, vector<128x128xbf16>
      %cst_52 = arith.constant dense<0.000000e+00> : vector<128x128xf32>
      %127 = tpu.matmul %124, %126, %cst_52 {dimension_numbers = #tpu.dot_dimension_numbers<[1], [0], [0], [1], [0, 0, 1, 1], [], []>} : vector<128x128xbf16>, vector<128x128xbf16>, vector<128x128xf32> -> vector<128x128xf32>
      %128 = arith.truncf %127 : vector<128x128xf32> to vector<128x128xbf16>
      %c0_53 = arith.constant 0 : index
      %c0_54 = arith.constant 0 : index
      %129 = vector.load %arg12[%c0_53, %c0_54] : memref<128x128xbf16, #tpu.memory_space<vmem>>, vector<128x128xbf16>
      tpu.vector_store %arg12[%c0_53, %c0_54], %128 {strides = array<i32>} : memref<128x128xbf16, #tpu.memory_space<vmem>>, vector<128x128xbf16>,
      %c0_55 = arith.constant 0 : index
      %c0_56 = arith.constant 0 : index
      %130 = vector.load %arg8[%c0_55, %c0_56] : memref<128x128xbf16, #tpu.memory_space<vmem>>, vector<128x128xbf16>
      %cst_57 = arith.constant dense<0.000000e+00> : vector<128x128xf32>
      %131 = tpu.matmul %124, %130, %cst_57 {dimension_numbers = #tpu.dot_dimension_numbers<[1], [0], [0], [1], [0, 0, 1, 1], [], []>} : vector<128x128xbf16>, vector<128x128xbf16>, vector<128x128xf32> -> vector<128x128xf32>
      %132 = arith.truncf %131 : vector<128x128xf32> to vector<128x128xbf16>
      %c0_58 = arith.constant 0 : index
      %c0_59 = arith.constant 0 : index
      %133 = vector.load %arg13[%c0_58, %c0_59] : memref<128x128xbf16, #tpu.memory_space<vmem>>, vector<128x128xbf16>
      tpu.vector_store %arg13[%c0_58, %c0_59], %132 {strides = array<i32>} : memref<128x128xbf16, #tpu.memory_space<vmem>>, vector<128x128xbf16>,
    } else {
    }
    %c128_i32 = arith.constant 128 : i32
    %3 = arith.muli %arg1, %c128_i32 : i32
    %4 = tpu.assume_multiple %3, 128 : i32
    %5 = arith.index_cast %4 : i32 to index
    %c0 = arith.constant 0 : index
    %6 = vector.load %arg11[%5, %c0] : memref<128x128xbf16, #tpu.memory_space<vmem>>, vector<128x128xbf16>
    %c0_1 = arith.constant 0 : index
    %c0_2 = arith.constant 0 : index
    %7 = vector.load %arg6[%c0_1, %c0_2] : memref<128x128xbf16, #tpu.memory_space<vmem>>, vector<128x128xbf16>
    %cst = arith.constant dense<0.000000e+00> : vector<128x128xf32>
    %8 = tpu.matmul %6, %7, %cst {dimension_numbers = #tpu.dot_dimension_numbers<[1], [0], [0], [1], [0, 0, 1, 1], [], []>} : vector<128x128xbf16>, vector<128x128xbf16>, vector<128x128xf32> -> vector<128x128xf32>
    %9 = arith.truncf %8 : vector<128x128xf32> to vector<128x128xbf16>
    %c0_3 = arith.constant 0 : index
    %c0_4 = arith.constant 0 : index
    %10 = vector.load %arg12[%c0_3, %c0_4] : memref<128x128xbf16, #tpu.memory_space<vmem>>, vector<128x128xbf16>
    %c0_5 = arith.constant 0 : index
    %c0_6 = arith.constant 0 : index
    %11 = vector.load %arg13[%c0_5, %c0_6] : memref<128x128xbf16, #tpu.memory_space<vmem>>, vector<128x128xbf16>
    %c0_7 = arith.constant 0 : index
    %c0_8 = arith.constant 0 : index
    %c0_9 = arith.constant 0 : index
    %12 = vector.load %arg3[%c0_7, %c0_8, %c0_9] : memref<1x128x128xi8, #tpu.memory_space<vmem>>, vector<1x128x128xi8>
    %13 = vector.shape_cast %12 : vector<1x128x128xi8> to vector<128x128xi8>
    %c0_i8 = arith.constant 0 : i8
    %14 = vector.broadcast %c0_i8 : i8 to vector<128x128xi8>
    %15 = arith.cmpi ne, %13, %14 : vector<128x128xi8>
    %16 = vector.extract_strided_slice %9 {offsets = [0, 0], sizes = [128, 32], strides = [1, 1]} : vector<128x128xbf16> to vector<128x32xbf16>
    %17 = vector.extract_strided_slice %10 {offsets = [0, 0], sizes = [128, 32], strides = [1, 1]} : vector<128x128xbf16> to vector<128x32xbf16>
    %cst_10 = arith.constant dense<0.000000e+00> : vector<128x128xf32>
    %18 = tpu.matmul %16, %17, %cst_10 {dimension_numbers = #tpu.dot_dimension_numbers<[1], [1], [0], [0], [0, 0, 1, 0], [], []>} : vector<128x32xbf16>, vector<128x32xbf16>, vector<128x128xf32> -> vector<128x128xf32>
    %cst_11 = arith.constant -1.000000e+30 : f32
    %19 = vector.broadcast %cst_11 : f32 to vector<128x128xf32>
    %20 = arith.select %15, %18, %19 : vector<128x128xi1>, vector<128x128xf32>
    %cst_12 = arith.constant dense<0xFF800000> : vector<128xf32>
    %21 = vector.multi_reduction <maximumf>, %20, %cst_12 [1] : vector<128x128xf32> to vector<128xf32>
    %22 = vector.shape_cast %21 : vector<128xf32> to vector<128x1xf32>
    %23 = vector.broadcast %22 : vector<128x1xf32> to vector<128x128xf32>
    %24 = arith.subf %20, %23 : vector<128x128xf32>
    %25 = math.exp %24 : vector<128x128xf32>
    %cst_13 = arith.constant dense<0.000000e+00> : vector<128xf32>
    %26 = vector.multi_reduction <add>, %25, %cst_13 [1] : vector<128x128xf32> to vector<128xf32>
    %27 = vector.shape_cast %26 : vector<128xf32> to vector<128x1xf32>
    %28 = arith.truncf %25 : vector<128x128xf32> to vector<128x128xbf16>
    %29 = vector.extract_strided_slice %11 {offsets = [0, 0], sizes = [128, 32], strides = [1, 1]} : vector<128x128xbf16> to vector<128x32xbf16>
    %cst_14 = arith.constant dense<0.000000e+00> : vector<128x32xf32>
    %30 = tpu.matmul %28, %29, %cst_14 {dimension_numbers = #tpu.dot_dimension_numbers<[1], [0], [0], [1], [0, 0, 1, 1], [], []>} : vector<128x128xbf16>, vector<128x32xbf16>, vector<128x32xf32> -> vector<128x32xf32>
    %31 = tpu.reciprocal %27 {approx = true} : vector<128x1xf32> -> vector<128x1xf32>
    %32 = vector.broadcast %31 : vector<128x1xf32> to vector<128x32xf32>
    %33 = arith.mulf %30, %32 : vector<128x32xf32>
    %34 = arith.truncf %33 : vector<128x32xf32> to vector<128x32xbf16>
    %35 = vector.extract_strided_slice %9 {offsets = [0, 32], sizes = [128, 32], strides = [1, 1]} : vector<128x128xbf16> to vector<128x32xbf16>
    %36 = vector.extract_strided_slice %10 {offsets = [0, 32], sizes = [128, 32], strides = [1, 1]} : vector<128x128xbf16> to vector<128x32xbf16>
    %cst_15 = arith.constant dense<0.000000e+00> : vector<128x128xf32>
    %37 = tpu.matmul %35, %36, %cst_15 {dimension_numbers = #tpu.dot_dimension_numbers<[1], [1], [0], [0], [0, 0, 1, 0], [], []>} : vector<128x32xbf16>, vector<128x32xbf16>, vector<128x128xf32> -> vector<128x128xf32>
    %cst_16 = arith.constant -1.000000e+30 : f32
    %38 = vector.broadcast %cst_16 : f32 to vector<128x128xf32>
    %39 = arith.select %15, %37, %38 : vector<128x128xi1>, vector<128x128xf32>
    %cst_17 = arith.constant dense<0xFF800000> : vector<128xf32>
    %40 = vector.multi_reduction <maximumf>, %39, %cst_17 [1] : vector<128x128xf32> to vector<128xf32>
    %41 = vector.shape_cast %40 : vector<128xf32> to vector<128x1xf32>
    %42 = vector.broadcast %41 : vector<128x1xf32> to vector<128x128xf32>
    %43 = arith.subf %39, %42 : vector<128x128xf32>
    %44 = math.exp %43 : vector<128x128xf32>
    %cst_18 = arith.constant dense<0.000000e+00> : vector<128xf32>
    %45 = vector.multi_reduction <add>, %44, %cst_18 [1] : vector<128x128xf32> to vector<128xf32>
    %46 = vector.shape_cast %45 : vector<128xf32> to vector<128x1xf32>
    %47 = arith.truncf %44 : vector<128x128xf32> to vector<128x128xbf16>
    %48 = vector.extract_strided_slice %11 {offsets = [0, 32], sizes = [128, 32], strides = [1, 1]} : vector<128x128xbf16> to vector<128x32xbf16>
    %cst_19 = arith.constant dense<0.000000e+00> : vector<128x32xf32>
    %49 = tpu.matmul %47, %48, %cst_19 {dimension_numbers = #tpu.dot_dimension_numbers<[1], [0], [0], [1], [0, 0, 1, 1], [], []>} : vector<128x128xbf16>, vector<128x32xbf16>, vector<128x32xf32> -> vector<128x32xf32>
    %50 = tpu.reciprocal %46 {approx = true} : vector<128x1xf32> -> vector<128x1xf32>
    %51 = vector.broadcast %50 : vector<128x1xf32> to vector<128x32xf32>
    %52 = arith.mulf %49, %51 : vector<128x32xf32>
    %53 = arith.truncf %52 : vector<128x32xf32> to vector<128x32xbf16>
    %54 = vector.extract_strided_slice %9 {offsets = [0, 64], sizes = [128, 32], strides = [1, 1]} : vector<128x128xbf16> to vector<128x32xbf16>
    %55 = vector.extract_strided_slice %10 {offsets = [0, 64], sizes = [128, 32], strides = [1, 1]} : vector<128x128xbf16> to vector<128x32xbf16>
    %cst_20 = arith.constant dense<0.000000e+00> : vector<128x128xf32>
    %56 = tpu.matmul %54, %55, %cst_20 {dimension_numbers = #tpu.dot_dimension_numbers<[1], [1], [0], [0], [0, 0, 1, 0], [], []>} : vector<128x32xbf16>, vector<128x32xbf16>, vector<128x128xf32> -> vector<128x128xf32>
    %cst_21 = arith.constant -1.000000e+30 : f32
    %57 = vector.broadcast %cst_21 : f32 to vector<128x128xf32>
    %58 = arith.select %15, %56, %57 : vector<128x128xi1>, vector<128x128xf32>
    %cst_22 = arith.constant dense<0xFF800000> : vector<128xf32>
    %59 = vector.multi_reduction <maximumf>, %58, %cst_22 [1] : vector<128x128xf32> to vector<128xf32>
    %60 = vector.shape_cast %59 : vector<128xf32> to vector<128x1xf32>
    %61 = vector.broadcast %60 : vector<128x1xf32> to vector<128x128xf32>
    %62 = arith.subf %58, %61 : vector<128x128xf32>
    %63 = math.exp %62 : vector<128x128xf32>
    %cst_23 = arith.constant dense<0.000000e+00> : vector<128xf32>
    %64 = vector.multi_reduction <add>, %63, %cst_23 [1] : vector<128x128xf32> to vector<128xf32>
    %65 = vector.shape_cast %64 : vector<128xf32> to vector<128x1xf32>
    %66 = arith.truncf %63 : vector<128x128xf32> to vector<128x128xbf16>
    %67 = vector.extract_strided_slice %11 {offsets = [0, 64], sizes = [128, 32], strides = [1, 1]} : vector<128x128xbf16> to vector<128x32xbf16>
    %cst_24 = arith.constant dense<0.000000e+00> : vector<128x32xf32>
    %68 = tpu.matmul %66, %67, %cst_24 {dimension_numbers = #tpu.dot_dimension_numbers<[1], [0], [0], [1], [0, 0, 1, 1], [], []>} : vector<128x128xbf16>, vector<128x32xbf16>, vector<128x32xf32> -> vector<128x32xf32>
    %69 = tpu.reciprocal %65 {approx = true} : vector<128x1xf32> -> vector<128x1xf32>
    %70 = vector.broadcast %69 : vector<128x1xf32> to vector<128x32xf32>
    %71 = arith.mulf %68, %70 : vector<128x32xf32>
    %72 = arith.truncf %71 : vector<128x32xf32> to vector<128x32xbf16>
    %73 = vector.extract_strided_slice %9 {offsets = [0, 96], sizes = [128, 32], strides = [1, 1]} : vector<128x128xbf16> to vector<128x32xbf16>
    %74 = vector.extract_strided_slice %10 {offsets = [0, 96], sizes = [128, 32], strides = [1, 1]} : vector<128x128xbf16> to vector<128x32xbf16>
    %cst_25 = arith.constant dense<0.000000e+00> : vector<128x128xf32>
    %75 = tpu.matmul %73, %74, %cst_25 {dimension_numbers = #tpu.dot_dimension_numbers<[1], [1], [0], [0], [0, 0, 1, 0], [], []>} : vector<128x32xbf16>, vector<128x32xbf16>, vector<128x128xf32> -> vector<128x128xf32>
    %cst_26 = arith.constant -1.000000e+30 : f32
    %76 = vector.broadcast %cst_26 : f32 to vector<128x128xf32>
    %77 = arith.select %15, %75, %76 : vector<128x128xi1>, vector<128x128xf32>
    %cst_27 = arith.constant dense<0xFF800000> : vector<128xf32>
    %78 = vector.multi_reduction <maximumf>, %77, %cst_27 [1] : vector<128x128xf32> to vector<128xf32>
    %79 = vector.shape_cast %78 : vector<128xf32> to vector<128x1xf32>
    %80 = vector.broadcast %79 : vector<128x1xf32> to vector<128x128xf32>
    %81 = arith.subf %77, %80 : vector<128x128xf32>
    %82 = math.exp %81 : vector<128x128xf32>
    %cst_28 = arith.constant dense<0.000000e+00> : vector<128xf32>
    %83 = vector.multi_reduction <add>, %82, %cst_28 [1] : vector<128x128xf32> to vector<128xf32>
    %84 = vector.shape_cast %83 : vector<128xf32> to vector<128x1xf32>
    %85 = arith.truncf %82 : vector<128x128xf32> to vector<128x128xbf16>
    %86 = vector.extract_strided_slice %11 {offsets = [0, 96], sizes = [128, 32], strides = [1, 1]} : vector<128x128xbf16> to vector<128x32xbf16>
    %cst_29 = arith.constant dense<0.000000e+00> : vector<128x32xf32>
    %87 = tpu.matmul %85, %86, %cst_29 {dimension_numbers = #tpu.dot_dimension_numbers<[1], [0], [0], [1], [0, 0, 1, 1], [], []>} : vector<128x128xbf16>, vector<128x32xbf16>, vector<128x32xf32> -> vector<128x32xf32>
    %88 = tpu.reciprocal %84 {approx = true} : vector<128x1xf32> -> vector<128x1xf32>
    %89 = vector.broadcast %88 : vector<128x1xf32> to vector<128x32xf32>
    %90 = arith.mulf %87, %89 : vector<128x32xf32>
    %91 = arith.truncf %90 : vector<128x32xf32> to vector<128x32xbf16>
    %92 = tpu.concatenate %34, %53, %72, %91 in 1 : vector<128x32xbf16>, vector<128x32xbf16>, vector<128x32xbf16>, vector<128x32xbf16> -> vector<128x128xbf16>
    %c0_30 = arith.constant 0 : index
    %c0_31 = arith.constant 0 : index
    %93 = vector.load %arg9[%c0_30, %c0_31] : memref<128x128xbf16, #tpu.memory_space<vmem>>, vector<128x128xbf16>
    %cst_32 = arith.constant dense<0.000000e+00> : vector<128x128xf32>
    %94 = tpu.matmul %92, %93, %cst_32 {dimension_numbers = #tpu.dot_dimension_numbers<[1], [0], [0], [1], [0, 0, 1, 1], [], []>} : vector<128x128xbf16>, vector<128x128xbf16>, vector<128x128xf32> -> vector<128x128xf32>
    %c0_33 = arith.constant 0 : index
    %c0_34 = arith.constant 0 : index
    %c0_35 = arith.constant 0 : index
    %95 = vector.load %arg10[%c0_33, %c0_34, %c0_35] : memref<1x128x128xf32, #tpu.memory_space<vmem>>, vector<1x128x128xf32>
    %96 = vector.shape_cast %95 : vector<1x128x128xf32> to vector<128x128xf32>
    %97 = vector.shape_cast %94 : vector<128x128xf32> to vector<1x128x128xf32>
    tpu.vector_store %arg10[%c0_33, %c0_34, %c0_35], %97 {strides = array<i32>} : memref<1x128x128xf32, #tpu.memory_space<vmem>>, vector<1x128x128xf32>,
    return
  }
  func.func @transform_0(%arg0: i32, %arg1: i32) -> (i32, i32, i32) {
    %c0_i32 = arith.constant 0 : i32
    %c0_i32_0 = arith.constant 0 : i32
    %c0_i32_1 = arith.constant 0 : i32
    return %arg0, %c0_i32, %c0_i32_0 : i32, i32, i32
  }
  func.func @transform_1(%arg0: i32, %arg1: i32) -> (i32, i32, i32) {
    %c0_i32 = arith.constant 0 : i32
    %c0_i32_0 = arith.constant 0 : i32
    return %arg0, %arg1, %c0_i32 : i32, i32, i32
  }
  func.func @transform_2(%arg0: i32, %arg1: i32) -> (i32, i32) {
    %c0_i32 = arith.constant 0 : i32
    %c0_i32_0 = arith.constant 0 : i32
    %c0_i32_1 = arith.constant 0 : i32
    return %c0_i32, %c0_i32_0 : i32, i32
  }
  func.func @transform_3(%arg0: i32, %arg1: i32) -> (i32, i32) {
    %c0_i32 = arith.constant 0 : i32
    %c0_i32_0 = arith.constant 0 : i32
    %c0_i32_1 = arith.constant 0 : i32
    return %c0_i32, %c0_i32_0 : i32, i32
  }
  func.func @transform_4(%arg0: i32, %arg1: i32) -> (i32, i32) {
    %c0_i32 = arith.constant 0 : i32
    %c0_i32_0 = arith.constant 0 : i32
    %c0_i32_1 = arith.constant 0 : i32
    return %c0_i32, %c0_i32_0 : i32, i32
  }
  func.func @transform_5(%arg0: i32, %arg1: i32) -> (i32, i32) {
    %c0_i32 = arith.constant 0 : i32
    %c0_i32_0 = arith.constant 0 : i32
    %c0_i32_1 = arith.constant 0 : i32
    return %c0_i32, %c0_i32_0 : i32, i32
  }
  func.func @transform_6(%arg0: i32, %arg1: i32) -> (i32, i32) {
    %c0_i32 = arith.constant 0 : i32
    %c0_i32_0 = arith.constant 0 : i32
    %c0_i32_1 = arith.constant 0 : i32
    return %c0_i32, %c0_i32_0 : i32, i32
  }
  func.func @transform_7(%arg0: i32, %arg1: i32) -> (i32, i32) {
    %c0_i32 = arith.constant 0 : i32
    %c0_i32_0 = arith.constant 0 : i32
    %c0_i32_1 = arith.constant 0 : i32
    return %c0_i32, %c0_i32_0 : i32, i32
  }
  func.func @transform_8(%arg0: i32, %arg1: i32) -> (i32, i32, i32) {
    %c0_i32 = arith.constant 0 : i32
    %c0_i32_0 = arith.constant 0 : i32
    return %arg0, %arg1, %c0_i32 : i32, i32, i32
  }
}

</mosaic_0001>

<llo_original>
// kernel: tpu_custom_call.1
$region0: #{tpu_custom_call.1}
  #allocation0 [shape = 'u32[]', space=smem, size = 0x4, offset = 0x4, fixed_abs, tag = 'smem constant byte address 0x4 - core index']
  #allocation1 [shape = 'u32[144,128]{1,0:T(1,128)}', space=vmem, size = 0x12000, scoped, tag = 'internal scratch']
  #allocation2 [shape = 'bf16[128,128]{1,0:T(16,128)(2,1)}', space=vmem, size = 0x8000, scoped, tag = 'scratch operand']
  #allocation3 [shape = 'bf16[128,128]{1,0:T(16,128)(2,1)}', space=vmem, size = 0x8000, scoped, tag = 'scratch operand']
  #allocation4 [shape = 'bf16[128,128]{1,0:T(16,128)(2,1)}', space=vmem, size = 0x8000, scoped, tag = 'scratch operand']
  %s0 = inlined_call_operand.hbm [shape: f32[2,128,128], index: 0, kind: input, shape index: {}]
  %s1 = inlined_call_operand.hbm [shape: s8[2,128,128], index: 1, kind: input, shape index: {}]
  %s2 = inlined_call_operand.vmem [shape: f32[1,128], index: 2, kind: input, shape index: {}]
  %s3 = inlined_call_operand.vmem [shape: f32[1,128], index: 3, kind: input, shape index: {}]
  %s4 = inlined_call_operand.hbm [shape: bf16[128,128], index: 4, kind: input, shape index: {}]
  %s5 = inlined_call_operand.hbm [shape: bf16[128,128], index: 5, kind: input, shape index: {}]
  %s6 = inlined_call_operand.hbm [shape: bf16[128,128], index: 6, kind: input, shape index: {}]
  %s7 = inlined_call_operand.hbm [shape: bf16[128,128], index: 7, kind: input, shape index: {}]
  %s8 = inlined_call_operand.hbm [shape: f32[2,128,128], index: 8, kind: output, shape index: {}]
  %s9 = sld [smem:[#allocation0]]
  $region93: #{tpu_custom_call.1} parent=0
    _
  %s11 = ssub.s32 1, %s9
  %s12 = scalar_select 0, %s11, %s9
  $region1: #{tpu_custom_call.1} parent=0
    #allocation5 [shape = 'u8[131072]{0}', space=vmem, size = 0x20000, scoped, tag = 'input window, operand 0']
    #allocation6 [shape = 's32[2]{0}', space=sflag, size = 0x8, scoped, tag = 'scoped memory for tpu_custom_call.1']
    #allocation7 [shape = 's32[2]{0}', space=sflag, size = 0x8, scoped, tag = 'scoped memory for tpu_custom_call.1']
    #allocation8 [shape = 'u8[32768]{0}', space=vmem, size = 0x8000, scoped, tag = 'input window, operand 1']
    #allocation9 [shape = 's32[2]{0}', space=sflag, size = 0x8, scoped, tag = 'scoped memory for tpu_custom_call.1']
    #allocation10 [shape = 'u8[32768]{0}', space=vmem, size = 0x8000, scoped, tag = 'input window, operand 4, single buffered']
    #allocation11 [shape = 'u8[32768]{0}', space=vmem, size = 0x8000, scoped, tag = 'input window, operand 5, single buffered']
    #allocation12 [shape = 's32[1]{0}', space=sflag, size = 0x4, scoped, tag = 'scoped memory for tpu_custom_call.1']
    #allocation13 [shape = 'u8[32768]{0}', space=vmem, size = 0x8000, scoped, tag = 'input window, operand 6, single buffered']
    #allocation14 [shape = 'u8[32768]{0}', space=vmem, size = 0x8000, scoped, tag = 'input window, operand 7, single buffered']
    #allocation15 [shape = 's32[1]{0}', space=sflag, size = 0x4, scoped, tag = 'scoped memory for tpu_custom_call.1']
    #allocation16 [shape = 'u8[131072]{0}', space=vmem, size = 0x20000, scoped, tag = 'output window, operand 0']
    %13 = vsyncpa [#allocation6], 0
    %s14 = scalar_lea.sflag [#allocation6], 1
    %15 = vsyncpa %s14, 0
    %16 = vsyncpa [#allocation9], 0
    %s17 = scalar_lea.sflag [#allocation9], 1
    %18 = vsyncpa %s17, 0
    %19 = vsyncpa [#allocation12], 0
    %20 = vsyncpa [#allocation15], 0
    %21 = vsyncpa [#allocation7], 0
    %s22 = scalar_lea.sflag [#allocation7], 1
    %23 = vsyncpa %s22, 0
    loop: start=0, step=1, limit=4
    $region2: #{tpu_custom_call.1} parent=1 // loop_pre_header
      _
    $region3: #{tpu_custom_call.1} parent=1 // loop_header
      %s25 = sphi 0, %s29
      %p26 = scmp.ge.s32.totalorder %s25, 4
      %s32 = sphi 0, %s44
      %s33 = sphi 0, %s40
      %s34 = sphi 0, %s32
      %s35 = sphi 0, %s33
      %s36 = sphi 0, %s34
      %s37 = sphi 0, %s35
      %s47 = sphi 0, %s49
      %s50 = sphi 0, %s47
      %s51 = sphi 0, %s50
      %s67 = sphi 0, %s51
      %s75 = sphi 0, %s77
      %s78 = sphi 0, %s75
      %s79 = sphi 0, %s78
      %s95 = sphi 0, %s79
      %s99 = sphi 0, %s99
      %s101 = sphi 0, %s99
      %s102 = sphi 0, %s101
      %s116 = sphi 0, %s102
      %s120 = sphi 0, %s120
      %s122 = sphi 0, %s120
      %s123 = sphi 0, %s122
      %s137 = sphi 0, %s123
      %s141 = sphi 0, %s141
      %s143 = sphi 0, %s141
      %s144 = sphi 0, %s143
      %s158 = sphi 0, %s144
      %s162 = sphi 0, %s162
      %s164 = sphi 0, %s162
      %s165 = sphi 0, %s164
      %s179 = sphi 0, %s165
      %s183 = sphi 0, %s183
      %s185 = sphi 0, %s183
      %s186 = sphi 0, %s185
      %s200 = sphi 0, %s186
      %s204 = sphi 0, %s204
      %s206 = sphi 0, %s204
      %s207 = sphi 0, %s206
      %s221 = sphi 0, %s207
      %s229 = sphi 0, %s231
      %s232 = sphi 0, %s229
      %s233 = sphi 0, %s232
      %s249 = sphi 0, %s233
    $region4: #{tpu_custom_call.1} parent=1 // loop_header_branch
      %28 = sbr.rel (%p26) target = $region8
    $region5: #{tpu_custom_call.1} parent=1 // loop_body
      %s30 = ssub.s32 %s25, 1
      %s31 = ssub.s32 %s25, 2
      %s38 = sadd.s32 1, %s33
      %p39 = scmp.ge.s32.totalorder %s38, 1
      %s40 = scalar_select %p39, 0, %s38
      %s41 = sadd.s32 1, %s32
      %s42 = scalar_select %p39, %s41, %s32
      %p43 = scmp.ge.s32.totalorder %s42, 2
      %s44 = scalar_select %p43, 0, %s42
      %s45 = ssub.s32 %s32, %s44
      %p46 = scmp.eq.s32.totalorder %s45, 0
      %s48 = sadd.s32 %s47, 1
      %s49 = scalar_select %p46, %s47, %s48
      %p52 = pneg %p46
      %p53 = scmp.eq.s32.totalorder %s25, 1
      %p54 = por %p52, %p53
      %p55 = scmp.ne.s32.totalorder %s47, %s50
      %p56 = scmp.eq.s32.totalorder %s25, 0
      %p57 = por %p55, %p56
      %p58 = scmp.ne.s32.totalorder %s47, %s50
      %p59 = scmp.eq.s32.totalorder %s30, 1
      %p60 = por %p58, %p59
      %p61 = scmp.ne.s32.totalorder %s50, %s51
      %p62 = scmp.eq.s32.totalorder %s30, 0
      %p63 = por %p61, %p62
      %p64 = scmp.ne.s32.totalorder %s50, %s51
      %p65 = scmp.eq.s32.totalorder %s31, 1
      %p66 = por %p64, %p65
      %p68 = scmp.ne.s32.totalorder %s51, %s67
      %p69 = scmp.eq.s32.totalorder %s31, 0
      %p70 = por %p68, %p69
      %s71 = ssub.s32 %s32, %s44
      %s72 = ssub.s32 %s33, %s40
      %s73 = sor.u32 %s71, %s72
      %p74 = scmp.eq.s32.totalorder %s73, 0
      %s76 = sadd.s32 %s75, 1
      %s77 = scalar_select %p74, %s75, %s76
      %p80 = pneg %p74
      %p81 = scmp.eq.s32.totalorder %s25, 1
      %p82 = por %p80, %p81
      %p83 = scmp.ne.s32.totalorder %s75, %s78
      %p84 = scmp.eq.s32.totalorder %s25, 0
      %p85 = por %p83, %p84
      %p86 = scmp.ne.s32.totalorder %s75, %s78
      %p87 = scmp.eq.s32.totalorder %s30, 1
      %p88 = por %p86, %p87
      %p89 = scmp.ne.s32.totalorder %s78, %s79
      %p90 = scmp.eq.s32.totalorder %s30, 0
      %p91 = por %p89, %p90
      %p92 = scmp.ne.s32.totalorder %s78, %s79
      %p93 = scmp.eq.s32.totalorder %s31, 1
      %p94 = por %p92, %p93
      %p96 = scmp.ne.s32.totalorder %s79, %s95
      %p97 = scmp.eq.s32.totalorder %s31, 0
      %p98 = por %p96, %p97
      %s100 = sadd.s32 %s99, 1
      %p103 = scmp.eq.s32.totalorder %s25, 1
      %p104 = scmp.ne.s32.totalorder %s99, %s101
      %p105 = scmp.eq.s32.totalorder %s25, 0
      %p106 = por %p104, %p105
      %p107 = scmp.ne.s32.totalorder %s99, %s101
      %p108 = scmp.eq.s32.totalorder %s30, 1
      %p109 = por %p107, %p108
      %p110 = scmp.ne.s32.totalorder %s101, %s102
      %p111 = scmp.eq.s32.totalorder %s30, 0
      %p112 = por %p110, %p111
      %p113 = scmp.ne.s32.totalorder %s101, %s102
      %p114 = scmp.eq.s32.totalorder %s31, 1
      %p115 = por %p113, %p114
      %p117 = scmp.ne.s32.totalorder %s102, %s116
      %p118 = scmp.eq.s32.totalorder %s31, 0
      %p119 = por %p117, %p118
      %s121 = sadd.s32 %s120, 1
      %p124 = scmp.eq.s32.totalorder %s25, 1
      %p125 = scmp.ne.s32.totalorder %s120, %s122
      %p126 = scmp.eq.s32.totalorder %s25, 0
      %p127 = por %p125, %p126
      %p128 = scmp.ne.s32.totalorder %s120, %s122
      %p129 = scmp.eq.s32.totalorder %s30, 1
      %p130 = por %p128, %p129
      %p131 = scmp.ne.s32.totalorder %s122, %s123
      %p132 = scmp.eq.s32.totalorder %s30, 0
      %p133 = por %p131, %p132
      %p134 = scmp.ne.s32.totalorder %s122, %s123
      %p135 = scmp.eq.s32.totalorder %s31, 1
      %p136 = por %p134, %p135
      %p138 = scmp.ne.s32.totalorder %s123, %s137
      %p139 = scmp.eq.s32.totalorder %s31, 0
      %p140 = por %p138, %p139
      %s142 = sadd.s32 %s141, 1
      %p145 = scmp.eq.s32.totalorder %s25, 1
      %p146 = scmp.ne.s32.totalorder %s141, %s143
      %p147 = scmp.eq.s32.totalorder %s25, 0
      %p148 = por %p146, %p147
      %p149 = scmp.ne.s32.totalorder %s141, %s143
      %p150 = scmp.eq.s32.totalorder %s30, 1
      %p151 = por %p149, %p150
      %p152 = scmp.ne.s32.totalorder %s143, %s144
      %p153 = scmp.eq.s32.totalorder %s30, 0
      %p154 = por %p152, %p153
      %p155 = scmp.ne.s32.totalorder %s143, %s144
      %p156 = scmp.eq.s32.totalorder %s31, 1
      %p157 = por %p155, %p156
      %p159 = scmp.ne.s32.totalorder %s144, %s158
      %p160 = scmp.eq.s32.totalorder %s31, 0
      %p161 = por %p159, %p160
      %s163 = sadd.s32 %s162, 1
      %p166 = scmp.eq.s32.totalorder %s25, 1
      %p167 = scmp.ne.s32.totalorder %s162, %s164
      %p168 = scmp.eq.s32.totalorder %s25, 0
      %p169 = por %p167, %p168
      %p170 = scmp.ne.s32.totalorder %s162, %s164
      %p171 = scmp.eq.s32.totalorder %s30, 1
      %p172 = por %p170, %p171
      %p173 = scmp.ne.s32.totalorder %s164, %s165
      %p174 = scmp.eq.s32.totalorder %s30, 0
      %p175 = por %p173, %p174
      %p176 = scmp.ne.s32.totalorder %s164, %s165
      %p177 = scmp.eq.s32.totalorder %s31, 1
      %p178 = por %p176, %p177
      %p180 = scmp.ne.s32.totalorder %s165, %s179
      %p181 = scmp.eq.s32.totalorder %s31, 0
      %p182 = por %p180, %p181
      %s184 = sadd.s32 %s183, 1
      %p187 = scmp.eq.s32.totalorder %s25, 1
      %p188 = scmp.ne.s32.totalorder %s183, %s185
      %p189 = scmp.eq.s32.totalorder %s25, 0
      %p190 = por %p188, %p189
      %p191 = scmp.ne.s32.totalorder %s183, %s185
      %p192 = scmp.eq.s32.totalorder %s30, 1
      %p193 = por %p191, %p192
      %p194 = scmp.ne.s32.totalorder %s185, %s186
      %p195 = scmp.eq.s32.totalorder %s30, 0
      %p196 = por %p194, %p195
      %p197 = scmp.ne.s32.totalorder %s185, %s186
      %p198 = scmp.eq.s32.totalorder %s31, 1
      %p199 = por %p197, %p198
      %p201 = scmp.ne.s32.totalorder %s186, %s200
      %p202 = scmp.eq.s32.totalorder %s31, 0
      %p203 = por %p201, %p202
      %s205 = sadd.s32 %s204, 1
      %p208 = scmp.eq.s32.totalorder %s25, 1
      %p209 = scmp.ne.s32.totalorder %s204, %s206
      %p210 = scmp.eq.s32.totalorder %s25, 0
      %p211 = por %p209, %p210
      %p212 = scmp.ne.s32.totalorder %s204, %s206
      %p213 = scmp.eq.s32.totalorder %s30, 1
      %p214 = por %p212, %p213
      %p215 = scmp.ne.s32.totalorder %s206, %s207
      %p216 = scmp.eq.s32.totalorder %s30, 0
      %p217 = por %p215, %p216
      %p218 = scmp.ne.s32.totalorder %s206, %s207
      %p219 = scmp.eq.s32.totalorder %s31, 1
      %p220 = por %p218, %p219
      %p222 = scmp.ne.s32.totalorder %s207, %s221
      %p223 = scmp.eq.s32.totalorder %s31, 0
      %p224 = por %p222, %p223
      %s225 = ssub.s32 %s32, %s44
      %s226 = ssub.s32 %s33, %s40
      %s227 = sor.u32 %s225, %s226
      %p228 = scmp.eq.s32.totalorder %s227, 0
      %s230 = sadd.s32 %s229, 1
      %s231 = scalar_select %p228, %s229, %s230
      %p234 = pneg %p228
      %p235 = scmp.eq.s32.totalorder %s25, 1
      %p236 = por %p234, %p235
      %p237 = scmp.ne.s32.totalorder %s229, %s232
      %p238 = scmp.eq.s32.totalorder %s25, 0
      %p239 = por %p237, %p238
      %p240 = scmp.ne.s32.totalorder %s229, %s232
      %p241 = scmp.eq.s32.totalorder %s30, 1
      %p242 = por %p240, %p241
      %p243 = scmp.ne.s32.totalorder %s232, %s233
      %p244 = scmp.eq.s32.totalorder %s30, 0
      %p245 = por %p243, %p244
      %p246 = scmp.ne.s32.totalorder %s232, %s233
      %p247 = scmp.eq.s32.totalorder %s31, 1
      %p248 = por %p246, %p247
      %p250 = scmp.ne.s32.totalorder %s233, %s249
      %p251 = scmp.eq.s32.totalorder %s31, 0
      %p252 = por %p250, %p251
      %p253 = scmp.le.s32.totalorder 1, %s25
      %p254 = scmp.lt.s32.totalorder %s25, 3
      %p255 = pnand %p253, %p254
      %p256 = pneg %p255
      // Predicated region
      $region9: #{tpu_custom_call.1} parent=5 // pred_check
        _
      $region10: #{tpu_custom_call.1} parent=5 // pred_check_branch
        %258 = sbr.rel (%p255) target = $region12
      $region11: #{tpu_custom_call.1} parent=5 // pred_region
        %s259 = ssub.s32 %s25, 1
        // Predicated region
        $region13: #{tpu_custom_call.1} parent=11 // pred_check
          %p260 = pneg %p112
        $region14: #{tpu_custom_call.1} parent=11 // pred_check_branch
          %262 = sbr.rel (%p260) target = $region16
        $region15: #{tpu_custom_call.1} parent=11 // pred_region
          _
        $region16: #{tpu_custom_call.1} parent=11 // pred_fallthru
          _
        // Predicated region
        $region17: #{tpu_custom_call.1} parent=11 // pred_check
          %p263 = pneg %p133
        $region18: #{tpu_custom_call.1} parent=11 // pred_check_branch
          %265 = sbr.rel (%p263) target = $region20
        $region19: #{tpu_custom_call.1} parent=11 // pred_region
          _
        $region20: #{tpu_custom_call.1} parent=11 // pred_fallthru
          _
        // Predicated region
        $region21: #{tpu_custom_call.1} parent=11 // pred_check
          %p266 = pneg %p154
        $region22: #{tpu_custom_call.1} parent=11 // pred_check_branch
          %268 = sbr.rel (%p266) target = $region24
        $region23: #{tpu_custom_call.1} parent=11 // pred_region
          %s270 = ssub.s32 1024, 1024
          %271 = vsyncadd [#allocation9], %s270
          %s272 = sshll.u32 [#allocation10], 4
          %s273 = int_to_ptr.vmem [resolvable:$true] %s272
          %278 = dma.hbm_to_vmem [thread:$0]  %s4, 1024, %s273, [#allocation9], 64, 64, 4
        $region24: #{tpu_custom_call.1} parent=11 // pred_fallthru
          _
        // Predicated region
        $region25: #{tpu_custom_call.1} parent=11 // pred_check
          %p279 = pneg %p175
        $region26: #{tpu_custom_call.1} parent=11 // pred_check_branch
          %281 = sbr.rel (%p279) target = $region28
        $region27: #{tpu_custom_call.1} parent=11 // pred_region
          %s283 = ssub.s32 1024, 1024
          %284 = vsyncadd [#allocation12], %s283
          %s285 = sshll.u32 [#allocation11], 4
          %s286 = int_to_ptr.vmem [resolvable:$true] %s285
          %291 = dma.hbm_to_vmem [thread:$0]  %s5, 1024, %s286, [#allocation12], 64, 64, 4
        $region28: #{tpu_custom_call.1} parent=11 // pred_fallthru
          _
        // Predicated region
        $region29: #{tpu_custom_call.1} parent=11 // pred_check
          %p292 = pneg %p196
        $region30: #{tpu_custom_call.1} parent=11 // pred_check_branch
          %294 = sbr.rel (%p292) target = $region32
        $region31: #{tpu_custom_call.1} parent=11 // pred_region
          %s296 = ssub.s32 1024, 1024
          %297 = vsyncadd [#allocation12], %s296
          %s298 = sshll.u32 [#allocation13], 4
          %s299 = int_to_ptr.vmem [resolvable:$true] %s298
          %304 = dma.hbm_to_vmem [thread:$0]  %s6, 1024, %s299, [#allocation12], 64, 64, 4
        $region32: #{tpu_custom_call.1} parent=11 // pred_fallthru
          _
        // Predicated region
        $region33: #{tpu_custom_call.1} parent=11 // pred_check
          %p305 = pneg %p217
        $region34: #{tpu_custom_call.1} parent=11 // pred_check_branch
          %307 = sbr.rel (%p305) target = $region36
        $region35: #{tpu_custom_call.1} parent=11 // pred_region
          %s309 = ssub.s32 1024, 1024
          %310 = vsyncadd [#allocation15], %s309
          %s311 = sshll.u32 [#allocation14], 4
          %s312 = int_to_ptr.vmem [resolvable:$true] %s311
          %317 = dma.hbm_to_vmem [thread:$0]  %s7, 1024, %s312, [#allocation15], 64, 64, 4
        $region36: #{tpu_custom_call.1} parent=11 // pred_fallthru
          _
      $region12: #{tpu_custom_call.1} parent=5 // pred_fallthru
        _
      %p318 = scmp.lt.s32.totalorder %s25, 2
      // Predicated region
      $region37: #{tpu_custom_call.1} parent=5 // pred_check
        %p319 = pneg %p318
      $region38: #{tpu_custom_call.1} parent=5 // pred_check_branch
        %321 = sbr.rel (%p319) target = $region40
      $region39: #{tpu_custom_call.1} parent=5 // pred_region
        // Predicated region
        $region41: #{tpu_custom_call.1} parent=39 // pred_check
          %p322 = pneg %p57
        $region42: #{tpu_custom_call.1} parent=39 // pred_check_branch
          %324 = sbr.rel (%p322) target = $region44
        $region43: #{tpu_custom_call.1} parent=39 // pred_region
          %s325 = sand.u32 %s47, 1
          %s326 = scalar_lea.sflag [#allocation6], %s325
          %s327 = sand.u32 %s47, 1
          %s328 = smul.addr %s327, 128
          %s329 = scalar_lea.vmem [#allocation5], %s328
          %s331 = ssub.s32 2048, 2048
          %332 = vsyncadd %s326, %s331
          %s333 = smul.addr %s32, 16
          %s334 = smul.addr %s333, 128
          %s335 = scalar_lea.hbm %s0, %s334
          %s336 = sshll.u32 %s329, 4
          %s337 = int_to_ptr.vmem [resolvable:$true] %s336
          %342 = dma.hbm_to_vmem [thread:$0]  %s335, 2048, %s337, %s326, 128, 128, 8
        $region44: #{tpu_custom_call.1} parent=39 // pred_fallthru
          _
        // Predicated region
        $region45: #{tpu_custom_call.1} parent=39 // pred_check
          %p343 = pneg %p85
        $region46: #{tpu_custom_call.1} parent=39 // pred_check_branch
          %345 = sbr.rel (%p343) target = $region48
        $region47: #{tpu_custom_call.1} parent=39 // pred_region
          %s346 = sand.u32 %s25, 1
          %s347 = scalar_lea.sflag [#allocation9], %s346
          %s348 = sand.u32 %s75, 1
          %s349 = smul.addr %s348, 32
          %s350 = scalar_lea.vmem [#allocation8], %s349
          %s351 = smul.u32 4, %s33
          %s353 = ssub.s32 512, 512
          %354 = vsyncadd %s347, %s353
          %s355 = smul.addr %s32, 4
          %s356 = sadd.s32 %s351, %s355
          %s357 = smul.addr %s356, 128
          %s358 = scalar_lea.hbm %s1, %s357
          %s359 = sshll.u32 %s350, 4
          %s360 = int_to_ptr.vmem [resolvable:$true] %s359
          %365 = dma.hbm_to_vmem [thread:$0]  %s358, 512, %s360, %s347, 128, 128, 8
        $region48: #{tpu_custom_call.1} parent=39 // pred_fallthru
          _
      $region40: #{tpu_custom_call.1} parent=5 // pred_fallthru
        _
      %p366 = scmp.le.s32.totalorder 1, %s25
      %p367 = scmp.lt.s32.totalorder %s25, 3
      %p368 = pnand %p366, %p367
      %p369 = pneg %p368
      // Predicated region
      $region49: #{tpu_custom_call.1} parent=5 // pred_check
        _
      $region50: #{tpu_custom_call.1} parent=5 // pred_check_branch
        %371 = sbr.rel (%p368) target = $region52
      $region51: #{tpu_custom_call.1} parent=5 // pred_region
        %s372 = ssub.s32 %s25, 1
        %s373 = sand.u32 %s50, 1
        %s374 = scalar_lea.sflag [#allocation6], %s373
        %s375 = sand.u32 %s50, 1
        %s376 = smul.addr %s375, 128
        %s377 = scalar_lea.vmem [#allocation5], %s376
        // Predicated region
        $region53: #{tpu_custom_call.1} parent=51 // pred_check
          %p378 = pneg %p63
        $region54: #{tpu_custom_call.1} parent=51 // pred_check_branch
          %380 = sbr.rel (%p378) target = $region56
        $region55: #{tpu_custom_call.1} parent=51 // pred_region
          %381 = dma.done %s374, 2048
        $region56: #{tpu_custom_call.1} parent=51 // pred_fallthru
          _
        %s382 = sand.u32 %s30, 1
        %s383 = scalar_lea.sflag [#allocation9], %s382
        %s384 = sand.u32 %s78, 1
        %s385 = smul.addr %s384, 32
        %s386 = scalar_lea.vmem [#allocation8], %s385
        // Predicated region
        $region57: #{tpu_custom_call.1} parent=51 // pred_check
          %p387 = pneg %p91
        $region58: #{tpu_custom_call.1} parent=51 // pred_check_branch
          %389 = sbr.rel (%p387) target = $region60
        $region59: #{tpu_custom_call.1} parent=51 // pred_region
          %390 = dma.done %s383, 512
        $region60: #{tpu_custom_call.1} parent=51 // pred_fallthru
          _
        // Predicated region
        $region61: #{tpu_custom_call.1} parent=51 // pred_check
          %p391 = pneg %p154
        $region62: #{tpu_custom_call.1} parent=51 // pred_check_branch
          %393 = sbr.rel (%p391) target = $region64
        $region63: #{tpu_custom_call.1} parent=51 // pred_region
          %394 = dma.done [#allocation9], 1024
        $region64: #{tpu_custom_call.1} parent=51 // pred_fallthru
          _
        // Predicated region
        $region65: #{tpu_custom_call.1} parent=51 // pred_check
          %p395 = pneg %p175
        $region66: #{tpu_custom_call.1} parent=51 // pred_check_branch
          %397 = sbr.rel (%p395) target = $region68
        $region67: #{tpu_custom_call.1} parent=51 // pred_region
          %398 = dma.done [#allocation12], 1024
        $region68: #{tpu_custom_call.1} parent=51 // pred_fallthru
          _
        // Predicated region
        $region69: #{tpu_custom_call.1} parent=51 // pred_check
          %p399 = pneg %p196
        $region70: #{tpu_custom_call.1} parent=51 // pred_check_branch
          %401 = sbr.rel (%p399) target = $region72
        $region71: #{tpu_custom_call.1} parent=51 // pred_region
          %402 = dma.done [#allocation12], 1024
        $region72: #{tpu_custom_call.1} parent=51 // pred_fallthru
          _
        // Predicated region
        $region73: #{tpu_custom_call.1} parent=51 // pred_check
          %p403 = pneg %p217
        $region74: #{tpu_custom_call.1} parent=51 // pred_check_branch
          %405 = sbr.rel (%p403) target = $region76
        $region75: #{tpu_custom_call.1} parent=51 // pred_region
          %406 = dma.done [#allocation15], 1024
        $region76: #{tpu_custom_call.1} parent=51 // pred_fallthru
          _
        %s407 = sand.u32 %s50, 1
        %s408 = scalar_lea.sflag [#allocation6], %s407
        %s409 = sand.u32 %s50, 1
        %s410 = smul.addr %s409, 128
        %s411 = scalar_lea.vmem [#allocation5], %s410
        %p412 = pneg %p63
        %p413 = pneg %p60
        %s414 = sand.u32 %s30, 1
        %s415 = scalar_lea.sflag [#allocation9], %s414
        %s416 = sand.u32 %s78, 1
        %s417 = smul.addr %s416, 32
        %s418 = scalar_lea.vmem [#allocation8], %s417
        %p419 = pneg %p91
        %p420 = pneg %p88
        %p421 = pneg %p112
        %p422 = pneg %p109
        %p423 = pneg %p133
        %p424 = pneg %p130
        %p425 = pneg %p154
        %p426 = pneg %p151
        %p427 = pneg %p175
        %p428 = pneg %p172
        %p429 = pneg %p196
        %p430 = pneg %p193
        %p431 = pneg %p217
        %p432 = pneg %p214
        %p433 = pneg %p245
        %p434 = pneg %p242
        %s435 = sand.u32 %s232, 1
        %s436 = scalar_lea.sflag [#allocation7], %s435
        %s437 = sand.u32 %s232, 1
        %s438 = smul.addr %s437, 128
        %s439 = scalar_lea.vmem [#allocation16], %s438
        %s440 = smul.u32 4, %s35
        %s441 = smul.u32 16, %s35
        %p445 = scmp.eq.s32.totalorder %s35, 0
        // Predicated region
        $region77: #{tpu_custom_call.1} parent=51 // pred_check
          %p446 = pneg %p445
        $region78: #{tpu_custom_call.1} parent=51 // pred_check_branch
          %448 = sbr.rel (%p446) target = $region80
        $region79: #{tpu_custom_call.1} parent=51 // pred_region
          %v449 = vld [vmem:[%s2] sm:$0x1]
          %v450 = vld [vmem:[%s3] sm:$0x1]
          %v451 = vld [vmem:[%s377] sm:$0xff]
          %v452 = vld [vmem:[%s377 + $0x8] sm:$0xff]
          %v453 = vld [vmem:[%s377 + $0x10] sm:$0xff]
          %v454 = vld [vmem:[%s377 + $0x18] sm:$0xff]
          %v455 = vld [vmem:[%s377 + $0x20] sm:$0xff]
          %v456 = vld [vmem:[%s377 + $0x28] sm:$0xff]
          %v457 = vld [vmem:[%s377 + $0x30] sm:$0xff]
          %v458 = vld [vmem:[%s377 + $0x38] sm:$0xff]
          %v459 = vld [vmem:[%s377 + $0x40] sm:$0xff]
          %v460 = vld [vmem:[%s377 + $0x48] sm:$0xff]
          %v461 = vld [vmem:[%s377 + $0x50] sm:$0xff]
          %v462 = vld [vmem:[%s377 + $0x58] sm:$0xff]
          %v463 = vld [vmem:[%s377 + $0x60] sm:$0xff]
          %v464 = vld [vmem:[%s377 + $0x68] sm:$0xff]
          %v465 = vld [vmem:[%s377 + $0x70] sm:$0xff]
          %v466 = vld [vmem:[%s377 + $0x78] sm:$0xff]
          %467 = vadd.xlane.f32.xlu0 %v451
          %v468 = vpop.xlane.xlu0 %467
          %469 = vadd.xlane.f32.xlu0 %v452
          %v470 = vpop.xlane.xlu0 %469
          %471 = vadd.xlane.f32.xlu0 %v453
          %v472 = vpop.xlane.xlu0 %471
          %473 = vadd.xlane.f32.xlu0 %v454
          %v474 = vpop.xlane.xlu0 %473
          %475 = vadd.xlane.f32.xlu0 %v455
          %v476 = vpop.xlane.xlu0 %475
          %477 = vadd.xlane.f32.xlu0 %v456
          %v478 = vpop.xlane.xlu0 %477
          %479 = vadd.xlane.f32.xlu0 %v457
          %v480 = vpop.xlane.xlu0 %479
          %481 = vadd.xlane.f32.xlu0 %v458
          %v482 = vpop.xlane.xlu0 %481
          %483 = vadd.xlane.f32.xlu0 %v459
          %v484 = vpop.xlane.xlu0 %483
          %485 = vadd.xlane.f32.xlu0 %v460
          %v486 = vpop.xlane.xlu0 %485
          %487 = vadd.xlane.f32.xlu0 %v461
          %v488 = vpop.xlane.xlu0 %487
          %489 = vadd.xlane.f32.xlu0 %v462
          %v490 = vpop.xlane.xlu0 %489
          %491 = vadd.xlane.f32.xlu0 %v463
          %v492 = vpop.xlane.xlu0 %491
          %493 = vadd.xlane.f32.xlu0 %v464
          %v494 = vpop.xlane.xlu0 %493
          %495 = vadd.xlane.f32.xlu0 %v465
          %v496 = vpop.xlane.xlu0 %495
          %497 = vadd.xlane.f32.xlu0 %v466
          %v498 = vpop.xlane.xlu0 %497
          %v499 = vrcp.pop 128.0
          %v500 = vmul.f32 %v468, %v499
          %v501 = vmul.f32 %v470, %v499
          %v502 = vmul.f32 %v472, %v499
          %v503 = vmul.f32 %v474, %v499
          %v504 = vmul.f32 %v476, %v499
          %v505 = vmul.f32 %v478, %v499
          %v506 = vmul.f32 %v480, %v499
          %v507 = vmul.f32 %v482, %v499
          %v508 = vmul.f32 %v484, %v499
          %v509 = vmul.f32 %v486, %v499
          %v510 = vmul.f32 %v488, %v499
          %v511 = vmul.f32 %v490, %v499
          %v512 = vmul.f32 %v492, %v499
          %v513 = vmul.f32 %v494, %v499
          %v514 = vmul.f32 %v496, %v499
          %v515 = vmul.f32 %v498, %v499
          %v516 = vmul.f32 %v451, %v451
          %v517 = vmul.f32 %v452, %v452
          %v518 = vmul.f32 %v453, %v453
          %v519 = vmul.f32 %v454, %v454
          %v520 = vmul.f32 %v455, %v455
          %v521 = vmul.f32 %v456, %v456
          %v522 = vmul.f32 %v457, %v457
          %v523 = vmul.f32 %v458, %v458
          %v524 = vmul.f32 %v459, %v459
          %v525 = vmul.f32 %v460, %v460
          %v526 = vmul.f32 %v461, %v461
          %v527 = vmul.f32 %v462, %v462
          %v528 = vmul.f32 %v463, %v463
          %v529 = vmul.f32 %v464, %v464
          %v530 = vmul.f32 %v465, %v465
          %v531 = vmul.f32 %v466, %v466
          %532 = vadd.xlane.f32.xlu0 %v516
          %v533 = vpop.xlane.xlu0 %532
          %534 = vadd.xlane.f32.xlu0 %v517
          %v535 = vpop.xlane.xlu0 %534
          %536 = vadd.xlane.f32.xlu0 %v518
          %v537 = vpop.xlane.xlu0 %536
          %538 = vadd.xlane.f32.xlu0 %v519
          %v539 = vpop.xlane.xlu0 %538
          %540 = vadd.xlane.f32.xlu0 %v520
          %v541 = vpop.xlane.xlu0 %540
          %542 = vadd.xlane.f32.xlu0 %v521
          %v543 = vpop.xlane.xlu0 %542
          %544 = vadd.xlane.f32.xlu0 %v522
          %v545 = vpop.xlane.xlu0 %544
          %546 = vadd.xlane.f32.xlu0 %v523
          %v547 = vpop.xlane.xlu0 %546
          %548 = vadd.xlane.f32.xlu0 %v524
          %v549 = vpop.xlane.xlu0 %548
          %550 = vadd.xlane.f32.xlu0 %v525
          %v551 = vpop.xlane.xlu0 %550
          %552 = vadd.xlane.f32.xlu0 %v526
          %v553 = vpop.xlane.xlu0 %552
          %554 = vadd.xlane.f32.xlu0 %v527
          %v555 = vpop.xlane.xlu0 %554
          %556 = vadd.xlane.f32.xlu0 %v528
          %v557 = vpop.xlane.xlu0 %556
          %558 = vadd.xlane.f32.xlu0 %v529
          %v559 = vpop.xlane.xlu0 %558
          %560 = vadd.xlane.f32.xlu0 %v530
          %v561 = vpop.xlane.xlu0 %560
          %562 = vadd.xlane.f32.xlu0 %v531
          %v563 = vpop.xlane.xlu0 %562
          %v564 = vmul.f32 %v533, %v499
          %v565 = vmul.f32 %v535, %v499
          %v566 = vmul.f32 %v537, %v499
          %v567 = vmul.f32 %v539, %v499
          %v568 = vmul.f32 %v541, %v499
          %v569 = vmul.f32 %v543, %v499
          %v570 = vmul.f32 %v545, %v499
          %v571 = vmul.f32 %v547, %v499
          %v572 = vmul.f32 %v549, %v499
          %v573 = vmul.f32 %v551, %v499
          %v574 = vmul.f32 %v553, %v499
          %v575 = vmul.f32 %v555, %v499
          %v576 = vmul.f32 %v557, %v499
          %v577 = vmul.f32 %v559, %v499
          %v578 = vmul.f32 %v561, %v499
          %v579 = vmul.f32 %v563, %v499
          %v580 = vmul.f32 %v500, %v500
          %v581 = vmul.f32 %v501, %v501
          %v582 = vmul.f32 %v502, %v502
          %v583 = vmul.f32 %v503, %v503
          %v584 = vmul.f32 %v504, %v504
          %v585 = vmul.f32 %v505, %v505
          %v586 = vmul.f32 %v506, %v506
          %v587 = vmul.f32 %v507, %v507
          %v588 = vmul.f32 %v508, %v508
          %v589 = vmul.f32 %v509, %v509
          %v590 = vmul.f32 %v510, %v510
          %v591 = vmul.f32 %v511, %v511
          %v592 = vmul.f32 %v512, %v512
          %v593 = vmul.f32 %v513, %v513
          %v594 = vmul.f32 %v514, %v514
          %v595 = vmul.f32 %v515, %v515
          %v596 = vsub.f32 %v564, %v580
          %v597 = vsub.f32 %v565, %v581
          %v598 = vsub.f32 %v566, %v582
          %v599 = vsub.f32 %v567, %v583
          %v600 = vsub.f32 %v568, %v584
          %v601 = vsub.f32 %v569, %v585
          %v602 = vsub.f32 %v570, %v586
          %v603 = vsub.f32 %v571, %v587
          %v604 = vsub.f32 %v572, %v588
          %v605 = vsub.f32 %v573, %v589
          %v606 = vsub.f32 %v574, %v590
          %v607 = vsub.f32 %v575, %v591
          %v608 = vsub.f32 %v576, %v592
          %v609 = vsub.f32 %v577, %v593
          %v610 = vsub.f32 %v578, %v594
          %v611 = vsub.f32 %v579, %v595
          %v612 = vsub.f32 %v451, %v500
          %v613 = vsub.f32 %v452, %v501
          %v614 = vsub.f32 %v453, %v502
          %v615 = vsub.f32 %v454, %v503
          %v616 = vsub.f32 %v455, %v504
          %v617 = vsub.f32 %v456, %v505
          %v618 = vsub.f32 %v457, %v506
          %v619 = vsub.f32 %v458, %v507
          %v620 = vsub.f32 %v459, %v508
          %v621 = vsub.f32 %v460, %v509
          %v622 = vsub.f32 %v461, %v510
          %v623 = vsub.f32 %v462, %v511
          %v624 = vsub.f32 %v463, %v512
          %v625 = vsub.f32 %v464, %v513
          %v626 = vsub.f32 %v465, %v514
          %v627 = vsub.f32 %v466, %v515
          %v628 = vadd.f32 %v596, 1e-05
          %v629 = vadd.f32 %v597, 1e-05
          %v630 = vadd.f32 %v598, 1e-05
          %v631 = vadd.f32 %v599, 1e-05
          %v632 = vadd.f32 %v600, 1e-05
          %v633 = vadd.f32 %v601, 1e-05
          %v634 = vadd.f32 %v602, 1e-05
          %v635 = vadd.f32 %v603, 1e-05
          %v636 = vadd.f32 %v604, 1e-05
          %v637 = vadd.f32 %v605, 1e-05
          %v638 = vadd.f32 %v606, 1e-05
          %v639 = vadd.f32 %v607, 1e-05
          %v640 = vadd.f32 %v608, 1e-05
          %v641 = vadd.f32 %v609, 1e-05
          %v642 = vadd.f32 %v610, 1e-05
          %v643 = vadd.f32 %v611, 1e-05
          %v644 = vrsqrt.pop %v628
          %v645 = vrsqrt.pop %v629
          %v646 = vrsqrt.pop %v630
          %v647 = vrsqrt.pop %v631
          %v648 = vrsqrt.pop %v632
          %v649 = vrsqrt.pop %v633
          %v650 = vrsqrt.pop %v634
          %v651 = vrsqrt.pop %v635
          %v652 = vrsqrt.pop %v636
          %v653 = vrsqrt.pop %v637
          %v654 = vrsqrt.pop %v638
          %v655 = vrsqrt.pop %v639
          %v656 = vrsqrt.pop %v640
          %v657 = vrsqrt.pop %v641
          %v658 = vrsqrt.pop %v642
          %v659 = vrsqrt.pop %v643
          %v660 = vmul.f32 %v612, %v644
          %v661 = vmul.f32 %v613, %v645
          %v662 = vmul.f32 %v614, %v646
          %v663 = vmul.f32 %v615, %v647
          %v664 = vmul.f32 %v616, %v648
          %v665 = vmul.f32 %v617, %v649
          %v666 = vmul.f32 %v618, %v650
          %v667 = vmul.f32 %v619, %v651
          %v668 = vmul.f32 %v620, %v652
          %v669 = vmul.f32 %v621, %v653
          %v670 = vmul.f32 %v622, %v654
          %v671 = vmul.f32 %v623, %v655
          %v672 = vmul.f32 %v624, %v656
          %v673 = vmul.f32 %v625, %v657
          %v674 = vmul.f32 %v626, %v658
          %v675 = vmul.f32 %v627, %v659
          %v677 = vlaneseq
          %v678 = vshrl.u32 %v677, 7
          %v679 = vsub.s32 0, %v678
          %v680 = vrot.slane %v449, %v679
          %v682 = vmul.f32 %v660, %v680
          %v683 = vmul.f32 %v661, %v680
          %v684 = vmul.f32 %v662, %v680
          %v685 = vmul.f32 %v663, %v680
          %v686 = vmul.f32 %v664, %v680
          %v687 = vmul.f32 %v665, %v680
          %v688 = vmul.f32 %v666, %v680
          %v689 = vmul.f32 %v667, %v680
          %v690 = vmul.f32 %v668, %v680
          %v691 = vmul.f32 %v669, %v680
          %v692 = vmul.f32 %v670, %v680
          %v693 = vmul.f32 %v671, %v680
          %v694 = vmul.f32 %v672, %v680
          %v695 = vmul.f32 %v673, %v680
          %v696 = vmul.f32 %v674, %v680
          %v697 = vmul.f32 %v675, %v680
          %v699 = vlaneseq
          %v700 = vshrl.u32 %v699, 7
          %v701 = vsub.s32 0, %v700
          %v702 = vrot.slane %v450, %v701
          %v704 = vadd.f32 %v682, %v702
          %v705 = vadd.f32 %v683, %v702
          %v706 = vadd.f32 %v684, %v702
          %v707 = vadd.f32 %v685, %v702
          %v708 = vadd.f32 %v686, %v702
          %v709 = vadd.f32 %v687, %v702
          %v710 = vadd.f32 %v688, %v702
          %v711 = vadd.f32 %v689, %v702
          %v712 = vadd.f32 %v690, %v702
          %v713 = vadd.f32 %v691, %v702
          %v714 = vadd.f32 %v692, %v702
          %v715 = vadd.f32 %v693, %v702
          %v716 = vadd.f32 %v694, %v702
          %v717 = vadd.f32 %v695, %v702
          %v718 = vadd.f32 %v696, %v702
          %v719 = vadd.f32 %v697, %v702
          %v720 = vpack.c.bf16 %v705, %v704
          %v721 = vpack.c.bf16 %v707, %v706
          %v722 = vpack.c.bf16 %v709, %v708
          %v723 = vpack.c.bf16 %v711, %v710
          %v724 = vpack.c.bf16 %v713, %v712
          %v725 = vpack.c.bf16 %v715, %v714
          %v726 = vpack.c.bf16 %v717, %v716
          %v727 = vpack.c.bf16 %v719, %v718
          %728 = vst [vmem:[#allocation2] sm:$0xff] %v720
          %729 = vst [vmem:[#allocation2 + $0x8] sm:$0xff] %v721
          %730 = vst [vmem:[#allocation2 + $0x10] sm:$0xff] %v722
          %731 = vst [vmem:[#allocation2 + $0x18] sm:$0xff] %v723
          %732 = vst [vmem:[#allocation2 + $0x20] sm:$0xff] %v724
          %733 = vst [vmem:[#allocation2 + $0x28] sm:$0xff] %v725
          %734 = vst [vmem:[#allocation2 + $0x30] sm:$0xff] %v726
          %735 = vst [vmem:[#allocation2 + $0x38] sm:$0xff] %v727
          %v736 = vld [vmem:[#allocation11] sm:$0xf]
          %v737 = vld [vmem:[#allocation11 + $0x4] sm:$0xf]
          %v738 = vld [vmem:[#allocation11 + $0x8] sm:$0xf]
          %v739 = vld [vmem:[#allocation11 + $0xc] sm:$0xf]
          %v740 = vld [vmem:[#allocation11 + $0x10] sm:$0xf]
          %v741 = vld [vmem:[#allocation11 + $0x14] sm:$0xf]
          %v742 = vld [vmem:[#allocation11 + $0x18] sm:$0xf]
          %v743 = vld [vmem:[#allocation11 + $0x1c] sm:$0xf]
          %v744 = vld [vmem:[#allocation11 + $0x20] sm:$0xf]
          %v745 = vld [vmem:[#allocation11 + $0x24] sm:$0xf]
          %v746 = vld [vmem:[#allocation11 + $0x28] sm:$0xf]
          %v747 = vld [vmem:[#allocation11 + $0x2c] sm:$0xf]
          %v748 = vld [vmem:[#allocation11 + $0x30] sm:$0xf]
          %v749 = vld [vmem:[#allocation11 + $0x34] sm:$0xf]
          %v750 = vld [vmem:[#allocation11 + $0x38] sm:$0xf]
          %v751 = vld [vmem:[#allocation11 + $0x3c] sm:$0xf]
          %v768 = vunpack.c.l.b16 %v736
          %v769 = vunpack.c.l.b16 %v737
          %v770 = vunpack.c.l.b16 %v738
          %v771 = vunpack.c.l.b16 %v739
          %v772 = vunpack.c.l.b16 %v740
          %v773 = vunpack.c.l.b16 %v741
          %v774 = vunpack.c.l.b16 %v742
          %v775 = vunpack.c.l.b16 %v743
          %v776 = vunpack.c.l.b16 %v744
          %v777 = vunpack.c.l.b16 %v745
          %v778 = vunpack.c.l.b16 %v746
          %v779 = vunpack.c.l.b16 %v747
          %v780 = vunpack.c.l.b16 %v748
          %v781 = vunpack.c.l.b16 %v749
          %v782 = vunpack.c.l.b16 %v750
          %v783 = vunpack.c.l.b16 %v751
          %v784 = vpack.c.b16 %v769, %v768
          %v785 = vpack.c.b16 %v771, %v770
          %v786 = vpack.c.b16 %v773, %v772
          %v787 = vpack.c.b16 %v775, %v774
          %v788 = vpack.c.b16 %v777, %v776
          %v789 = vpack.c.b16 %v779, %v778
          %v790 = vpack.c.b16 %v781, %v780
          %v791 = vpack.c.b16 %v783, %v782
          %800 = vmatprep.subr.bf16.mxu0 0
          %801 = vmatpush1.bf16.msra.mxu0 %v784
          %802 = vmatprep.subr.bf16.mxu0 0
          %803 = vmatpush1.bf16.msra.mxu0 %v785
          %804 = vmatprep.subr.bf16.mxu0 0
          %805 = vmatpush1.bf16.msra.mxu0 %v786
          %806 = vmatprep.subr.bf16.mxu0 0
          %807 = vmatpush1.bf16.msra.mxu0 %v787
          %808 = vmatprep.subr.bf16.mxu0 0
          %809 = vmatpush1.bf16.msra.mxu0 %v788
          %810 = vmatprep.subr.bf16.mxu0 0
          %811 = vmatpush1.bf16.msra.mxu0 %v789
          %812 = vmatprep.subr.bf16.mxu0 0
          %813 = vmatpush1.bf16.msra.mxu0 %v790
          %814 = vmatprep.subr.bf16.mxu0 0
          %815 = vmatpush1.bf16.msra.mxu0 %v791
          %816 = vmatprep.subr.bf16.mxu0 0
          %817 = vmatpush1.bf16.msra.mxu0 0
          %818 = vmatprep.subr.bf16.mxu0 0
          %819 = vmatpush1.bf16.msra.mxu0 0
          %820 = vmatprep.subr.bf16.mxu0 0
          %821 = vmatpush1.bf16.msra.mxu0 0
          %822 = vmatprep.subr.bf16.mxu0 0
          %823 = vmatpush1.bf16.msra.mxu0 0
          %824 = vmatprep.subr.bf16.mxu0 0
          %825 = vmatpush1.bf16.msra.mxu0 0
          %826 = vmatprep.subr.bf16.mxu0 0
          %827 = vmatpush1.bf16.msra.mxu0 0
          %828 = vmatprep.subr.bf16.mxu0 0
          %829 = vmatpush1.bf16.msra.mxu0 0
          %830 = vmatprep.subr.bf16.mxu0 0
          %831 = vmatpush1.bf16.msra.mxu0 0
          %832 = vmatprep.mubr.bf16.mxu0 0
          %833 = vmatmul.mubr.bf16.gmra.mrb[0].mxu0 %v720
          %v834 = vpop.f32.mrb[0].mxu0
          %v835 = vadd.f32 0.0, %v834
          %v836 = vpop.f32.mrb[0].mxu0
          %v837 = vpop.f32.mrb[0].mxu0
          %v838 = vadd.f32 0.0, %v837
          %v839 = vpop.f32.mrb[0].mxu0
          %840 = vmatprep.mubr.bf16.mxu0 0
          %841 = vmatmul.mubr.bf16.gmra.mrb[0].mxu0 %v721
          %v842 = vpop.f32.mrb[0].mxu0
          %v843 = vadd.f32 0.0, %v842
          %v844 = vpop.f32.mrb[0].mxu0
          %v845 = vpop.f32.mrb[0].mxu0
          %v846 = vadd.f32 0.0, %v845
          %v847 = vpop.f32.mrb[0].mxu0
          %848 = vmatprep.mubr.bf16.mxu0 0
          %849 = vmatmul.mubr.bf16.gmra.mrb[0].mxu0 %v722
          %v850 = vpop.f32.mrb[0].mxu0
          %v851 = vadd.f32 0.0, %v850
          %v852 = vpop.f32.mrb[0].mxu0
          %v853 = vpop.f32.mrb[0].mxu0
          %v854 = vadd.f32 0.0, %v853
          %v855 = vpop.f32.mrb[0].mxu0
          %856 = vmatprep.mubr.bf16.mxu0 0
          %857 = vmatmul.mubr.bf16.gmra.mrb[0].mxu0 %v723
          %v858 = vpop.f32.mrb[0].mxu0
          %v859 = vadd.f32 0.0, %v858
          %v860 = vpop.f32.mrb[0].mxu0
          %v861 = vpop.f32.mrb[0].mxu0
          %v862 = vadd.f32 0.0, %v861
          %v863 = vpop.f32.mrb[0].mxu0
          %864 = vmatprep.mubr.bf16.mxu0 0
          %865 = vmatmul.mubr.bf16.gmra.mrb[0].mxu0 %v724
          %v866 = vpop.f32.mrb[0].mxu0
          %v867 = vadd.f32 0.0, %v866
          %v868 = vpop.f32.mrb[0].mxu0
          %v869 = vpop.f32.mrb[0].mxu0
          %v870 = vadd.f32 0.0, %v869
          %v871 = vpop.f32.mrb[0].mxu0
          %872 = vmatprep.mubr.bf16.mxu0 0
          %873 = vmatmul.mubr.bf16.gmra.mrb[0].mxu0 %v725
          %v874 = vpop.f32.mrb[0].mxu0
          %v875 = vadd.f32 0.0, %v874
          %v876 = vpop.f32.mrb[0].mxu0
          %v877 = vpop.f32.mrb[0].mxu0
          %v878 = vadd.f32 0.0, %v877
          %v879 = vpop.f32.mrb[0].mxu0
          %880 = vmatprep.mubr.bf16.mxu0 0
          %881 = vmatmul.mubr.bf16.gmra.mrb[0].mxu0 %v726
          %v882 = vpop.f32.mrb[0].mxu0
          %v883 = vadd.f32 0.0, %v882
          %v884 = vpop.f32.mrb[0].mxu0
          %v885 = vpop.f32.mrb[0].mxu0
          %v886 = vadd.f32 0.0, %v885
          %v887 = vpop.f32.mrb[0].mxu0
          %888 = vmatprep.mubr.bf16.mxu0 0
          %889 = vmatmul.mubr.bf16.gmra.mrb[0].mxu0 %v727
          %v890 = vpop.f32.mrb[0].mxu0
          %v891 = vadd.f32 0.0, %v890
          %v892 = vpop.f32.mrb[0].mxu0
          %v893 = vpop.f32.mrb[0].mxu0
          %v894 = vadd.f32 0.0, %v893
          %v895 = vpop.f32.mrb[0].mxu0
          %896 = vdwg.mxu0
          %v897 = vpack.c.bf16 %v838, %v835
          %v898 = vpack.c.bf16 %v846, %v843
          %v899 = vpack.c.bf16 %v854, %v851
          %v900 = vpack.c.bf16 %v862, %v859
          %v901 = vpack.c.bf16 %v870, %v867
          %v902 = vpack.c.bf16 %v878, %v875
          %v903 = vpack.c.bf16 %v886, %v883
          %v904 = vpack.c.bf16 %v894, %v891
          %905 = vst [vmem:[#allocation3] sm:$0xff] %v897
          %906 = vst [vmem:[#allocation3 + $0x8] sm:$0xff] %v898
          %907 = vst [vmem:[#allocation3 + $0x10] sm:$0xff] %v899
          %908 = vst [vmem:[#allocation3 + $0x18] sm:$0xff] %v900
          %909 = vst [vmem:[#allocation3 + $0x20] sm:$0xff] %v901
          %910 = vst [vmem:[#allocation3 + $0x28] sm:$0xff] %v902
          %911 = vst [vmem:[#allocation3 + $0x30] sm:$0xff] %v903
          %912 = vst [vmem:[#allocation3 + $0x38] sm:$0xff] %v904
          %v913 = vld [vmem:[#allocation13] sm:$0xf]
          %v914 = vld [vmem:[#allocation13 + $0x4] sm:$0xf]
          %v915 = vld [vmem:[#allocation13 + $0x8] sm:$0xf]
          %v916 = vld [vmem:[#allocation13 + $0xc] sm:$0xf]
          %v917 = vld [vmem:[#allocation13 + $0x10] sm:$0xf]
          %v918 = vld [vmem:[#allocation13 + $0x14] sm:$0xf]
          %v919 = vld [vmem:[#allocation13 + $0x18] sm:$0xf]
          %v920 = vld [vmem:[#allocation13 + $0x1c] sm:$0xf]
          %v921 = vld [vmem:[#allocation13 + $0x20] sm:$0xf]
          %v922 = vld [vmem:[#allocation13 + $0x24] sm:$0xf]
          %v923 = vld [vmem:[#allocation13 + $0x28] sm:$0xf]
          %v924 = vld [vmem:[#allocation13 + $0x2c] sm:$0xf]
          %v925 = vld [vmem:[#allocation13 + $0x30] sm:$0xf]
          %v926 = vld [vmem:[#allocation13 + $0x34] sm:$0xf]
          %v927 = vld [vmem:[#allocation13 + $0x38] sm:$0xf]
          %v928 = vld [vmem:[#allocation13 + $0x3c] sm:$0xf]
          %v945 = vunpack.c.l.b16 %v913
          %v946 = vunpack.c.l.b16 %v914
          %v947 = vunpack.c.l.b16 %v915
          %v948 = vunpack.c.l.b16 %v916
          %v949 = vunpack.c.l.b16 %v917
          %v950 = vunpack.c.l.b16 %v918
          %v951 = vunpack.c.l.b16 %v919
          %v952 = vunpack.c.l.b16 %v920
          %v953 = vunpack.c.l.b16 %v921
          %v954 = vunpack.c.l.b16 %v922
          %v955 = vunpack.c.l.b16 %v923
          %v956 = vunpack.c.l.b16 %v924
          %v957 = vunpack.c.l.b16 %v925
          %v958 = vunpack.c.l.b16 %v926
          %v959 = vunpack.c.l.b16 %v927
          %v960 = vunpack.c.l.b16 %v928
          %v961 = vpack.c.b16 %v946, %v945
          %v962 = vpack.c.b16 %v948, %v947
          %v963 = vpack.c.b16 %v950, %v949
          %v964 = vpack.c.b16 %v952, %v951
          %v965 = vpack.c.b16 %v954, %v953
          %v966 = vpack.c.b16 %v956, %v955
          %v967 = vpack.c.b16 %v958, %v957
          %v968 = vpack.c.b16 %v960, %v959
          %977 = vmatprep.subr.bf16.mxu0 0
          %978 = vmatpush1.bf16.msra.mxu0 %v961
          %979 = vmatprep.subr.bf16.mxu0 0
          %980 = vmatpush1.bf16.msra.mxu0 %v962
          %981 = vmatprep.subr.bf16.mxu0 0
          %982 = vmatpush1.bf16.msra.mxu0 %v963
          %983 = vmatprep.subr.bf16.mxu0 0
          %984 = vmatpush1.bf16.msra.mxu0 %v964
          %985 = vmatprep.subr.bf16.mxu0 0
          %986 = vmatpush1.bf16.msra.mxu0 %v965
          %987 = vmatprep.subr.bf16.mxu0 0
          %988 = vmatpush1.bf16.msra.mxu0 %v966
          %989 = vmatprep.subr.bf16.mxu0 0
          %990 = vmatpush1.bf16.msra.mxu0 %v967
          %991 = vmatprep.subr.bf16.mxu0 0
          %992 = vmatpush1.bf16.msra.mxu0 %v968
          %993 = vmatprep.subr.bf16.mxu0 0
          %994 = vmatpush1.bf16.msra.mxu0 0
          %995 = vmatprep.subr.bf16.mxu0 0
          %996 = vmatpush1.bf16.msra.mxu0 0
          %997 = vmatprep.subr.bf16.mxu0 0
          %998 = vmatpush1.bf16.msra.mxu0 0
          %999 = vmatprep.subr.bf16.mxu0 0
          %1000 = vmatpush1.bf16.msra.mxu0 0
          %1001 = vmatprep.subr.bf16.mxu0 0
          %1002 = vmatpush1.bf16.msra.mxu0 0
          %1003 = vmatprep.subr.bf16.mxu0 0
          %1004 = vmatpush1.bf16.msra.mxu0 0
          %1005 = vmatprep.subr.bf16.mxu0 0
          %1006 = vmatpush1.bf16.msra.mxu0 0
          %1007 = vmatprep.subr.bf16.mxu0 0
          %1008 = vmatpush1.bf16.msra.mxu0 0
          %1009 = vmatprep.mubr.bf16.mxu0 0
          %1010 = vmatmul.mubr.bf16.gmra.mrb[0].mxu0 %v720
          %v1011 = vpop.f32.mrb[0].mxu0
          %v1012 = vadd.f32 0.0, %v1011
          %v1013 = vpop.f32.mrb[0].mxu0
          %v1014 = vpop.f32.mrb[0].mxu0
          %v1015 = vadd.f32 0.0, %v1014
          %v1016 = vpop.f32.mrb[0].mxu0
          %1017 = vmatprep.mubr.bf16.mxu0 0
          %1018 = vmatmul.mubr.bf16.gmra.mrb[0].mxu0 %v721
          %v1019 = vpop.f32.mrb[0].mxu0
          %v1020 = vadd.f32 0.0, %v1019
          %v1021 = vpop.f32.mrb[0].mxu0
          %v1022 = vpop.f32.mrb[0].mxu0
          %v1023 = vadd.f32 0.0, %v1022
          %v1024 = vpop.f32.mrb[0].mxu0
          %1025 = vmatprep.mubr.bf16.mxu0 0
          %1026 = vmatmul.mubr.bf16.gmra.mrb[0].mxu0 %v722
          %v1027 = vpop.f32.mrb[0].mxu0
          %v1028 = vadd.f32 0.0, %v1027
          %v1029 = vpop.f32.mrb[0].mxu0
          %v1030 = vpop.f32.mrb[0].mxu0
          %v1031 = vadd.f32 0.0, %v1030
          %v1032 = vpop.f32.mrb[0].mxu0
          %1033 = vmatprep.mubr.bf16.mxu0 0
          %1034 = vmatmul.mubr.bf16.gmra.mrb[0].mxu0 %v723
          %v1035 = vpop.f32.mrb[0].mxu0
          %v1036 = vadd.f32 0.0, %v1035
          %v1037 = vpop.f32.mrb[0].mxu0
          %v1038 = vpop.f32.mrb[0].mxu0
          %v1039 = vadd.f32 0.0, %v1038
          %v1040 = vpop.f32.mrb[0].mxu0
          %1041 = vmatprep.mubr.bf16.mxu0 0
          %1042 = vmatmul.mubr.bf16.gmra.mrb[0].mxu0 %v724
          %v1043 = vpop.f32.mrb[0].mxu0
          %v1044 = vadd.f32 0.0, %v1043
          %v1045 = vpop.f32.mrb[0].mxu0
          %v1046 = vpop.f32.mrb[0].mxu0
          %v1047 = vadd.f32 0.0, %v1046
          %v1048 = vpop.f32.mrb[0].mxu0
          %1049 = vmatprep.mubr.bf16.mxu0 0
          %1050 = vmatmul.mubr.bf16.gmra.mrb[0].mxu0 %v725
          %v1051 = vpop.f32.mrb[0].mxu0
          %v1052 = vadd.f32 0.0, %v1051
          %v1053 = vpop.f32.mrb[0].mxu0
          %v1054 = vpop.f32.mrb[0].mxu0
          %v1055 = vadd.f32 0.0, %v1054
          %v1056 = vpop.f32.mrb[0].mxu0
          %1057 = vmatprep.mubr.bf16.mxu0 0
          %1058 = vmatmul.mubr.bf16.gmra.mrb[0].mxu0 %v726
          %v1059 = vpop.f32.mrb[0].mxu0
          %v1060 = vadd.f32 0.0, %v1059
          %v1061 = vpop.f32.mrb[0].mxu0
          %v1062 = vpop.f32.mrb[0].mxu0
          %v1063 = vadd.f32 0.0, %v1062
          %v1064 = vpop.f32.mrb[0].mxu0
          %1065 = vmatprep.mubr.bf16.mxu0 0
          %1066 = vmatmul.mubr.bf16.gmra.mrb[0].mxu0 %v727
          %v1067 = vpop.f32.mrb[0].mxu0
          %v1068 = vadd.f32 0.0, %v1067
          %v1069 = vpop.f32.mrb[0].mxu0
          %v1070 = vpop.f32.mrb[0].mxu0
          %v1071 = vadd.f32 0.0, %v1070
          %v1072 = vpop.f32.mrb[0].mxu0
          %1073 = vdwg.mxu0
          %v1074 = vpack.c.bf16 %v1015, %v1012
          %v1075 = vpack.c.bf16 %v1023, %v1020
          %v1076 = vpack.c.bf16 %v1031, %v1028
          %v1077 = vpack.c.bf16 %v1039, %v1036
          %v1078 = vpack.c.bf16 %v1047, %v1044
          %v1079 = vpack.c.bf16 %v1055, %v1052
          %v1080 = vpack.c.bf16 %v1063, %v1060
          %v1081 = vpack.c.bf16 %v1071, %v1068
          %1082 = vst [vmem:[#allocation4] sm:$0xff] %v1074
          %1083 = vst [vmem:[#allocation4 + $0x8] sm:$0xff] %v1075
          %1084 = vst [vmem:[#allocation4 + $0x10] sm:$0xff] %v1076
          %1085 = vst [vmem:[#allocation4 + $0x18] sm:$0xff] %v1077
          %1086 = vst [vmem:[#allocation4 + $0x20] sm:$0xff] %v1078
          %1087 = vst [vmem:[#allocation4 + $0x28] sm:$0xff] %v1079
          %1088 = vst [vmem:[#allocation4 + $0x30] sm:$0xff] %v1080
          %1089 = vst [vmem:[#allocation4 + $0x38] sm:$0xff] %v1081
        $region80: #{tpu_custom_call.1} parent=51 // pred_fallthru
          _
        %s1090 = smul.u32 %s35, 128
        %s1091 = sshra.s32 %s1090, 4
        %s1092 = sand.u32 %s1090, 15
        %s1093 = smul.addr %s1091, 8
        %s1094 = scalar_lea.vmem [#allocation2], %s1093
        %v1095 = vld [vmem:[%s1094] sm:$0xff]
        %v1096 = vld [vmem:[%s1094 + $0x8] sm:$0xff]
        %v1097 = vld [vmem:[%s1094 + $0x10] sm:$0xff]
        %v1098 = vld [vmem:[%s1094 + $0x18] sm:$0xff]
        %v1099 = vld [vmem:[%s1094 + $0x20] sm:$0xff]
        %v1100 = vld [vmem:[%s1094 + $0x28] sm:$0xff]
        %v1101 = vld [vmem:[%s1094 + $0x30] sm:$0xff]
        %v1102 = vld [vmem:[%s1094 + $0x38] sm:$0xff]
        %v1103 = vld [vmem:[#allocation10] sm:$0xf]
        %v1104 = vld [vmem:[#allocation10 + $0x4] sm:$0xf]
        %v1105 = vld [vmem:[#allocation10 + $0x8] sm:$0xf]
        %v1106 = vld [vmem:[#allocation10 + $0xc] sm:$0xf]
        %v1107 = vld [vmem:[#allocation10 + $0x10] sm:$0xf]
        %v1108 = vld [vmem:[#allocation10 + $0x14] sm:$0xf]
        %v1109 = vld [vmem:[#allocation10 + $0x18] sm:$0xf]
        %v1110 = vld [vmem:[#allocation10 + $0x1c] sm:$0xf]
        %v1111 = vld [vmem:[#allocation10 + $0x20] sm:$0xf]
        %v1112 = vld [vmem:[#allocation10 + $0x24] sm:$0xf]
        %v1113 = vld [vmem:[#allocation10 + $0x28] sm:$0xf]
        %v1114 = vld [vmem:[#allocation10 + $0x2c] sm:$0xf]
        %v1115 = vld [vmem:[#allocation10 + $0x30] sm:$0xf]
        %v1116 = vld [vmem:[#allocation10 + $0x34] sm:$0xf]
        %v1117 = vld [vmem:[#allocation10 + $0x38] sm:$0xf]
        %v1118 = vld [vmem:[#allocation10 + $0x3c] sm:$0xf]
        %v1135 = vunpack.c.l.b16 %v1103
        %v1136 = vunpack.c.l.b16 %v1104
        %v1137 = vunpack.c.l.b16 %v1105
        %v1138 = vunpack.c.l.b16 %v1106
        %v1139 = vunpack.c.l.b16 %v1107
        %v1140 = vunpack.c.l.b16 %v1108
        %v1141 = vunpack.c.l.b16 %v1109
        %v1142 = vunpack.c.l.b16 %v1110
        %v1143 = vunpack.c.l.b16 %v1111
        %v1144 = vunpack.c.l.b16 %v1112
        %v1145 = vunpack.c.l.b16 %v1113
        %v1146 = vunpack.c.l.b16 %v1114
        %v1147 = vunpack.c.l.b16 %v1115
        %v1148 = vunpack.c.l.b16 %v1116
        %v1149 = vunpack.c.l.b16 %v1117
        %v1150 = vunpack.c.l.b16 %v1118
        %v1151 = vpack.c.b16 %v1136, %v1135
        %v1152 = vpack.c.b16 %v1138, %v1137
        %v1153 = vpack.c.b16 %v1140, %v1139
        %v1154 = vpack.c.b16 %v1142, %v1141
        %v1155 = vpack.c.b16 %v1144, %v1143
        %v1156 = vpack.c.b16 %v1146, %v1145
        %v1157 = vpack.c.b16 %v1148, %v1147
        %v1158 = vpack.c.b16 %v1150, %v1149
        %1167 = vmatprep.subr.bf16.mxu0 0
        %1168 = vmatpush1.bf16.msra.mxu0 %v1151
        %1169 = vmatprep.subr.bf16.mxu0 0
        %1170 = vmatpush1.bf16.msra.mxu0 %v1152
        %1171 = vmatprep.subr.bf16.mxu0 0
        %1172 = vmatpush1.bf16.msra.mxu0 %v1153
        %1173 = vmatprep.subr.bf16.mxu0 0
        %1174 = vmatpush1.bf16.msra.mxu0 %v1154
        %1175 = vmatprep.subr.bf16.mxu0 0
        %1176 = vmatpush1.bf16.msra.mxu0 %v1155
        %1177 = vmatprep.subr.bf16.mxu0 0
        %1178 = vmatpush1.bf16.msra.mxu0 %v1156
        %1179 = vmatprep.subr.bf16.mxu0 0
        %1180 = vmatpush1.bf16.msra.mxu0 %v1157
        %1181 = vmatprep.subr.bf16.mxu0 0
        %1182 = vmatpush1.bf16.msra.mxu0 %v1158
        %1183 = vmatprep.subr.bf16.mxu0 0
        %1184 = vmatpush1.bf16.msra.mxu0 0
        %1185 = vmatprep.subr.bf16.mxu0 0
        %1186 = vmatpush1.bf16.msra.mxu0 0
        %1187 = vmatprep.subr.bf16.mxu0 0
        %1188 = vmatpush1.bf16.msra.mxu0 0
        %1189 = vmatprep.subr.bf16.mxu0 0
        %1190 = vmatpush1.bf16.msra.mxu0 0
        %1191 = vmatprep.subr.bf16.mxu0 0
        %1192 = vmatpush1.bf16.msra.mxu0 0
        %1193 = vmatprep.subr.bf16.mxu0 0
        %1194 = vmatpush1.bf16.msra.mxu0 0
        %1195 = vmatprep.subr.bf16.mxu0 0
        %1196 = vmatpush1.bf16.msra.mxu0 0
        %1197 = vmatprep.subr.bf16.mxu0 0
        %1198 = vmatpush1.bf16.msra.mxu0 0
        %1199 = vmatprep.mubr.bf16.mxu0 0
        %1200 = vmatmul.mubr.bf16.gmra.mrb[0].mxu0 %v1095
        %v1201 = vpop.f32.mrb[0].mxu0
        %v1202 = vadd.f32 0.0, %v1201
        %v1203 = vpop.f32.mrb[0].mxu0
        %v1204 = vpop.f32.mrb[0].mxu0
        %v1205 = vadd.f32 0.0, %v1204
        %v1206 = vpop.f32.mrb[0].mxu0
        %1207 = vmatprep.mubr.bf16.mxu0 0
        %1208 = vmatmul.mubr.bf16.gmra.mrb[0].mxu0 %v1096
        %v1209 = vpop.f32.mrb[0].mxu0
        %v1210 = vadd.f32 0.0, %v1209
        %v1211 = vpop.f32.mrb[0].mxu0
        %v1212 = vpop.f32.mrb[0].mxu0
        %v1213 = vadd.f32 0.0, %v1212
        %v1214 = vpop.f32.mrb[0].mxu0
        %1215 = vmatprep.mubr.bf16.mxu0 0
        %1216 = vmatmul.mubr.bf16.gmra.mrb[0].mxu0 %v1097
        %v1217 = vpop.f32.mrb[0].mxu0
        %v1218 = vadd.f32 0.0, %v1217
        %v1219 = vpop.f32.mrb[0].mxu0
        %v1220 = vpop.f32.mrb[0].mxu0
        %v1221 = vadd.f32 0.0, %v1220
        %v1222 = vpop.f32.mrb[0].mxu0
        %1223 = vmatprep.mubr.bf16.mxu0 0
        %1224 = vmatmul.mubr.bf16.gmra.mrb[0].mxu0 %v1098
        %v1225 = vpop.f32.mrb[0].mxu0
        %v1226 = vadd.f32 0.0, %v1225
        %v1227 = vpop.f32.mrb[0].mxu0
        %v1228 = vpop.f32.mrb[0].mxu0
        %v1229 = vadd.f32 0.0, %v1228
        %v1230 = vpop.f32.mrb[0].mxu0
        %1231 = vmatprep.mubr.bf16.mxu0 0
        %1232 = vmatmul.mubr.bf16.gmra.mrb[0].mxu0 %v1099
        %v1233 = vpop.f32.mrb[0].mxu0
        %v1234 = vadd.f32 0.0, %v1233
        %v1235 = vpop.f32.mrb[0].mxu0
        %v1236 = vpop.f32.mrb[0].mxu0
        %v1237 = vadd.f32 0.0, %v1236
        %v1238 = vpop.f32.mrb[0].mxu0
        %1239 = vmatprep.mubr.bf16.mxu0 0
        %1240 = vmatmul.mubr.bf16.gmra.mrb[0].mxu0 %v1100
        %v1241 = vpop.f32.mrb[0].mxu0
        %v1242 = vadd.f32 0.0, %v1241
        %v1243 = vpop.f32.mrb[0].mxu0
        %v1244 = vpop.f32.mrb[0].mxu0
        %v1245 = vadd.f32 0.0, %v1244
        %v1246 = vpop.f32.mrb[0].mxu0
        %1247 = vmatprep.mubr.bf16.mxu0 0
        %1248 = vmatmul.mubr.bf16.gmra.mrb[0].mxu0 %v1101
        %v1249 = vpop.f32.mrb[0].mxu0
        %v1250 = vadd.f32 0.0, %v1249
        %v1251 = vpop.f32.mrb[0].mxu0
        %v1252 = vpop.f32.mrb[0].mxu0
        %v1253 = vadd.f32 0.0, %v1252
        %v1254 = vpop.f32.mrb[0].mxu0
        %1255 = vmatprep.mubr.bf16.mxu0 0
        %1256 = vmatmul.mubr.bf16.gmra.mrb[0].mxu0 %v1102
        %v1257 = vpop.f32.mrb[0].mxu0
        %v1258 = vadd.f32 0.0, %v1257
        %v1259 = vpop.f32.mrb[0].mxu0
        %v1260 = vpop.f32.mrb[0].mxu0
        %v1261 = vadd.f32 0.0, %v1260
        %v1262 = vpop.f32.mrb[0].mxu0
        %1263 = vdwg.mxu0
        %v1264 = vpack.c.bf16 %v1205, %v1202
        %v1265 = vpack.c.bf16 %v1213, %v1210
        %v1266 = vpack.c.bf16 %v1221, %v1218
        %v1267 = vpack.c.bf16 %v1229, %v1226
        %v1268 = vpack.c.bf16 %v1237, %v1234
        %v1269 = vpack.c.bf16 %v1245, %v1242
        %v1270 = vpack.c.bf16 %v1253, %v1250
        %v1271 = vpack.c.bf16 %v1261, %v1258
        %v1272 = vld [vmem:[#allocation3] sm:$0xff]
        %v1273 = vld [vmem:[#allocation3 + $0x8] sm:$0xff]
        %v1274 = vld [vmem:[#allocation3 + $0x10] sm:$0xff]
        %v1275 = vld [vmem:[#allocation3 + $0x18] sm:$0xff]
        %v1276 = vld [vmem:[#allocation3 + $0x20] sm:$0xff]
        %v1277 = vld [vmem:[#allocation3 + $0x28] sm:$0xff]
        %v1278 = vld [vmem:[#allocation3 + $0x30] sm:$0xff]
        %v1279 = vld [vmem:[#allocation3 + $0x38] sm:$0xff]
        %v1280 = vld [vmem:[#allocation4] sm:$0xff]
        %v1281 = vld [vmem:[#allocation4 + $0x8] sm:$0xff]
        %v1282 = vld [vmem:[#allocation4 + $0x10] sm:$0xff]
        %v1283 = vld [vmem:[#allocation4 + $0x18] sm:$0xff]
        %v1284 = vld [vmem:[#allocation4 + $0x20] sm:$0xff]
        %v1285 = vld [vmem:[#allocation4 + $0x28] sm:$0xff]
        %v1286 = vld [vmem:[#allocation4 + $0x30] sm:$0xff]
        %v1287 = vld [vmem:[#allocation4 + $0x38] sm:$0xff]
        %v1288 = vld [vmem:[%s386] sm:$0xff]
        %v1289 = vld [vmem:[%s386 + $0x8] sm:$0xff]
        %v1290 = vld [vmem:[%s386 + $0x10] sm:$0xff]
        %v1291 = vld [vmem:[%s386 + $0x18] sm:$0xff]
        %vm1292 = vnez %v1288
        %vm1293 = vnez %v1289
        %vm1294 = vnez %v1290
        %vm1295 = vnez %v1291
        %vm1296 = vcmask 261120
        %v1298 = vsel %vm1296, %v1264, 0
        %v1301 = vsel %vm1296, %v1265, 0
        %v1304 = vsel %vm1296, %v1266, 0
        %v1307 = vsel %vm1296, %v1267, 0
        %v1310 = vsel %vm1296, %v1268, 0
        %v1313 = vsel %vm1296, %v1269, 0
        %v1316 = vsel %vm1296, %v1270, 0
        %v1319 = vsel %vm1296, %v1271, 0
        %v1322 = vsel %vm1296, %v1272, 0
        %v1325 = vsel %vm1296, %v1273, 0
        %v1328 = vsel %vm1296, %v1274, 0
        %v1331 = vsel %vm1296, %v1275, 0
        %v1334 = vsel %vm1296, %v1276, 0
        %v1337 = vsel %vm1296, %v1277, 0
        %v1340 = vsel %vm1296, %v1278, 0
        %v1343 = vsel %vm1296, %v1279, 0
        %1345 = vmatprep.subr.bf16.mxu0 0
        %1346 = vmatpush1.bf16.xpose.msra.mxu0 %v1322
        %1347 = vmatprep.subr.bf16.mxu0 0
        %1348 = vmatpush1.bf16.xpose.msra.mxu0 %v1325
        %1349 = vmatprep.subr.bf16.mxu0 0
        %1350 = vmatpush1.bf16.xpose.msra.mxu0 %v1328
        %1351 = vmatprep.subr.bf16.mxu0 0
        %1352 = vmatpush1.bf16.xpose.msra.mxu0 %v1331
        %1353 = vmatprep.subr.bf16.mxu0 0
        %1354 = vmatpush1.bf16.xpose.msra.mxu0 %v1334
        %1355 = vmatprep.subr.bf16.mxu0 0
        %1356 = vmatpush1.bf16.xpose.msra.mxu0 %v1337
        %1357 = vmatprep.subr.bf16.mxu0 0
        %1358 = vmatpush1.bf16.xpose.msra.mxu0 %v1340
        %1359 = vmatprep.subr.bf16.mxu0 0
        %1360 = vmatpush1.bf16.xpose.msra.mxu0 %v1343
        %1361 = vmatprep.subr.bf16.mxu0 0
        %1362 = vmatpush1.bf16.xpose.msra.mxu0 0
        %1363 = vmatprep.subr.bf16.mxu0 0
        %1364 = vmatpush1.bf16.xpose.msra.mxu0 0
        %1365 = vmatprep.subr.bf16.mxu0 0
        %1366 = vmatpush1.bf16.xpose.msra.mxu0 0
        %1367 = vmatprep.subr.bf16.mxu0 0
        %1368 = vmatpush1.bf16.xpose.msra.mxu0 0
        %1369 = vmatprep.subr.bf16.mxu0 0
        %1370 = vmatpush1.bf16.xpose.msra.mxu0 0
        %1371 = vmatprep.subr.bf16.mxu0 0
        %1372 = vmatpush1.bf16.xpose.msra.mxu0 0
        %1373 = vmatprep.subr.bf16.mxu0 0
        %1374 = vmatpush1.bf16.xpose.msra.mxu0 0
        %1375 = vmatprep.subr.bf16.mxu0 0
        %1376 = vmatpush1.bf16.xpose.msra.mxu0 0
        %1377 = vmatprep.mubr.bf16.mxu0 0
        %1378 = vmatmul.mubr.bf16.gmra.mrb[0].mxu0 %v1298
        %v1379 = vpop.f32.mrb[0].mxu0
        %v1380 = vadd.f32 0.0, %v1379
        %v1381 = vpop.f32.mrb[0].mxu0
        %v1382 = vpop.f32.mrb[0].mxu0
        %v1383 = vadd.f32 0.0, %v1382
        %v1384 = vpop.f32.mrb[0].mxu0
        %1385 = vmatprep.mubr.bf16.mxu0 0
        %1386 = vmatmul.mubr.bf16.gmra.mrb[0].mxu0 %v1301
        %v1387 = vpop.f32.mrb[0].mxu0
        %v1388 = vadd.f32 0.0, %v1387
        %v1389 = vpop.f32.mrb[0].mxu0
        %v1390 = vpop.f32.mrb[0].mxu0
        %v1391 = vadd.f32 0.0, %v1390
        %v1392 = vpop.f32.mrb[0].mxu0
        %1393 = vmatprep.mubr.bf16.mxu0 0
        %1394 = vmatmul.mubr.bf16.gmra.mrb[0].mxu0 %v1304
        %v1395 = vpop.f32.mrb[0].mxu0
        %v1396 = vadd.f32 0.0, %v1395
        %v1397 = vpop.f32.mrb[0].mxu0
        %v1398 = vpop.f32.mrb[0].mxu0
        %v1399 = vadd.f32 0.0, %v1398
        %v1400 = vpop.f32.mrb[0].mxu0
        %1401 = vmatprep.mubr.bf16.mxu0 0
        %1402 = vmatmul.mubr.bf16.gmra.mrb[0].mxu0 %v1307
        %v1403 = vpop.f32.mrb[0].mxu0
        %v1404 = vadd.f32 0.0, %v1403
        %v1405 = vpop.f32.mrb[0].mxu0
        %v1406 = vpop.f32.mrb[0].mxu0
        %v1407 = vadd.f32 0.0, %v1406
        %v1408 = vpop.f32.mrb[0].mxu0
        %1409 = vmatprep.mubr.bf16.mxu0 0
        %1410 = vmatmul.mubr.bf16.gmra.mrb[0].mxu0 %v1310
        %v1411 = vpop.f32.mrb[0].mxu0
        %v1412 = vadd.f32 0.0, %v1411
        %v1413 = vpop.f32.mrb[0].mxu0
        %v1414 = vpop.f32.mrb[0].mxu0
        %v1415 = vadd.f32 0.0, %v1414
        %v1416 = vpop.f32.mrb[0].mxu0
        %1417 = vmatprep.mubr.bf16.mxu0 0
        %1418 = vmatmul.mubr.bf16.gmra.mrb[0].mxu0 %v1313
        %v1419 = vpop.f32.mrb[0].mxu0
        %v1420 = vadd.f32 0.0, %v1419
        %v1421 = vpop.f32.mrb[0].mxu0
        %v1422 = vpop.f32.mrb[0].mxu0
        %v1423 = vadd.f32 0.0, %v1422
        %v1424 = vpop.f32.mrb[0].mxu0
        %1425 = vmatprep.mubr.bf16.mxu0 0
        %1426 = vmatmul.mubr.bf16.gmra.mrb[0].mxu0 %v1316
        %v1427 = vpop.f32.mrb[0].mxu0
        %v1428 = vadd.f32 0.0, %v1427
        %v1429 = vpop.f32.mrb[0].mxu0
        %v1430 = vpop.f32.mrb[0].mxu0
        %v1431 = vadd.f32 0.0, %v1430
        %v1432 = vpop.f32.mrb[0].mxu0
        %1433 = vmatprep.mubr.bf16.mxu0 0
        %1434 = vmatmul.mubr.bf16.gmra.mrb[0].mxu0 %v1319
        %v1435 = vpop.f32.mrb[0].mxu0
        %v1436 = vadd.f32 0.0, %v1435
        %v1437 = vpop.f32.mrb[0].mxu0
        %v1438 = vpop.f32.mrb[0].mxu0
        %v1439 = vadd.f32 0.0, %v1438
        %v1440 = vpop.f32.mrb[0].mxu0
        %1441 = vdwg.mxu0
        %v1442 = vsel %vm1292, 16843009, 0
        %v1443 = vsel %vm1293, 16843009, 0
        %v1444 = vsel %vm1294, 16843009, 0
        %v1445 = vsel %vm1295, 16843009, 0
        %v1446 = vunpack.c.0.s8 %v1442
        %v1447 = vunpack.c.1.s8 %v1442
        %v1448 = vunpack.c.2.s8 %v1442
        %v1449 = vunpack.c.3.s8 %v1442
        %v1450 = vunpack.c.0.s8 %v1443
        %v1451 = vunpack.c.1.s8 %v1443
        %v1452 = vunpack.c.2.s8 %v1443
        %v1453 = vunpack.c.3.s8 %v1443
        %v1454 = vunpack.c.0.s8 %v1444
        %v1455 = vunpack.c.1.s8 %v1444
        %v1456 = vunpack.c.2.s8 %v1444
        %v1457 = vunpack.c.3.s8 %v1444
        %v1458 = vunpack.c.0.s8 %v1445
        %v1459 = vunpack.c.1.s8 %v1445
        %v1460 = vunpack.c.2.s8 %v1445
        %v1461 = vunpack.c.3.s8 %v1445
        %v1462 = vpack.c.b16 %v1446, %v1446
        %v1463 = vpack.c.b8 %v1462, %v1462
        %v1464 = vpack.c.b16 %v1447, %v1447
        %v1465 = vpack.c.b8 %v1464, %v1464
        %v1466 = vpack.c.b16 %v1448, %v1448
        %v1467 = vpack.c.b8 %v1466, %v1466
        %v1468 = vpack.c.b16 %v1449, %v1449
        %v1469 = vpack.c.b8 %v1468, %v1468
        %v1470 = vpack.c.b16 %v1450, %v1450
        %v1471 = vpack.c.b8 %v1470, %v1470
        %v1472 = vpack.c.b16 %v1451, %v1451
        %v1473 = vpack.c.b8 %v1472, %v1472
        %v1474 = vpack.c.b16 %v1452, %v1452
        %v1475 = vpack.c.b8 %v1474, %v1474
        %v1476 = vpack.c.b16 %v1453, %v1453
        %v1477 = vpack.c.b8 %v1476, %v1476
        %v1478 = vpack.c.b16 %v1454, %v1454
        %v1479 = vpack.c.b8 %v1478, %v1478
        %v1480 = vpack.c.b16 %v1455, %v1455
        %v1481 = vpack.c.b8 %v1480, %v1480
        %v1482 = vpack.c.b16 %v1456, %v1456
        %v1483 = vpack.c.b8 %v1482, %v1482
        %v1484 = vpack.c.b16 %v1457, %v1457
        %v1485 = vpack.c.b8 %v1484, %v1484
        %v1486 = vpack.c.b16 %v1458, %v1458
        %v1487 = vpack.c.b8 %v1486, %v1486
        %v1488 = vpack.c.b16 %v1459, %v1459
        %v1489 = vpack.c.b8 %v1488, %v1488
        %v1490 = vpack.c.b16 %v1460, %v1460
        %v1491 = vpack.c.b8 %v1490, %v1490
        %v1492 = vpack.c.b16 %v1461, %v1461
        %v1493 = vpack.c.b8 %v1492, %v1492
        %vm1494 = vnez %v1463
        %vm1495 = vnez %v1465
        %vm1496 = vnez %v1467
        %vm1497 = vnez %v1469
        %vm1498 = vnez %v1471
        %vm1499 = vnez %v1473
        %vm1500 = vnez %v1475
        %vm1501 = vnez %v1477
        %vm1502 = vnez %v1479
        %vm1503 = vnez %v1481
        %vm1504 = vnez %v1483
        %vm1505 = vnez %v1485
        %vm1506 = vnez %v1487
        %vm1507 = vnez %v1489
        %vm1508 = vnez %v1491
        %vm1509 = vnez %v1493
        %v1510 = vsel %vm1494, 16843009, 0
        %v1511 = vsel %vm1495, 16843009, 0
        %v1512 = vsel %vm1496, 16843009, 0
        %v1513 = vsel %vm1497, 16843009, 0
        %v1514 = vsel %vm1498, 16843009, 0
        %v1515 = vsel %vm1499, 16843009, 0
        %v1516 = vsel %vm1500, 16843009, 0
        %v1517 = vsel %vm1501, 16843009, 0
        %v1518 = vsel %vm1502, 16843009, 0
        %v1519 = vsel %vm1503, 16843009, 0
        %v1520 = vsel %vm1504, 16843009, 0
        %v1521 = vsel %vm1505, 16843009, 0
        %v1522 = vsel %vm1506, 16843009, 0
        %v1523 = vsel %vm1507, 16843009, 0
        %v1524 = vsel %vm1508, 16843009, 0
        %v1525 = vsel %vm1509, 16843009, 0
        %v1526 = vunpack.c.0.s8 %v1510
        %v1527 = vunpack.c.0.s8 %v1511
        %v1528 = vunpack.c.0.s8 %v1512
        %v1529 = vunpack.c.0.s8 %v1513
        %v1530 = vunpack.c.0.s8 %v1514
        %v1531 = vunpack.c.0.s8 %v1515
        %v1532 = vunpack.c.0.s8 %v1516
        %v1533 = vunpack.c.0.s8 %v1517
        %v1534 = vunpack.c.0.s8 %v1518
        %v1535 = vunpack.c.0.s8 %v1519
        %v1536 = vunpack.c.0.s8 %v1520
        %v1537 = vunpack.c.0.s8 %v1521
        %v1538 = vunpack.c.0.s8 %v1522
        %v1539 = vunpack.c.0.s8 %v1523
        %v1540 = vunpack.c.0.s8 %v1524
        %v1541 = vunpack.c.0.s8 %v1525
        %vm1542 = vcmp.ne.s32.totalorder %v1526, 0
        %vm1543 = vcmp.ne.s32.totalorder %v1527, 0
        %vm1544 = vcmp.ne.s32.totalorder %v1528, 0
        %vm1545 = vcmp.ne.s32.totalorder %v1529, 0
        %vm1546 = vcmp.ne.s32.totalorder %v1530, 0
        %vm1547 = vcmp.ne.s32.totalorder %v1531, 0
        %vm1548 = vcmp.ne.s32.totalorder %v1532, 0
        %vm1549 = vcmp.ne.s32.totalorder %v1533, 0
        %vm1550 = vcmp.ne.s32.totalorder %v1534, 0
        %vm1551 = vcmp.ne.s32.totalorder %v1535, 0
        %vm1552 = vcmp.ne.s32.totalorder %v1536, 0
        %vm1553 = vcmp.ne.s32.totalorder %v1537, 0
        %vm1554 = vcmp.ne.s32.totalorder %v1538, 0
        %vm1555 = vcmp.ne.s32.totalorder %v1539, 0
        %vm1556 = vcmp.ne.s32.totalorder %v1540, 0
        %vm1557 = vcmp.ne.s32.totalorder %v1541, 0
        %v1558 = vsel %vm1542, %v1380, -1e+30
        %v1559 = vsel %vm1543, %v1383, -1e+30
        %v1560 = vsel %vm1544, %v1388, -1e+30
        %v1561 = vsel %vm1545, %v1391, -1e+30
        %v1562 = vsel %vm1546, %v1396, -1e+30
        %v1563 = vsel %vm1547, %v1399, -1e+30
        %v1564 = vsel %vm1548, %v1404, -1e+30
        %v1565 = vsel %vm1549, %v1407, -1e+30
        %v1566 = vsel %vm1550, %v1412, -1e+30
        %v1567 = vsel %vm1551, %v1415, -1e+30
        %v1568 = vsel %vm1552, %v1420, -1e+30
        %v1569 = vsel %vm1553, %v1423, -1e+30
        %v1570 = vsel %vm1554, %v1428, -1e+30
        %v1571 = vsel %vm1555, %v1431, -1e+30
        %v1572 = vsel %vm1556, %v1436, -1e+30
        %v1573 = vsel %vm1557, %v1439, -1e+30
        %1574 = vmax.xlane.f32.xlu0 %v1558
        %v1575 = vpop.xlane.xlu0 %1574
        %1576 = vmax.xlane.f32.xlu0 %v1559
        %v1577 = vpop.xlane.xlu0 %1576
        %1578 = vmax.xlane.f32.xlu0 %v1560
        %v1579 = vpop.xlane.xlu0 %1578
        %1580 = vmax.xlane.f32.xlu0 %v1561
        %v1581 = vpop.xlane.xlu0 %1580
        %1582 = vmax.xlane.f32.xlu0 %v1562
        %v1583 = vpop.xlane.xlu0 %1582
        %1584 = vmax.xlane.f32.xlu0 %v1563
        %v1585 = vpop.xlane.xlu0 %1584
        %1586 = vmax.xlane.f32.xlu0 %v1564
        %v1587 = vpop.xlane.xlu0 %1586
        %1588 = vmax.xlane.f32.xlu0 %v1565
        %v1589 = vpop.xlane.xlu0 %1588
        %1590 = vmax.xlane.f32.xlu0 %v1566
        %v1591 = vpop.xlane.xlu0 %1590
        %1592 = vmax.xlane.f32.xlu0 %v1567
        %v1593 = vpop.xlane.xlu0 %1592
        %1594 = vmax.xlane.f32.xlu0 %v1568
        %v1595 = vpop.xlane.xlu0 %1594
        %1596 = vmax.xlane.f32.xlu0 %v1569
        %v1597 = vpop.xlane.xlu0 %1596
        %1598 = vmax.xlane.f32.xlu0 %v1570
        %v1599 = vpop.xlane.xlu0 %1598
        %1600 = vmax.xlane.f32.xlu0 %v1571
        %v1601 = vpop.xlane.xlu0 %1600
        %1602 = vmax.xlane.f32.xlu0 %v1572
        %v1603 = vpop.xlane.xlu0 %1602
        %1604 = vmax.xlane.f32.xlu0 %v1573
        %v1605 = vpop.xlane.xlu0 %1604
        %v1606 = vsub.f32 %v1558, %v1575
        %v1607 = vsub.f32 %v1559, %v1577
        %v1608 = vsub.f32 %v1560, %v1579
        %v1609 = vsub.f32 %v1561, %v1581
        %v1610 = vsub.f32 %v1562, %v1583
        %v1611 = vsub.f32 %v1563, %v1585
        %v1612 = vsub.f32 %v1564, %v1587
        %v1613 = vsub.f32 %v1565, %v1589
        %v1614 = vsub.f32 %v1566, %v1591
        %v1615 = vsub.f32 %v1567, %v1593
        %v1616 = vsub.f32 %v1568, %v1595
        %v1617 = vsub.f32 %v1569, %v1597
        %v1618 = vsub.f32 %v1570, %v1599
        %v1619 = vsub.f32 %v1571, %v1601
        %v1620 = vsub.f32 %v1572, %v1603
        %v1621 = vsub.f32 %v1573, %v1605
        %v1622 = vmul.f32 %v1606, 1.442695
        %v1623 = vpow.pop %v1622
        %v1624 = vmul.f32 %v1607, 1.442695
        %v1625 = vpow.pop %v1624
        %v1626 = vmul.f32 %v1608, 1.442695
        %v1627 = vpow.pop %v1626
        %v1628 = vmul.f32 %v1609, 1.442695
        %v1629 = vpow.pop %v1628
        %v1630 = vmul.f32 %v1610, 1.442695
        %v1631 = vpow.pop %v1630
        %v1632 = vmul.f32 %v1611, 1.442695
        %v1633 = vpow.pop %v1632
        %v1634 = vmul.f32 %v1612, 1.442695
        %v1635 = vpow.pop %v1634
        %v1636 = vmul.f32 %v1613, 1.442695
        %v1637 = vpow.pop %v1636
        %v1638 = vmul.f32 %v1614, 1.442695
        %v1639 = vpow.pop %v1638
        %v1640 = vmul.f32 %v1615, 1.442695
        %v1641 = vpow.pop %v1640
        %v1642 = vmul.f32 %v1616, 1.442695
        %v1643 = vpow.pop %v1642
        %v1644 = vmul.f32 %v1617, 1.442695
        %v1645 = vpow.pop %v1644
        %v1646 = vmul.f32 %v1618, 1.442695
        %v1647 = vpow.pop %v1646
        %v1648 = vmul.f32 %v1619, 1.442695
        %v1649 = vpow.pop %v1648
        %v1650 = vmul.f32 %v1620, 1.442695
        %v1651 = vpow.pop %v1650
        %v1652 = vmul.f32 %v1621, 1.442695
        %v1653 = vpow.pop %v1652
        %1654 = vadd.xlane.f32.xlu0 %v1623
        %v1655 = vpop.xlane.xlu0 %1654
        %1656 = vadd.xlane.f32.xlu0 %v1625
        %v1657 = vpop.xlane.xlu0 %1656
        %1658 = vadd.xlane.f32.xlu0 %v1627
        %v1659 = vpop.xlane.xlu0 %1658
        %1660 = vadd.xlane.f32.xlu0 %v1629
        %v1661 = vpop.xlane.xlu0 %1660
        %1662 = vadd.xlane.f32.xlu0 %v1631
        %v1663 = vpop.xlane.xlu0 %1662
        %1664 = vadd.xlane.f32.xlu0 %v1633
        %v1665 = vpop.xlane.xlu0 %1664
        %1666 = vadd.xlane.f32.xlu0 %v1635
        %v1667 = vpop.xlane.xlu0 %1666
        %1668 = vadd.xlane.f32.xlu0 %v1637
        %v1669 = vpop.xlane.xlu0 %1668
        %1670 = vadd.xlane.f32.xlu0 %v1639
        %v1671 = vpop.xlane.xlu0 %1670
        %1672 = vadd.xlane.f32.xlu0 %v1641
        %v1673 = vpop.xlane.xlu0 %1672
        %1674 = vadd.xlane.f32.xlu0 %v1643
        %v1675 = vpop.xlane.xlu0 %1674
        %1676 = vadd.xlane.f32.xlu0 %v1645
        %v1677 = vpop.xlane.xlu0 %1676
        %1678 = vadd.xlane.f32.xlu0 %v1647
        %v1679 = vpop.xlane.xlu0 %1678
        %1680 = vadd.xlane.f32.xlu0 %v1649
        %v1681 = vpop.xlane.xlu0 %1680
        %1682 = vadd.xlane.f32.xlu0 %v1651
        %v1683 = vpop.xlane.xlu0 %1682
        %1684 = vadd.xlane.f32.xlu0 %v1653
        %v1685 = vpop.xlane.xlu0 %1684
        %v1686 = vpack.c.bf16 %v1625, %v1623
        %v1687 = vpack.c.bf16 %v1629, %v1627
        %v1688 = vpack.c.bf16 %v1633, %v1631
        %v1689 = vpack.c.bf16 %v1637, %v1635
        %v1690 = vpack.c.bf16 %v1641, %v1639
        %v1691 = vpack.c.bf16 %v1645, %v1643
        %v1692 = vpack.c.bf16 %v1649, %v1647
        %v1693 = vpack.c.bf16 %v1653, %v1651
        %1694 = vmatprep.subr.bf16.mxu0 0
        %1695 = vmatpush1.bf16.msra.mxu0 %v1280
        %1696 = vmatprep.subr.bf16.mxu0 0
        %1697 = vmatpush1.bf16.msra.mxu0 %v1281
        %1698 = vmatprep.subr.bf16.mxu0 0
        %1699 = vmatpush1.bf16.msra.mxu0 %v1282
        %1700 = vmatprep.subr.bf16.mxu0 0
        %1701 = vmatpush1.bf16.msra.mxu0 %v1283
        %1702 = vmatprep.subr.bf16.mxu0 0
        %1703 = vmatpush1.bf16.msra.mxu0 %v1284
        %1704 = vmatprep.subr.bf16.mxu0 0
        %1705 = vmatpush1.bf16.msra.mxu0 %v1285
        %1706 = vmatprep.subr.bf16.mxu0 0
        %1707 = vmatpush1.bf16.msra.mxu0 %v1286
        %1708 = vmatprep.subr.bf16.mxu0 0
        %1709 = vmatpush1.bf16.msra.mxu0 %v1287
        %1710 = vmatprep.subr.bf16.mxu0 0
        %1711 = vmatpush1.bf16.msra.mxu0 0
        %1712 = vmatprep.subr.bf16.mxu0 0
        %1713 = vmatpush1.bf16.msra.mxu0 0
        %1714 = vmatprep.subr.bf16.mxu0 0
        %1715 = vmatpush1.bf16.msra.mxu0 0
        %1716 = vmatprep.subr.bf16.mxu0 0
        %1717 = vmatpush1.bf16.msra.mxu0 0
        %1718 = vmatprep.subr.bf16.mxu0 0
        %1719 = vmatpush1.bf16.msra.mxu0 0
        %1720 = vmatprep.subr.bf16.mxu0 0
        %1721 = vmatpush1.bf16.msra.mxu0 0
        %1722 = vmatprep.subr.bf16.mxu0 0
        %1723 = vmatpush1.bf16.msra.mxu0 0
        %1724 = vmatprep.subr.bf16.mxu0 0
        %1725 = vmatpush1.bf16.msra.mxu0 0
        %1726 = vmatprep.mubr.bf16.mxu0 0
        %1727 = vmatmul.mubr.bf16.gmra.mrb[0].mxu0 %v1686
        %v1728 = vpop.f32.mrb[0].mxu0
        %v1729 = vadd.f32 0.0, %v1728
        %v1730 = vpop.f32.mrb[0].mxu0
        %v1731 = vpop.f32.mrb[0].mxu0
        %v1732 = vadd.f32 0.0, %v1731
        %v1733 = vpop.f32.mrb[0].mxu0
        %1734 = vmatprep.mubr.bf16.mxu0 0
        %1735 = vmatmul.mubr.bf16.gmra.mrb[0].mxu0 %v1687
        %v1736 = vpop.f32.mrb[0].mxu0
        %v1737 = vadd.f32 0.0, %v1736
        %v1738 = vpop.f32.mrb[0].mxu0
        %v1739 = vpop.f32.mrb[0].mxu0
        %v1740 = vadd.f32 0.0, %v1739
        %v1741 = vpop.f32.mrb[0].mxu0
        %1742 = vmatprep.mubr.bf16.mxu0 0
        %1743 = vmatmul.mubr.bf16.gmra.mrb[0].mxu0 %v1688
        %v1744 = vpop.f32.mrb[0].mxu0
        %v1745 = vadd.f32 0.0, %v1744
        %v1746 = vpop.f32.mrb[0].mxu0
        %v1747 = vpop.f32.mrb[0].mxu0
        %v1748 = vadd.f32 0.0, %v1747
        %v1749 = vpop.f32.mrb[0].mxu0
        %1750 = vmatprep.mubr.bf16.mxu0 0
        %1751 = vmatmul.mubr.bf16.gmra.mrb[0].mxu0 %v1689
        %v1752 = vpop.f32.mrb[0].mxu0
        %v1753 = vadd.f32 0.0, %v1752
        %v1754 = vpop.f32.mrb[0].mxu0
        %v1755 = vpop.f32.mrb[0].mxu0
        %v1756 = vadd.f32 0.0, %v1755
        %v1757 = vpop.f32.mrb[0].mxu0
        %1758 = vmatprep.mubr.bf16.mxu0 0
        %1759 = vmatmul.mubr.bf16.gmra.mrb[0].mxu0 %v1690
        %v1760 = vpop.f32.mrb[0].mxu0
        %v1761 = vadd.f32 0.0, %v1760
        %v1762 = vpop.f32.mrb[0].mxu0
        %v1763 = vpop.f32.mrb[0].mxu0
        %v1764 = vadd.f32 0.0, %v1763
        %v1765 = vpop.f32.mrb[0].mxu0
        %1766 = vmatprep.mubr.bf16.mxu0 0
        %1767 = vmatmul.mubr.bf16.gmra.mrb[0].mxu0 %v1691
        %v1768 = vpop.f32.mrb[0].mxu0
        %v1769 = vadd.f32 0.0, %v1768
        %v1770 = vpop.f32.mrb[0].mxu0
        %v1771 = vpop.f32.mrb[0].mxu0
        %v1772 = vadd.f32 0.0, %v1771
        %v1773 = vpop.f32.mrb[0].mxu0
        %1774 = vmatprep.mubr.bf16.mxu0 0
        %1775 = vmatmul.mubr.bf16.gmra.mrb[0].mxu0 %v1692
        %v1776 = vpop.f32.mrb[0].mxu0
        %v1777 = vadd.f32 0.0, %v1776
        %v1778 = vpop.f32.mrb[0].mxu0
        %v1779 = vpop.f32.mrb[0].mxu0
        %v1780 = vadd.f32 0.0, %v1779
        %v1781 = vpop.f32.mrb[0].mxu0
        %1782 = vmatprep.mubr.bf16.mxu0 0
        %1783 = vmatmul.mubr.bf16.gmra.mrb[0].mxu0 %v1693
        %v1784 = vpop.f32.mrb[0].mxu0
        %v1785 = vadd.f32 0.0, %v1784
        %v1786 = vpop.f32.mrb[0].mxu0
        %v1787 = vpop.f32.mrb[0].mxu0
        %v1788 = vadd.f32 0.0, %v1787
        %v1789 = vpop.f32.mrb[0].mxu0
        %1790 = vdwg.mxu0
        %v1791 = vrcp.pop %v1655
        %v1792 = vrcp.pop %v1657
        %v1793 = vrcp.pop %v1659
        %v1794 = vrcp.pop %v1661
        %v1795 = vrcp.pop %v1663
        %v1796 = vrcp.pop %v1665
        %v1797 = vrcp.pop %v1667
        %v1798 = vrcp.pop %v1669
        %v1799 = vrcp.pop %v1671
        %v1800 = vrcp.pop %v1673
        %v1801 = vrcp.pop %v1675
        %v1802 = vrcp.pop %v1677
        %v1803 = vrcp.pop %v1679
        %v1804 = vrcp.pop %v1681
        %v1805 = vrcp.pop %v1683
        %v1806 = vrcp.pop %v1685
        %v1807 = vmul.f32 %v1729, %v1791
        %v1808 = vmul.f32 %v1732, %v1792
        %v1809 = vmul.f32 %v1737, %v1793
        %v1810 = vmul.f32 %v1740, %v1794
        %v1811 = vmul.f32 %v1745, %v1795
        %v1812 = vmul.f32 %v1748, %v1796
        %v1813 = vmul.f32 %v1753, %v1797
        %v1814 = vmul.f32 %v1756, %v1798
        %v1815 = vmul.f32 %v1761, %v1799
        %v1816 = vmul.f32 %v1764, %v1800
        %v1817 = vmul.f32 %v1769, %v1801
        %v1818 = vmul.f32 %v1772, %v1802
        %v1819 = vmul.f32 %v1777, %v1803
        %v1820 = vmul.f32 %v1780, %v1804
        %v1821 = vmul.f32 %v1785, %v1805
        %v1822 = vmul.f32 %v1788, %v1806
        %v1823 = vpack.c.bf16 %v1808, %v1807
        %v1824 = vpack.c.bf16 %v1810, %v1809
        %v1825 = vpack.c.bf16 %v1812, %v1811
        %v1826 = vpack.c.bf16 %v1814, %v1813
        %v1827 = vpack.c.bf16 %v1816, %v1815
        %v1828 = vpack.c.bf16 %v1818, %v1817
        %v1829 = vpack.c.bf16 %v1820, %v1819
        %v1830 = vpack.c.bf16 %v1822, %v1821
        %1839 = vrot.lane.b32.xlu0 %v1264, 96
        %v1840 = vpop.permute.xlu0 %1839
        %1841 = vrot.lane.b32.xlu0 %v1265, 96
        %v1842 = vpop.permute.xlu0 %1841
        %1843 = vrot.lane.b32.xlu0 %v1266, 96
        %v1844 = vpop.permute.xlu0 %1843
        %1845 = vrot.lane.b32.xlu0 %v1267, 96
        %v1846 = vpop.permute.xlu0 %1845
        %1847 = vrot.lane.b32.xlu0 %v1268, 96
        %v1848 = vpop.permute.xlu0 %1847
        %1849 = vrot.lane.b32.xlu0 %v1269, 96
        %v1850 = vpop.permute.xlu0 %1849
        %1851 = vrot.lane.b32.xlu0 %v1270, 96
        %v1852 = vpop.permute.xlu0 %1851
        %1853 = vrot.lane.b32.xlu0 %v1271, 96
        %v1854 = vpop.permute.xlu0 %1853
        %1863 = vrot.lane.b32.xlu0 %v1272, 96
        %v1864 = vpop.permute.xlu0 %1863
        %1865 = vrot.lane.b32.xlu0 %v1273, 96
        %v1866 = vpop.permute.xlu0 %1865
        %1867 = vrot.lane.b32.xlu0 %v1274, 96
        %v1868 = vpop.permute.xlu0 %1867
        %1869 = vrot.lane.b32.xlu0 %v1275, 96
        %v1870 = vpop.permute.xlu0 %1869
        %1871 = vrot.lane.b32.xlu0 %v1276, 96
        %v1872 = vpop.permute.xlu0 %1871
        %1873 = vrot.lane.b32.xlu0 %v1277, 96
        %v1874 = vpop.permute.xlu0 %1873
        %1875 = vrot.lane.b32.xlu0 %v1278, 96
        %v1876 = vpop.permute.xlu0 %1875
        %1877 = vrot.lane.b32.xlu0 %v1279, 96
        %v1878 = vpop.permute.xlu0 %1877
        %v1880 = vsel %vm1296, %v1840, 0
        %v1883 = vsel %vm1296, %v1842, 0
        %v1886 = vsel %vm1296, %v1844, 0
        %v1889 = vsel %vm1296, %v1846, 0
        %v1892 = vsel %vm1296, %v1848, 0
        %v1895 = vsel %vm1296, %v1850, 0
        %v1898 = vsel %vm1296, %v1852, 0
        %v1901 = vsel %vm1296, %v1854, 0
        %v1904 = vsel %vm1296, %v1864, 0
        %v1907 = vsel %vm1296, %v1866, 0
        %v1910 = vsel %vm1296, %v1868, 0
        %v1913 = vsel %vm1296, %v1870, 0
        %v1916 = vsel %vm1296, %v1872, 0
        %v1919 = vsel %vm1296, %v1874, 0
        %v1922 = vsel %vm1296, %v1876, 0
        %v1925 = vsel %vm1296, %v1878, 0
        %1927 = vmatprep.subr.bf16.mxu0 0
        %1928 = vmatpush1.bf16.xpose.msra.mxu0 %v1904
        %1929 = vmatprep.subr.bf16.mxu0 0
        %1930 = vmatpush1.bf16.xpose.msra.mxu0 %v1907
        %1931 = vmatprep.subr.bf16.mxu0 0
        %1932 = vmatpush1.bf16.xpose.msra.mxu0 %v1910
        %1933 = vmatprep.subr.bf16.mxu0 0
        %1934 = vmatpush1.bf16.xpose.msra.mxu0 %v1913
        %1935 = vmatprep.subr.bf16.mxu0 0
        %1936 = vmatpush1.bf16.xpose.msra.mxu0 %v1916
        %1937 = vmatprep.subr.bf16.mxu0 0
        %1938 = vmatpush1.bf16.xpose.msra.mxu0 %v1919
        %1939 = vmatprep.subr.bf16.mxu0 0
        %1940 = vmatpush1.bf16.xpose.msra.mxu0 %v1922
        %1941 = vmatprep.subr.bf16.mxu0 0
        %1942 = vmatpush1.bf16.xpose.msra.mxu0 %v1925
        %1943 = vmatprep.subr.bf16.mxu0 0
        %1944 = vmatpush1.bf16.xpose.msra.mxu0 0
        %1945 = vmatprep.subr.bf16.mxu0 0
        %1946 = vmatpush1.bf16.xpose.msra.mxu0 0
        %1947 = vmatprep.subr.bf16.mxu0 0
        %1948 = vmatpush1.bf16.xpose.msra.mxu0 0
        %1949 = vmatprep.subr.bf16.mxu0 0
        %1950 = vmatpush1.bf16.xpose.msra.mxu0 0
        %1951 = vmatprep.subr.bf16.mxu0 0
        %1952 = vmatpush1.bf16.xpose.msra.mxu0 0
        %1953 = vmatprep.subr.bf16.mxu0 0
        %1954 = vmatpush1.bf16.xpose.msra.mxu0 0
        %1955 = vmatprep.subr.bf16.mxu0 0
        %1956 = vmatpush1.bf16.xpose.msra.mxu0 0
        %1957 = vmatprep.subr.bf16.mxu0 0
        %1958 = vmatpush1.bf16.xpose.msra.mxu0 0
        %1959 = vmatprep.mubr.bf16.mxu0 0
        %1960 = vmatmul.mubr.bf16.gmra.mrb[0].mxu0 %v1880
        %v1961 = vpop.f32.mrb[0].mxu0
        %v1962 = vadd.f32 0.0, %v1961
        %v1963 = vpop.f32.mrb[0].mxu0
        %v1964 = vpop.f32.mrb[0].mxu0
        %v1965 = vadd.f32 0.0, %v1964
        %v1966 = vpop.f32.mrb[0].mxu0
        %1967 = vmatprep.mubr.bf16.mxu0 0
        %1968 = vmatmul.mubr.bf16.gmra.mrb[0].mxu0 %v1883
        %v1969 = vpop.f32.mrb[0].mxu0
        %v1970 = vadd.f32 0.0, %v1969
        %v1971 = vpop.f32.mrb[0].mxu0
        %v1972 = vpop.f32.mrb[0].mxu0
        %v1973 = vadd.f32 0.0, %v1972
        %v1974 = vpop.f32.mrb[0].mxu0
        %1975 = vmatprep.mubr.bf16.mxu0 0
        %1976 = vmatmul.mubr.bf16.gmra.mrb[0].mxu0 %v1886
        %v1977 = vpop.f32.mrb[0].mxu0
        %v1978 = vadd.f32 0.0, %v1977
        %v1979 = vpop.f32.mrb[0].mxu0
        %v1980 = vpop.f32.mrb[0].mxu0
        %v1981 = vadd.f32 0.0, %v1980
        %v1982 = vpop.f32.mrb[0].mxu0
        %1983 = vmatprep.mubr.bf16.mxu0 0
        %1984 = vmatmul.mubr.bf16.gmra.mrb[0].mxu0 %v1889
        %v1985 = vpop.f32.mrb[0].mxu0
        %v1986 = vadd.f32 0.0, %v1985
        %v1987 = vpop.f32.mrb[0].mxu0
        %v1988 = vpop.f32.mrb[0].mxu0
        %v1989 = vadd.f32 0.0, %v1988
        %v1990 = vpop.f32.mrb[0].mxu0
        %1991 = vmatprep.mubr.bf16.mxu0 0
        %1992 = vmatmul.mubr.bf16.gmra.mrb[0].mxu0 %v1892
        %v1993 = vpop.f32.mrb[0].mxu0
        %v1994 = vadd.f32 0.0, %v1993
        %v1995 = vpop.f32.mrb[0].mxu0
        %v1996 = vpop.f32.mrb[0].mxu0
        %v1997 = vadd.f32 0.0, %v1996
        %v1998 = vpop.f32.mrb[0].mxu0
        %1999 = vmatprep.mubr.bf16.mxu0 0
        %2000 = vmatmul.mubr.bf16.gmra.mrb[0].mxu0 %v1895
        %v2001 = vpop.f32.mrb[0].mxu0
        %v2002 = vadd.f32 0.0, %v2001
        %v2003 = vpop.f32.mrb[0].mxu0
        %v2004 = vpop.f32.mrb[0].mxu0
        %v2005 = vadd.f32 0.0, %v2004
        %v2006 = vpop.f32.mrb[0].mxu0
        %2007 = vmatprep.mubr.bf16.mxu0 0
        %2008 = vmatmul.mubr.bf16.gmra.mrb[0].mxu0 %v1898
        %v2009 = vpop.f32.mrb[0].mxu0
        %v2010 = vadd.f32 0.0, %v2009
        %v2011 = vpop.f32.mrb[0].mxu0
        %v2012 = vpop.f32.mrb[0].mxu0
        %v2013 = vadd.f32 0.0, %v2012
        %v2014 = vpop.f32.mrb[0].mxu0
        %2015 = vmatprep.mubr.bf16.mxu0 0
        %2016 = vmatmul.mubr.bf16.gmra.mrb[0].mxu0 %v1901
        %v2017 = vpop.f32.mrb[0].mxu0
        %v2018 = vadd.f32 0.0, %v2017
        %v2019 = vpop.f32.mrb[0].mxu0
        %v2020 = vpop.f32.mrb[0].mxu0
        %v2021 = vadd.f32 0.0, %v2020
        %v2022 = vpop.f32.mrb[0].mxu0
        %2023 = vdwg.mxu0
        %v2024 = vsel %vm1542, %v1962, -1e+30
        %v2025 = vsel %vm1543, %v1965, -1e+30
        %v2026 = vsel %vm1544, %v1970, -1e+30
        %v2027 = vsel %vm1545, %v1973, -1e+30
        %v2028 = vsel %vm1546, %v1978, -1e+30
        %v2029 = vsel %vm1547, %v1981, -1e+30
        %v2030 = vsel %vm1548, %v1986, -1e+30
        %v2031 = vsel %vm1549, %v1989, -1e+30
        %v2032 = vsel %vm1550, %v1994, -1e+30
        %v2033 = vsel %vm1551, %v1997, -1e+30
        %v2034 = vsel %vm1552, %v2002, -1e+30
        %v2035 = vsel %vm1553, %v2005, -1e+30
        %v2036 = vsel %vm1554, %v2010, -1e+30
        %v2037 = vsel %vm1555, %v2013, -1e+30
        %v2038 = vsel %vm1556, %v2018, -1e+30
        %v2039 = vsel %vm1557, %v2021, -1e+30
        %2040 = vmax.xlane.f32.xlu0 %v2024
        %v2041 = vpop.xlane.xlu0 %2040
        %2042 = vmax.xlane.f32.xlu0 %v2025
        %v2043 = vpop.xlane.xlu0 %2042
        %2044 = vmax.xlane.f32.xlu0 %v2026
        %v2045 = vpop.xlane.xlu0 %2044
        %2046 = vmax.xlane.f32.xlu0 %v2027
        %v2047 = vpop.xlane.xlu0 %2046
        %2048 = vmax.xlane.f32.xlu0 %v2028
        %v2049 = vpop.xlane.xlu0 %2048
        %2050 = vmax.xlane.f32.xlu0 %v2029
        %v2051 = vpop.xlane.xlu0 %2050
        %2052 = vmax.xlane.f32.xlu0 %v2030
        %v2053 = vpop.xlane.xlu0 %2052
        %2054 = vmax.xlane.f32.xlu0 %v2031
        %v2055 = vpop.xlane.xlu0 %2054
        %2056 = vmax.xlane.f32.xlu0 %v2032
        %v2057 = vpop.xlane.xlu0 %2056
        %2058 = vmax.xlane.f32.xlu0 %v2033
        %v2059 = vpop.xlane.xlu0 %2058
        %2060 = vmax.xlane.f32.xlu0 %v2034
        %v2061 = vpop.xlane.xlu0 %2060
        %2062 = vmax.xlane.f32.xlu0 %v2035
        %v2063 = vpop.xlane.xlu0 %2062
        %2064 = vmax.xlane.f32.xlu0 %v2036
        %v2065 = vpop.xlane.xlu0 %2064
        %2066 = vmax.xlane.f32.xlu0 %v2037
        %v2067 = vpop.xlane.xlu0 %2066
        %2068 = vmax.xlane.f32.xlu0 %v2038
        %v2069 = vpop.xlane.xlu0 %2068
        %2070 = vmax.xlane.f32.xlu0 %v2039
        %v2071 = vpop.xlane.xlu0 %2070
        %v2072 = vsub.f32 %v2024, %v2041
        %v2073 = vsub.f32 %v2025, %v2043
        %v2074 = vsub.f32 %v2026, %v2045
        %v2075 = vsub.f32 %v2027, %v2047
        %v2076 = vsub.f32 %v2028, %v2049
        %v2077 = vsub.f32 %v2029, %v2051
        %v2078 = vsub.f32 %v2030, %v2053
        %v2079 = vsub.f32 %v2031, %v2055
        %v2080 = vsub.f32 %v2032, %v2057
        %v2081 = vsub.f32 %v2033, %v2059
        %v2082 = vsub.f32 %v2034, %v2061
        %v2083 = vsub.f32 %v2035, %v2063
        %v2084 = vsub.f32 %v2036, %v2065
        %v2085 = vsub.f32 %v2037, %v2067
        %v2086 = vsub.f32 %v2038, %v2069
        %v2087 = vsub.f32 %v2039, %v2071
        %v2088 = vmul.f32 %v2072, 1.442695
        %v2089 = vpow.pop %v2088
        %v2090 = vmul.f32 %v2073, 1.442695
        %v2091 = vpow.pop %v2090
        %v2092 = vmul.f32 %v2074, 1.442695
        %v2093 = vpow.pop %v2092
        %v2094 = vmul.f32 %v2075, 1.442695
        %v2095 = vpow.pop %v2094
        %v2096 = vmul.f32 %v2076, 1.442695
        %v2097 = vpow.pop %v2096
        %v2098 = vmul.f32 %v2077, 1.442695
        %v2099 = vpow.pop %v2098
        %v2100 = vmul.f32 %v2078, 1.442695
        %v2101 = vpow.pop %v2100
        %v2102 = vmul.f32 %v2079, 1.442695
        %v2103 = vpow.pop %v2102
        %v2104 = vmul.f32 %v2080, 1.442695
        %v2105 = vpow.pop %v2104
        %v2106 = vmul.f32 %v2081, 1.442695
        %v2107 = vpow.pop %v2106
        %v2108 = vmul.f32 %v2082, 1.442695
        %v2109 = vpow.pop %v2108
        %v2110 = vmul.f32 %v2083, 1.442695
        %v2111 = vpow.pop %v2110
        %v2112 = vmul.f32 %v2084, 1.442695
        %v2113 = vpow.pop %v2112
        %v2114 = vmul.f32 %v2085, 1.442695
        %v2115 = vpow.pop %v2114
        %v2116 = vmul.f32 %v2086, 1.442695
        %v2117 = vpow.pop %v2116
        %v2118 = vmul.f32 %v2087, 1.442695
        %v2119 = vpow.pop %v2118
        %2120 = vadd.xlane.f32.xlu0 %v2089
        %v2121 = vpop.xlane.xlu0 %2120
        %2122 = vadd.xlane.f32.xlu0 %v2091
        %v2123 = vpop.xlane.xlu0 %2122
        %2124 = vadd.xlane.f32.xlu0 %v2093
        %v2125 = vpop.xlane.xlu0 %2124
        %2126 = vadd.xlane.f32.xlu0 %v2095
        %v2127 = vpop.xlane.xlu0 %2126
        %2128 = vadd.xlane.f32.xlu0 %v2097
        %v2129 = vpop.xlane.xlu0 %2128
        %2130 = vadd.xlane.f32.xlu0 %v2099
        %v2131 = vpop.xlane.xlu0 %2130
        %2132 = vadd.xlane.f32.xlu0 %v2101
        %v2133 = vpop.xlane.xlu0 %2132
        %2134 = vadd.xlane.f32.xlu0 %v2103
        %v2135 = vpop.xlane.xlu0 %2134
        %2136 = vadd.xlane.f32.xlu0 %v2105
        %v2137 = vpop.xlane.xlu0 %2136
        %2138 = vadd.xlane.f32.xlu0 %v2107
        %v2139 = vpop.xlane.xlu0 %2138
        %2140 = vadd.xlane.f32.xlu0 %v2109
        %v2141 = vpop.xlane.xlu0 %2140
        %2142 = vadd.xlane.f32.xlu0 %v2111
        %v2143 = vpop.xlane.xlu0 %2142
        %2144 = vadd.xlane.f32.xlu0 %v2113
        %v2145 = vpop.xlane.xlu0 %2144
        %2146 = vadd.xlane.f32.xlu0 %v2115
        %v2147 = vpop.xlane.xlu0 %2146
        %2148 = vadd.xlane.f32.xlu0 %v2117
        %v2149 = vpop.xlane.xlu0 %2148
        %2150 = vadd.xlane.f32.xlu0 %v2119
        %v2151 = vpop.xlane.xlu0 %2150
        %v2152 = vpack.c.bf16 %v2091, %v2089
        %v2153 = vpack.c.bf16 %v2095, %v2093
        %v2154 = vpack.c.bf16 %v2099, %v2097
        %v2155 = vpack.c.bf16 %v2103, %v2101
        %v2156 = vpack.c.bf16 %v2107, %v2105
        %v2157 = vpack.c.bf16 %v2111, %v2109
        %v2158 = vpack.c.bf16 %v2115, %v2113
        %v2159 = vpack.c.bf16 %v2119, %v2117
        %2168 = vrot.lane.b32.xlu0 %v1280, 96
        %v2169 = vpop.permute.xlu0 %2168
        %2170 = vrot.lane.b32.xlu0 %v1281, 96
        %v2171 = vpop.permute.xlu0 %2170
        %2172 = vrot.lane.b32.xlu0 %v1282, 96
        %v2173 = vpop.permute.xlu0 %2172
        %2174 = vrot.lane.b32.xlu0 %v1283, 96
        %v2175 = vpop.permute.xlu0 %2174
        %2176 = vrot.lane.b32.xlu0 %v1284, 96
        %v2177 = vpop.permute.xlu0 %2176
        %2178 = vrot.lane.b32.xlu0 %v1285, 96
        %v2179 = vpop.permute.xlu0 %2178
        %2180 = vrot.lane.b32.xlu0 %v1286, 96
        %v2181 = vpop.permute.xlu0 %2180
        %2182 = vrot.lane.b32.xlu0 %v1287, 96
        %v2183 = vpop.permute.xlu0 %2182
        %2192 = vmatprep.subr.bf16.mxu0 0
        %2193 = vmatpush1.bf16.msra.mxu0 %v2169
        %2194 = vmatprep.subr.bf16.mxu0 0
        %2195 = vmatpush1.bf16.msra.mxu0 %v2171
        %2196 = vmatprep.subr.bf16.mxu0 0
        %2197 = vmatpush1.bf16.msra.mxu0 %v2173
        %2198 = vmatprep.subr.bf16.mxu0 0
        %2199 = vmatpush1.bf16.msra.mxu0 %v2175
        %2200 = vmatprep.subr.bf16.mxu0 0
        %2201 = vmatpush1.bf16.msra.mxu0 %v2177
        %2202 = vmatprep.subr.bf16.mxu0 0
        %2203 = vmatpush1.bf16.msra.mxu0 %v2179
        %2204 = vmatprep.subr.bf16.mxu0 0
        %2205 = vmatpush1.bf16.msra.mxu0 %v2181
        %2206 = vmatprep.subr.bf16.mxu0 0
        %2207 = vmatpush1.bf16.msra.mxu0 %v2183
        %2208 = vmatprep.subr.bf16.mxu0 0
        %2209 = vmatpush1.bf16.msra.mxu0 0
        %2210 = vmatprep.subr.bf16.mxu0 0
        %2211 = vmatpush1.bf16.msra.mxu0 0
        %2212 = vmatprep.subr.bf16.mxu0 0
        %2213 = vmatpush1.bf16.msra.mxu0 0
        %2214 = vmatprep.subr.bf16.mxu0 0
        %2215 = vmatpush1.bf16.msra.mxu0 0
        %2216 = vmatprep.subr.bf16.mxu0 0
        %2217 = vmatpush1.bf16.msra.mxu0 0
        %2218 = vmatprep.subr.bf16.mxu0 0
        %2219 = vmatpush1.bf16.msra.mxu0 0
        %2220 = vmatprep.subr.bf16.mxu0 0
        %2221 = vmatpush1.bf16.msra.mxu0 0
        %2222 = vmatprep.subr.bf16.mxu0 0
        %2223 = vmatpush1.bf16.msra.mxu0 0
        %2224 = vmatprep.mubr.bf16.mxu0 0
        %2225 = vmatmul.mubr.bf16.gmra.mrb[0].mxu0 %v2152
        %v2226 = vpop.f32.mrb[0].mxu0
        %v2227 = vadd.f32 0.0, %v2226
        %v2228 = vpop.f32.mrb[0].mxu0
        %v2229 = vpop.f32.mrb[0].mxu0
        %v2230 = vadd.f32 0.0, %v2229
        %v2231 = vpop.f32.mrb[0].mxu0
        %2232 = vmatprep.mubr.bf16.mxu0 0
        %2233 = vmatmul.mubr.bf16.gmra.mrb[0].mxu0 %v2153
        %v2234 = vpop.f32.mrb[0].mxu0
        %v2235 = vadd.f32 0.0, %v2234
        %v2236 = vpop.f32.mrb[0].mxu0
        %v2237 = vpop.f32.mrb[0].mxu0
        %v2238 = vadd.f32 0.0, %v2237
        %v2239 = vpop.f32.mrb[0].mxu0
        %2240 = vmatprep.mubr.bf16.mxu0 0
        %2241 = vmatmul.mubr.bf16.gmra.mrb[0].mxu0 %v2154
        %v2242 = vpop.f32.mrb[0].mxu0
        %v2243 = vadd.f32 0.0, %v2242
        %v2244 = vpop.f32.mrb[0].mxu0
        %v2245 = vpop.f32.mrb[0].mxu0
        %v2246 = vadd.f32 0.0, %v2245
        %v2247 = vpop.f32.mrb[0].mxu0
        %2248 = vmatprep.mubr.bf16.mxu0 0
        %2249 = vmatmul.mubr.bf16.gmra.mrb[0].mxu0 %v2155
        %v2250 = vpop.f32.mrb[0].mxu0
        %v2251 = vadd.f32 0.0, %v2250
        %v2252 = vpop.f32.mrb[0].mxu0
        %v2253 = vpop.f32.mrb[0].mxu0
        %v2254 = vadd.f32 0.0, %v2253
        %v2255 = vpop.f32.mrb[0].mxu0
        %2256 = vmatprep.mubr.bf16.mxu0 0
        %2257 = vmatmul.mubr.bf16.gmra.mrb[0].mxu0 %v2156
        %v2258 = vpop.f32.mrb[0].mxu0
        %v2259 = vadd.f32 0.0, %v2258
        %v2260 = vpop.f32.mrb[0].mxu0
        %v2261 = vpop.f32.mrb[0].mxu0
        %v2262 = vadd.f32 0.0, %v2261
        %v2263 = vpop.f32.mrb[0].mxu0
        %2264 = vmatprep.mubr.bf16.mxu0 0
        %2265 = vmatmul.mubr.bf16.gmra.mrb[0].mxu0 %v2157
        %v2266 = vpop.f32.mrb[0].mxu0
        %v2267 = vadd.f32 0.0, %v2266
        %v2268 = vpop.f32.mrb[0].mxu0
        %v2269 = vpop.f32.mrb[0].mxu0
        %v2270 = vadd.f32 0.0, %v2269
        %v2271 = vpop.f32.mrb[0].mxu0
        %2272 = vmatprep.mubr.bf16.mxu0 0
        %2273 = vmatmul.mubr.bf16.gmra.mrb[0].mxu0 %v2158
        %v2274 = vpop.f32.mrb[0].mxu0
        %v2275 = vadd.f32 0.0, %v2274
        %v2276 = vpop.f32.mrb[0].mxu0
        %v2277 = vpop.f32.mrb[0].mxu0
        %v2278 = vadd.f32 0.0, %v2277
        %v2279 = vpop.f32.mrb[0].mxu0
        %2280 = vmatprep.mubr.bf16.mxu0 0
        %2281 = vmatmul.mubr.bf16.gmra.mrb[0].mxu0 %v2159
        %v2282 = vpop.f32.mrb[0].mxu0
        %v2283 = vadd.f32 0.0, %v2282
        %v2284 = vpop.f32.mrb[0].mxu0
        %v2285 = vpop.f32.mrb[0].mxu0
        %v2286 = vadd.f32 0.0, %v2285
        %v2287 = vpop.f32.mrb[0].mxu0
        %2288 = vdwg.mxu0
        %v2289 = vrcp.pop %v2121
        %v2290 = vrcp.pop %v2123
        %v2291 = vrcp.pop %v2125
        %v2292 = vrcp.pop %v2127
        %v2293 = vrcp.pop %v2129
        %v2294 = vrcp.pop %v2131
        %v2295 = vrcp.pop %v2133
        %v2296 = vrcp.pop %v2135
        %v2297 = vrcp.pop %v2137
        %v2298 = vrcp.pop %v2139
        %v2299 = vrcp.pop %v2141
        %v2300 = vrcp.pop %v2143
        %v2301 = vrcp.pop %v2145
        %v2302 = vrcp.pop %v2147
        %v2303 = vrcp.pop %v2149
        %v2304 = vrcp.pop %v2151
        %v2305 = vmul.f32 %v2227, %v2289
        %v2306 = vmul.f32 %v2230, %v2290
        %v2307 = vmul.f32 %v2235, %v2291
        %v2308 = vmul.f32 %v2238, %v2292
        %v2309 = vmul.f32 %v2243, %v2293
        %v2310 = vmul.f32 %v2246, %v2294
        %v2311 = vmul.f32 %v2251, %v2295
        %v2312 = vmul.f32 %v2254, %v2296
        %v2313 = vmul.f32 %v2259, %v2297
        %v2314 = vmul.f32 %v2262, %v2298
        %v2315 = vmul.f32 %v2267, %v2299
        %v2316 = vmul.f32 %v2270, %v2300
        %v2317 = vmul.f32 %v2275, %v2301
        %v2318 = vmul.f32 %v2278, %v2302
        %v2319 = vmul.f32 %v2283, %v2303
        %v2320 = vmul.f32 %v2286, %v2304
        %v2321 = vpack.c.bf16 %v2306, %v2305
        %v2322 = vpack.c.bf16 %v2308, %v2307
        %v2323 = vpack.c.bf16 %v2310, %v2309
        %v2324 = vpack.c.bf16 %v2312, %v2311
        %v2325 = vpack.c.bf16 %v2314, %v2313
        %v2326 = vpack.c.bf16 %v2316, %v2315
        %v2327 = vpack.c.bf16 %v2318, %v2317
        %v2328 = vpack.c.bf16 %v2320, %v2319
        %2329 = vrot.lane.b32.xlu0 %v1264, 64
        %v2330 = vpop.permute.xlu0 %2329
        %2331 = vrot.lane.b32.xlu0 %v1265, 64
        %v2332 = vpop.permute.xlu0 %2331
        %2333 = vrot.lane.b32.xlu0 %v1266, 64
        %v2334 = vpop.permute.xlu0 %2333
        %2335 = vrot.lane.b32.xlu0 %v1267, 64
        %v2336 = vpop.permute.xlu0 %2335
        %2337 = vrot.lane.b32.xlu0 %v1268, 64
        %v2338 = vpop.permute.xlu0 %2337
        %2339 = vrot.lane.b32.xlu0 %v1269, 64
        %v2340 = vpop.permute.xlu0 %2339
        %2341 = vrot.lane.b32.xlu0 %v1270, 64
        %v2342 = vpop.permute.xlu0 %2341
        %2343 = vrot.lane.b32.xlu0 %v1271, 64
        %v2344 = vpop.permute.xlu0 %2343
        %2345 = vrot.lane.b32.xlu0 %v1272, 64
        %v2346 = vpop.permute.xlu0 %2345
        %2347 = vrot.lane.b32.xlu0 %v1273, 64
        %v2348 = vpop.permute.xlu0 %2347
        %2349 = vrot.lane.b32.xlu0 %v1274, 64
        %v2350 = vpop.permute.xlu0 %2349
        %2351 = vrot.lane.b32.xlu0 %v1275, 64
        %v2352 = vpop.permute.xlu0 %2351
        %2353 = vrot.lane.b32.xlu0 %v1276, 64
        %v2354 = vpop.permute.xlu0 %2353
        %2355 = vrot.lane.b32.xlu0 %v1277, 64
        %v2356 = vpop.permute.xlu0 %2355
        %2357 = vrot.lane.b32.xlu0 %v1278, 64
        %v2358 = vpop.permute.xlu0 %2357
        %2359 = vrot.lane.b32.xlu0 %v1279, 64
        %v2360 = vpop.permute.xlu0 %2359
        %v2362 = vsel %vm1296, %v2330, 0
        %v2365 = vsel %vm1296, %v2332, 0
        %v2368 = vsel %vm1296, %v2334, 0
        %v2371 = vsel %vm1296, %v2336, 0
        %v2374 = vsel %vm1296, %v2338, 0
        %v2377 = vsel %vm1296, %v2340, 0
        %v2380 = vsel %vm1296, %v2342, 0
        %v2383 = vsel %vm1296, %v2344, 0
        %v2386 = vsel %vm1296, %v2346, 0
        %v2389 = vsel %vm1296, %v2348, 0
        %v2392 = vsel %vm1296, %v2350, 0
        %v2395 = vsel %vm1296, %v2352, 0
        %v2398 = vsel %vm1296, %v2354, 0
        %v2401 = vsel %vm1296, %v2356, 0
        %v2404 = vsel %vm1296, %v2358, 0
        %v2407 = vsel %vm1296, %v2360, 0
        %2409 = vmatprep.subr.bf16.mxu0 0
        %2410 = vmatpush1.bf16.xpose.msra.mxu0 %v2386
        %2411 = vmatprep.subr.bf16.mxu0 0
        %2412 = vmatpush1.bf16.xpose.msra.mxu0 %v2389
        %2413 = vmatprep.subr.bf16.mxu0 0
        %2414 = vmatpush1.bf16.xpose.msra.mxu0 %v2392
        %2415 = vmatprep.subr.bf16.mxu0 0
        %2416 = vmatpush1.bf16.xpose.msra.mxu0 %v2395
        %2417 = vmatprep.subr.bf16.mxu0 0
        %2418 = vmatpush1.bf16.xpose.msra.mxu0 %v2398
        %2419 = vmatprep.subr.bf16.mxu0 0
        %2420 = vmatpush1.bf16.xpose.msra.mxu0 %v2401
        %2421 = vmatprep.subr.bf16.mxu0 0
        %2422 = vmatpush1.bf16.xpose.msra.mxu0 %v2404
        %2423 = vmatprep.subr.bf16.mxu0 0
        %2424 = vmatpush1.bf16.xpose.msra.mxu0 %v2407
        %2425 = vmatprep.subr.bf16.mxu0 0
        %2426 = vmatpush1.bf16.xpose.msra.mxu0 0
        %2427 = vmatprep.subr.bf16.mxu0 0
        %2428 = vmatpush1.bf16.xpose.msra.mxu0 0
        %2429 = vmatprep.subr.bf16.mxu0 0
        %2430 = vmatpush1.bf16.xpose.msra.mxu0 0
        %2431 = vmatprep.subr.bf16.mxu0 0
        %2432 = vmatpush1.bf16.xpose.msra.mxu0 0
        %2433 = vmatprep.subr.bf16.mxu0 0
        %2434 = vmatpush1.bf16.xpose.msra.mxu0 0
        %2435 = vmatprep.subr.bf16.mxu0 0
        %2436 = vmatpush1.bf16.xpose.msra.mxu0 0
        %2437 = vmatprep.subr.bf16.mxu0 0
        %2438 = vmatpush1.bf16.xpose.msra.mxu0 0
        %2439 = vmatprep.subr.bf16.mxu0 0
        %2440 = vmatpush1.bf16.xpose.msra.mxu0 0
        %2441 = vmatprep.mubr.bf16.mxu0 0
        %2442 = vmatmul.mubr.bf16.gmra.mrb[0].mxu0 %v2362
        %v2443 = vpop.f32.mrb[0].mxu0
        %v2444 = vadd.f32 0.0, %v2443
        %v2445 = vpop.f32.mrb[0].mxu0
        %v2446 = vpop.f32.mrb[0].mxu0
        %v2447 = vadd.f32 0.0, %v2446
        %v2448 = vpop.f32.mrb[0].mxu0
        %2449 = vmatprep.mubr.bf16.mxu0 0
        %2450 = vmatmul.mubr.bf16.gmra.mrb[0].mxu0 %v2365
        %v2451 = vpop.f32.mrb[0].mxu0
        %v2452 = vadd.f32 0.0, %v2451
        %v2453 = vpop.f32.mrb[0].mxu0
        %v2454 = vpop.f32.mrb[0].mxu0
        %v2455 = vadd.f32 0.0, %v2454
        %v2456 = vpop.f32.mrb[0].mxu0
        %2457 = vmatprep.mubr.bf16.mxu0 0
        %2458 = vmatmul.mubr.bf16.gmra.mrb[0].mxu0 %v2368
        %v2459 = vpop.f32.mrb[0].mxu0
        %v2460 = vadd.f32 0.0, %v2459
        %v2461 = vpop.f32.mrb[0].mxu0
        %v2462 = vpop.f32.mrb[0].mxu0
        %v2463 = vadd.f32 0.0, %v2462
        %v2464 = vpop.f32.mrb[0].mxu0
        %2465 = vmatprep.mubr.bf16.mxu0 0
        %2466 = vmatmul.mubr.bf16.gmra.mrb[0].mxu0 %v2371
        %v2467 = vpop.f32.mrb[0].mxu0
        %v2468 = vadd.f32 0.0, %v2467
        %v2469 = vpop.f32.mrb[0].mxu0
        %v2470 = vpop.f32.mrb[0].mxu0
        %v2471 = vadd.f32 0.0, %v2470
        %v2472 = vpop.f32.mrb[0].mxu0
        %2473 = vmatprep.mubr.bf16.mxu0 0
        %2474 = vmatmul.mubr.bf16.gmra.mrb[0].mxu0 %v2374
        %v2475 = vpop.f32.mrb[0].mxu0
        %v2476 = vadd.f32 0.0, %v2475
        %v2477 = vpop.f32.mrb[0].mxu0
        %v2478 = vpop.f32.mrb[0].mxu0
        %v2479 = vadd.f32 0.0, %v2478
        %v2480 = vpop.f32.mrb[0].mxu0
        %2481 = vmatprep.mubr.bf16.mxu0 0
        %2482 = vmatmul.mubr.bf16.gmra.mrb[0].mxu0 %v2377
        %v2483 = vpop.f32.mrb[0].mxu0
        %v2484 = vadd.f32 0.0, %v2483
        %v2485 = vpop.f32.mrb[0].mxu0
        %v2486 = vpop.f32.mrb[0].mxu0
        %v2487 = vadd.f32 0.0, %v2486
        %v2488 = vpop.f32.mrb[0].mxu0
        %2489 = vmatprep.mubr.bf16.mxu0 0
        %2490 = vmatmul.mubr.bf16.gmra.mrb[0].mxu0 %v2380
        %v2491 = vpop.f32.mrb[0].mxu0
        %v2492 = vadd.f32 0.0, %v2491
        %v2493 = vpop.f32.mrb[0].mxu0
        %v2494 = vpop.f32.mrb[0].mxu0
        %v2495 = vadd.f32 0.0, %v2494
        %v2496 = vpop.f32.mrb[0].mxu0
        %2497 = vmatprep.mubr.bf16.mxu0 0
        %2498 = vmatmul.mubr.bf16.gmra.mrb[0].mxu0 %v2383
        %v2499 = vpop.f32.mrb[0].mxu0
        %v2500 = vadd.f32 0.0, %v2499
        %v2501 = vpop.f32.mrb[0].mxu0
        %v2502 = vpop.f32.mrb[0].mxu0
        %v2503 = vadd.f32 0.0, %v2502
        %v2504 = vpop.f32.mrb[0].mxu0
        %2505 = vdwg.mxu0
        %v2506 = vsel %vm1542, %v2444, -1e+30
        %v2507 = vsel %vm1543, %v2447, -1e+30
        %v2508 = vsel %vm1544, %v2452, -1e+30
        %v2509 = vsel %vm1545, %v2455, -1e+30
        %v2510 = vsel %vm1546, %v2460, -1e+30
        %v2511 = vsel %vm1547, %v2463, -1e+30
        %v2512 = vsel %vm1548, %v2468, -1e+30
        %v2513 = vsel %vm1549, %v2471, -1e+30
        %v2514 = vsel %vm1550, %v2476, -1e+30
        %v2515 = vsel %vm1551, %v2479, -1e+30
        %v2516 = vsel %vm1552, %v2484, -1e+30
        %v2517 = vsel %vm1553, %v2487, -1e+30
        %v2518 = vsel %vm1554, %v2492, -1e+30
        %v2519 = vsel %vm1555, %v2495, -1e+30
        %v2520 = vsel %vm1556, %v2500, -1e+30
        %v2521 = vsel %vm1557, %v2503, -1e+30
        %2522 = vmax.xlane.f32.xlu0 %v2506
        %v2523 = vpop.xlane.xlu0 %2522
        %2524 = vmax.xlane.f32.xlu0 %v2507
        %v2525 = vpop.xlane.xlu0 %2524
        %2526 = vmax.xlane.f32.xlu0 %v2508
        %v2527 = vpop.xlane.xlu0 %2526
        %2528 = vmax.xlane.f32.xlu0 %v2509
        %v2529 = vpop.xlane.xlu0 %2528
        %2530 = vmax.xlane.f32.xlu0 %v2510
        %v2531 = vpop.xlane.xlu0 %2530
        %2532 = vmax.xlane.f32.xlu0 %v2511
        %v2533 = vpop.xlane.xlu0 %2532
        %2534 = vmax.xlane.f32.xlu0 %v2512
        %v2535 = vpop.xlane.xlu0 %2534
        %2536 = vmax.xlane.f32.xlu0 %v2513
        %v2537 = vpop.xlane.xlu0 %2536
        %2538 = vmax.xlane.f32.xlu0 %v2514
        %v2539 = vpop.xlane.xlu0 %2538
        %2540 = vmax.xlane.f32.xlu0 %v2515
        %v2541 = vpop.xlane.xlu0 %2540
        %2542 = vmax.xlane.f32.xlu0 %v2516
        %v2543 = vpop.xlane.xlu0 %2542
        %2544 = vmax.xlane.f32.xlu0 %v2517
        %v2545 = vpop.xlane.xlu0 %2544
        %2546 = vmax.xlane.f32.xlu0 %v2518
        %v2547 = vpop.xlane.xlu0 %2546
        %2548 = vmax.xlane.f32.xlu0 %v2519
        %v2549 = vpop.xlane.xlu0 %2548
        %2550 = vmax.xlane.f32.xlu0 %v2520
        %v2551 = vpop.xlane.xlu0 %2550
        %2552 = vmax.xlane.f32.xlu0 %v2521
        %v2553 = vpop.xlane.xlu0 %2552
        %v2554 = vsub.f32 %v2506, %v2523
        %v2555 = vsub.f32 %v2507, %v2525
        %v2556 = vsub.f32 %v2508, %v2527
        %v2557 = vsub.f32 %v2509, %v2529
        %v2558 = vsub.f32 %v2510, %v2531
        %v2559 = vsub.f32 %v2511, %v2533
        %v2560 = vsub.f32 %v2512, %v2535
        %v2561 = vsub.f32 %v2513, %v2537
        %v2562 = vsub.f32 %v2514, %v2539
        %v2563 = vsub.f32 %v2515, %v2541
        %v2564 = vsub.f32 %v2516, %v2543
        %v2565 = vsub.f32 %v2517, %v2545
        %v2566 = vsub.f32 %v2518, %v2547
        %v2567 = vsub.f32 %v2519, %v2549
        %v2568 = vsub.f32 %v2520, %v2551
        %v2569 = vsub.f32 %v2521, %v2553
        %v2570 = vmul.f32 %v2554, 1.442695
        %v2571 = vpow.pop %v2570
        %v2572 = vmul.f32 %v2555, 1.442695
        %v2573 = vpow.pop %v2572
        %v2574 = vmul.f32 %v2556, 1.442695
        %v2575 = vpow.pop %v2574
        %v2576 = vmul.f32 %v2557, 1.442695
        %v2577 = vpow.pop %v2576
        %v2578 = vmul.f32 %v2558, 1.442695
        %v2579 = vpow.pop %v2578
        %v2580 = vmul.f32 %v2559, 1.442695
        %v2581 = vpow.pop %v2580
        %v2582 = vmul.f32 %v2560, 1.442695
        %v2583 = vpow.pop %v2582
        %v2584 = vmul.f32 %v2561, 1.442695
        %v2585 = vpow.pop %v2584
        %v2586 = vmul.f32 %v2562, 1.442695
        %v2587 = vpow.pop %v2586
        %v2588 = vmul.f32 %v2563, 1.442695
        %v2589 = vpow.pop %v2588
        %v2590 = vmul.f32 %v2564, 1.442695
        %v2591 = vpow.pop %v2590
        %v2592 = vmul.f32 %v2565, 1.442695
        %v2593 = vpow.pop %v2592
        %v2594 = vmul.f32 %v2566, 1.442695
        %v2595 = vpow.pop %v2594
        %v2596 = vmul.f32 %v2567, 1.442695
        %v2597 = vpow.pop %v2596
        %v2598 = vmul.f32 %v2568, 1.442695
        %v2599 = vpow.pop %v2598
        %v2600 = vmul.f32 %v2569, 1.442695
        %v2601 = vpow.pop %v2600
        %2602 = vadd.xlane.f32.xlu0 %v2571
        %v2603 = vpop.xlane.xlu0 %2602
        %2604 = vadd.xlane.f32.xlu0 %v2573
        %v2605 = vpop.xlane.xlu0 %2604
        %2606 = vadd.xlane.f32.xlu0 %v2575
        %v2607 = vpop.xlane.xlu0 %2606
        %2608 = vadd.xlane.f32.xlu0 %v2577
        %v2609 = vpop.xlane.xlu0 %2608
        %2610 = vadd.xlane.f32.xlu0 %v2579
        %v2611 = vpop.xlane.xlu0 %2610
        %2612 = vadd.xlane.f32.xlu0 %v2581
        %v2613 = vpop.xlane.xlu0 %2612
        %2614 = vadd.xlane.f32.xlu0 %v2583
        %v2615 = vpop.xlane.xlu0 %2614
        %2616 = vadd.xlane.f32.xlu0 %v2585
        %v2617 = vpop.xlane.xlu0 %2616
        %2618 = vadd.xlane.f32.xlu0 %v2587
        %v2619 = vpop.xlane.xlu0 %2618
        %2620 = vadd.xlane.f32.xlu0 %v2589
        %v2621 = vpop.xlane.xlu0 %2620
        %2622 = vadd.xlane.f32.xlu0 %v2591
        %v2623 = vpop.xlane.xlu0 %2622
        %2624 = vadd.xlane.f32.xlu0 %v2593
        %v2625 = vpop.xlane.xlu0 %2624
        %2626 = vadd.xlane.f32.xlu0 %v2595
        %v2627 = vpop.xlane.xlu0 %2626
        %2628 = vadd.xlane.f32.xlu0 %v2597
        %v2629 = vpop.xlane.xlu0 %2628
        %2630 = vadd.xlane.f32.xlu0 %v2599
        %v2631 = vpop.xlane.xlu0 %2630
        %2632 = vadd.xlane.f32.xlu0 %v2601
        %v2633 = vpop.xlane.xlu0 %2632
        %v2634 = vpack.c.bf16 %v2573, %v2571
        %v2635 = vpack.c.bf16 %v2577, %v2575
        %v2636 = vpack.c.bf16 %v2581, %v2579
        %v2637 = vpack.c.bf16 %v2585, %v2583
        %v2638 = vpack.c.bf16 %v2589, %v2587
        %v2639 = vpack.c.bf16 %v2593, %v2591
        %v2640 = vpack.c.bf16 %v2597, %v2595
        %v2641 = vpack.c.bf16 %v2601, %v2599
        %2642 = vrot.lane.b32.xlu0 %v1280, 64
        %v2643 = vpop.permute.xlu0 %2642
        %2644 = vrot.lane.b32.xlu0 %v1281, 64
        %v2645 = vpop.permute.xlu0 %2644
        %2646 = vrot.lane.b32.xlu0 %v1282, 64
        %v2647 = vpop.permute.xlu0 %2646
        %2648 = vrot.lane.b32.xlu0 %v1283, 64
        %v2649 = vpop.permute.xlu0 %2648
        %2650 = vrot.lane.b32.xlu0 %v1284, 64
        %v2651 = vpop.permute.xlu0 %2650
        %2652 = vrot.lane.b32.xlu0 %v1285, 64
        %v2653 = vpop.permute.xlu0 %2652
        %2654 = vrot.lane.b32.xlu0 %v1286, 64
        %v2655 = vpop.permute.xlu0 %2654
        %2656 = vrot.lane.b32.xlu0 %v1287, 64
        %v2657 = vpop.permute.xlu0 %2656
        %2666 = vmatprep.subr.bf16.mxu0 0
        %2667 = vmatpush1.bf16.msra.mxu0 %v2643
        %2668 = vmatprep.subr.bf16.mxu0 0
        %2669 = vmatpush1.bf16.msra.mxu0 %v2645
        %2670 = vmatprep.subr.bf16.mxu0 0
        %2671 = vmatpush1.bf16.msra.mxu0 %v2647
        %2672 = vmatprep.subr.bf16.mxu0 0
        %2673 = vmatpush1.bf16.msra.mxu0 %v2649
        %2674 = vmatprep.subr.bf16.mxu0 0
        %2675 = vmatpush1.bf16.msra.mxu0 %v2651
        %2676 = vmatprep.subr.bf16.mxu0 0
        %2677 = vmatpush1.bf16.msra.mxu0 %v2653
        %2678 = vmatprep.subr.bf16.mxu0 0
        %2679 = vmatpush1.bf16.msra.mxu0 %v2655
        %2680 = vmatprep.subr.bf16.mxu0 0
        %2681 = vmatpush1.bf16.msra.mxu0 %v2657
        %2682 = vmatprep.subr.bf16.mxu0 0
        %2683 = vmatpush1.bf16.msra.mxu0 0
        %2684 = vmatprep.subr.bf16.mxu0 0
        %2685 = vmatpush1.bf16.msra.mxu0 0
        %2686 = vmatprep.subr.bf16.mxu0 0
        %2687 = vmatpush1.bf16.msra.mxu0 0
        %2688 = vmatprep.subr.bf16.mxu0 0
        %2689 = vmatpush1.bf16.msra.mxu0 0
        %2690 = vmatprep.subr.bf16.mxu0 0
        %2691 = vmatpush1.bf16.msra.mxu0 0
        %2692 = vmatprep.subr.bf16.mxu0 0
        %2693 = vmatpush1.bf16.msra.mxu0 0
        %2694 = vmatprep.subr.bf16.mxu0 0
        %2695 = vmatpush1.bf16.msra.mxu0 0
        %2696 = vmatprep.subr.bf16.mxu0 0
        %2697 = vmatpush1.bf16.msra.mxu0 0
        %2698 = vmatprep.mubr.bf16.mxu0 0
        %2699 = vmatmul.mubr.bf16.gmra.mrb[0].mxu0 %v2634
        %v2700 = vpop.f32.mrb[0].mxu0
        %v2701 = vadd.f32 0.0, %v2700
        %v2702 = vpop.f32.mrb[0].mxu0
        %v2703 = vpop.f32.mrb[0].mxu0
        %v2704 = vadd.f32 0.0, %v2703
        %v2705 = vpop.f32.mrb[0].mxu0
        %2706 = vmatprep.mubr.bf16.mxu0 0
        %2707 = vmatmul.mubr.bf16.gmra.mrb[0].mxu0 %v2635
        %v2708 = vpop.f32.mrb[0].mxu0
        %v2709 = vadd.f32 0.0, %v2708
        %v2710 = vpop.f32.mrb[0].mxu0
        %v2711 = vpop.f32.mrb[0].mxu0
        %v2712 = vadd.f32 0.0, %v2711
        %v2713 = vpop.f32.mrb[0].mxu0
        %2714 = vmatprep.mubr.bf16.mxu0 0
        %2715 = vmatmul.mubr.bf16.gmra.mrb[0].mxu0 %v2636
        %v2716 = vpop.f32.mrb[0].mxu0
        %v2717 = vadd.f32 0.0, %v2716
        %v2718 = vpop.f32.mrb[0].mxu0
        %v2719 = vpop.f32.mrb[0].mxu0
        %v2720 = vadd.f32 0.0, %v2719
        %v2721 = vpop.f32.mrb[0].mxu0
        %2722 = vmatprep.mubr.bf16.mxu0 0
        %2723 = vmatmul.mubr.bf16.gmra.mrb[0].mxu0 %v2637
        %v2724 = vpop.f32.mrb[0].mxu0
        %v2725 = vadd.f32 0.0, %v2724
        %v2726 = vpop.f32.mrb[0].mxu0
        %v2727 = vpop.f32.mrb[0].mxu0
        %v2728 = vadd.f32 0.0, %v2727
        %v2729 = vpop.f32.mrb[0].mxu0
        %2730 = vmatprep.mubr.bf16.mxu0 0
        %2731 = vmatmul.mubr.bf16.gmra.mrb[0].mxu0 %v2638
        %v2732 = vpop.f32.mrb[0].mxu0
        %v2733 = vadd.f32 0.0, %v2732
        %v2734 = vpop.f32.mrb[0].mxu0
        %v2735 = vpop.f32.mrb[0].mxu0
        %v2736 = vadd.f32 0.0, %v2735
        %v2737 = vpop.f32.mrb[0].mxu0
        %2738 = vmatprep.mubr.bf16.mxu0 0
        %2739 = vmatmul.mubr.bf16.gmra.mrb[0].mxu0 %v2639
        %v2740 = vpop.f32.mrb[0].mxu0
        %v2741 = vadd.f32 0.0, %v2740
        %v2742 = vpop.f32.mrb[0].mxu0
        %v2743 = vpop.f32.mrb[0].mxu0
        %v2744 = vadd.f32 0.0, %v2743
        %v2745 = vpop.f32.mrb[0].mxu0
        %2746 = vmatprep.mubr.bf16.mxu0 0
        %2747 = vmatmul.mubr.bf16.gmra.mrb[0].mxu0 %v2640
        %v2748 = vpop.f32.mrb[0].mxu0
        %v2749 = vadd.f32 0.0, %v2748
        %v2750 = vpop.f32.mrb[0].mxu0
        %v2751 = vpop.f32.mrb[0].mxu0
        %v2752 = vadd.f32 0.0, %v2751
        %v2753 = vpop.f32.mrb[0].mxu0
        %2754 = vmatprep.mubr.bf16.mxu0 0
        %2755 = vmatmul.mubr.bf16.gmra.mrb[0].mxu0 %v2641
        %v2756 = vpop.f32.mrb[0].mxu0
        %v2757 = vadd.f32 0.0, %v2756
        %v2758 = vpop.f32.mrb[0].mxu0
        %v2759 = vpop.f32.mrb[0].mxu0
        %v2760 = vadd.f32 0.0, %v2759
        %v2761 = vpop.f32.mrb[0].mxu0
        %2762 = vdwg.mxu0
        %v2763 = vrcp.pop %v2603
        %v2764 = vrcp.pop %v2605
        %v2765 = vrcp.pop %v2607
        %v2766 = vrcp.pop %v2609
        %v2767 = vrcp.pop %v2611
        %v2768 = vrcp.pop %v2613
        %v2769 = vrcp.pop %v2615
        %v2770 = vrcp.pop %v2617
        %v2771 = vrcp.pop %v2619
        %v2772 = vrcp.pop %v2621
        %v2773 = vrcp.pop %v2623
        %v2774 = vrcp.pop %v2625
        %v2775 = vrcp.pop %v2627
        %v2776 = vrcp.pop %v2629
        %v2777 = vrcp.pop %v2631
        %v2778 = vrcp.pop %v2633
        %v2779 = vmul.f32 %v2701, %v2763
        %v2780 = vmul.f32 %v2704, %v2764
        %v2781 = vmul.f32 %v2709, %v2765
        %v2782 = vmul.f32 %v2712, %v2766
        %v2783 = vmul.f32 %v2717, %v2767
        %v2784 = vmul.f32 %v2720, %v2768
        %v2785 = vmul.f32 %v2725, %v2769
        %v2786 = vmul.f32 %v2728, %v2770
        %v2787 = vmul.f32 %v2733, %v2771
        %v2788 = vmul.f32 %v2736, %v2772
        %v2789 = vmul.f32 %v2741, %v2773
        %v2790 = vmul.f32 %v2744, %v2774
        %v2791 = vmul.f32 %v2749, %v2775
        %v2792 = vmul.f32 %v2752, %v2776
        %v2793 = vmul.f32 %v2757, %v2777
        %v2794 = vmul.f32 %v2760, %v2778
        %v2795 = vpack.c.bf16 %v2780, %v2779
        %v2796 = vpack.c.bf16 %v2782, %v2781
        %v2797 = vpack.c.bf16 %v2784, %v2783
        %v2798 = vpack.c.bf16 %v2786, %v2785
        %v2799 = vpack.c.bf16 %v2788, %v2787
        %v2800 = vpack.c.bf16 %v2790, %v2789
        %v2801 = vpack.c.bf16 %v2792, %v2791
        %v2802 = vpack.c.bf16 %v2794, %v2793
        %2803 = vrot.lane.b32.xlu0 %v1264, 32
        %v2804 = vpop.permute.xlu0 %2803
        %2805 = vrot.lane.b32.xlu0 %v1265, 32
        %v2806 = vpop.permute.xlu0 %2805
        %2807 = vrot.lane.b32.xlu0 %v1266, 32
        %v2808 = vpop.permute.xlu0 %2807
        %2809 = vrot.lane.b32.xlu0 %v1267, 32
        %v2810 = vpop.permute.xlu0 %2809
        %2811 = vrot.lane.b32.xlu0 %v1268, 32
        %v2812 = vpop.permute.xlu0 %2811
        %2813 = vrot.lane.b32.xlu0 %v1269, 32
        %v2814 = vpop.permute.xlu0 %2813
        %2815 = vrot.lane.b32.xlu0 %v1270, 32
        %v2816 = vpop.permute.xlu0 %2815
        %2817 = vrot.lane.b32.xlu0 %v1271, 32
        %v2818 = vpop.permute.xlu0 %2817
        %2819 = vrot.lane.b32.xlu0 %v1272, 32
        %v2820 = vpop.permute.xlu0 %2819
        %2821 = vrot.lane.b32.xlu0 %v1273, 32
        %v2822 = vpop.permute.xlu0 %2821
        %2823 = vrot.lane.b32.xlu0 %v1274, 32
        %v2824 = vpop.permute.xlu0 %2823
        %2825 = vrot.lane.b32.xlu0 %v1275, 32
        %v2826 = vpop.permute.xlu0 %2825
        %2827 = vrot.lane.b32.xlu0 %v1276, 32
        %v2828 = vpop.permute.xlu0 %2827
        %2829 = vrot.lane.b32.xlu0 %v1277, 32
        %v2830 = vpop.permute.xlu0 %2829
        %2831 = vrot.lane.b32.xlu0 %v1278, 32
        %v2832 = vpop.permute.xlu0 %2831
        %2833 = vrot.lane.b32.xlu0 %v1279, 32
        %v2834 = vpop.permute.xlu0 %2833
        %v2836 = vsel %vm1296, %v2804, 0
        %v2839 = vsel %vm1296, %v2806, 0
        %v2842 = vsel %vm1296, %v2808, 0
        %v2845 = vsel %vm1296, %v2810, 0
        %v2848 = vsel %vm1296, %v2812, 0
        %v2851 = vsel %vm1296, %v2814, 0
        %v2854 = vsel %vm1296, %v2816, 0
        %v2857 = vsel %vm1296, %v2818, 0
        %v2860 = vsel %vm1296, %v2820, 0
        %v2863 = vsel %vm1296, %v2822, 0
        %v2866 = vsel %vm1296, %v2824, 0
        %v2869 = vsel %vm1296, %v2826, 0
        %v2872 = vsel %vm1296, %v2828, 0
        %v2875 = vsel %vm1296, %v2830, 0
        %v2878 = vsel %vm1296, %v2832, 0
        %v2881 = vsel %vm1296, %v2834, 0
        %2883 = vmatprep.subr.bf16.mxu0 0
        %2884 = vmatpush1.bf16.xpose.msra.mxu0 %v2860
        %2885 = vmatprep.subr.bf16.mxu0 0
        %2886 = vmatpush1.bf16.xpose.msra.mxu0 %v2863
        %2887 = vmatprep.subr.bf16.mxu0 0
        %2888 = vmatpush1.bf16.xpose.msra.mxu0 %v2866
        %2889 = vmatprep.subr.bf16.mxu0 0
        %2890 = vmatpush1.bf16.xpose.msra.mxu0 %v2869
        %2891 = vmatprep.subr.bf16.mxu0 0
        %2892 = vmatpush1.bf16.xpose.msra.mxu0 %v2872
        %2893 = vmatprep.subr.bf16.mxu0 0
        %2894 = vmatpush1.bf16.xpose.msra.mxu0 %v2875
        %2895 = vmatprep.subr.bf16.mxu0 0
        %2896 = vmatpush1.bf16.xpose.msra.mxu0 %v2878
        %2897 = vmatprep.subr.bf16.mxu0 0
        %2898 = vmatpush1.bf16.xpose.msra.mxu0 %v2881
        %2899 = vmatprep.subr.bf16.mxu0 0
        %2900 = vmatpush1.bf16.xpose.msra.mxu0 0
        %2901 = vmatprep.subr.bf16.mxu0 0
        %2902 = vmatpush1.bf16.xpose.msra.mxu0 0
        %2903 = vmatprep.subr.bf16.mxu0 0
        %2904 = vmatpush1.bf16.xpose.msra.mxu0 0
        %2905 = vmatprep.subr.bf16.mxu0 0
        %2906 = vmatpush1.bf16.xpose.msra.mxu0 0
        %2907 = vmatprep.subr.bf16.mxu0 0
        %2908 = vmatpush1.bf16.xpose.msra.mxu0 0
        %2909 = vmatprep.subr.bf16.mxu0 0
        %2910 = vmatpush1.bf16.xpose.msra.mxu0 0
        %2911 = vmatprep.subr.bf16.mxu0 0
        %2912 = vmatpush1.bf16.xpose.msra.mxu0 0
        %2913 = vmatprep.subr.bf16.mxu0 0
        %2914 = vmatpush1.bf16.xpose.msra.mxu0 0
        %2915 = vmatprep.mubr.bf16.mxu0 0
        %2916 = vmatmul.mubr.bf16.gmra.mrb[0].mxu0 %v2836
        %v2917 = vpop.f32.mrb[0].mxu0
        %v2918 = vadd.f32 0.0, %v2917
        %v2919 = vpop.f32.mrb[0].mxu0
        %v2920 = vpop.f32.mrb[0].mxu0
        %v2921 = vadd.f32 0.0, %v2920
        %v2922 = vpop.f32.mrb[0].mxu0
        %2923 = vmatprep.mubr.bf16.mxu0 0
        %2924 = vmatmul.mubr.bf16.gmra.mrb[0].mxu0 %v2839
        %v2925 = vpop.f32.mrb[0].mxu0
        %v2926 = vadd.f32 0.0, %v2925
        %v2927 = vpop.f32.mrb[0].mxu0
        %v2928 = vpop.f32.mrb[0].mxu0
        %v2929 = vadd.f32 0.0, %v2928
        %v2930 = vpop.f32.mrb[0].mxu0
        %2931 = vmatprep.mubr.bf16.mxu0 0
        %2932 = vmatmul.mubr.bf16.gmra.mrb[0].mxu0 %v2842
        %v2933 = vpop.f32.mrb[0].mxu0
        %v2934 = vadd.f32 0.0, %v2933
        %v2935 = vpop.f32.mrb[0].mxu0
        %v2936 = vpop.f32.mrb[0].mxu0
        %v2937 = vadd.f32 0.0, %v2936
        %v2938 = vpop.f32.mrb[0].mxu0
        %2939 = vmatprep.mubr.bf16.mxu0 0
        %2940 = vmatmul.mubr.bf16.gmra.mrb[0].mxu0 %v2845
        %v2941 = vpop.f32.mrb[0].mxu0
        %v2942 = vadd.f32 0.0, %v2941
        %v2943 = vpop.f32.mrb[0].mxu0
        %v2944 = vpop.f32.mrb[0].mxu0
        %v2945 = vadd.f32 0.0, %v2944
        %v2946 = vpop.f32.mrb[0].mxu0
        %2947 = vmatprep.mubr.bf16.mxu0 0
        %2948 = vmatmul.mubr.bf16.gmra.mrb[0].mxu0 %v2848
        %v2949 = vpop.f32.mrb[0].mxu0
        %v2950 = vadd.f32 0.0, %v2949
        %v2951 = vpop.f32.mrb[0].mxu0
        %v2952 = vpop.f32.mrb[0].mxu0
        %v2953 = vadd.f32 0.0, %v2952
        %v2954 = vpop.f32.mrb[0].mxu0
        %2955 = vmatprep.mubr.bf16.mxu0 0
        %2956 = vmatmul.mubr.bf16.gmra.mrb[0].mxu0 %v2851
        %v2957 = vpop.f32.mrb[0].mxu0
        %v2958 = vadd.f32 0.0, %v2957
        %v2959 = vpop.f32.mrb[0].mxu0
        %v2960 = vpop.f32.mrb[0].mxu0
        %v2961 = vadd.f32 0.0, %v2960
        %v2962 = vpop.f32.mrb[0].mxu0
        %2963 = vmatprep.mubr.bf16.mxu0 0
        %2964 = vmatmul.mubr.bf16.gmra.mrb[0].mxu0 %v2854
        %v2965 = vpop.f32.mrb[0].mxu0
        %v2966 = vadd.f32 0.0, %v2965
        %v2967 = vpop.f32.mrb[0].mxu0
        %v2968 = vpop.f32.mrb[0].mxu0
        %v2969 = vadd.f32 0.0, %v2968
        %v2970 = vpop.f32.mrb[0].mxu0
        %2971 = vmatprep.mubr.bf16.mxu0 0
        %2972 = vmatmul.mubr.bf16.gmra.mrb[0].mxu0 %v2857
        %v2973 = vpop.f32.mrb[0].mxu0
        %v2974 = vadd.f32 0.0, %v2973
        %v2975 = vpop.f32.mrb[0].mxu0
        %v2976 = vpop.f32.mrb[0].mxu0
        %v2977 = vadd.f32 0.0, %v2976
        %v2978 = vpop.f32.mrb[0].mxu0
        %2979 = vdwg.mxu0
        %v2980 = vsel %vm1542, %v2918, -1e+30
        %v2981 = vsel %vm1543, %v2921, -1e+30
        %v2982 = vsel %vm1544, %v2926, -1e+30
        %v2983 = vsel %vm1545, %v2929, -1e+30
        %v2984 = vsel %vm1546, %v2934, -1e+30
        %v2985 = vsel %vm1547, %v2937, -1e+30
        %v2986 = vsel %vm1548, %v2942, -1e+30
        %v2987 = vsel %vm1549, %v2945, -1e+30
        %v2988 = vsel %vm1550, %v2950, -1e+30
        %v2989 = vsel %vm1551, %v2953, -1e+30
        %v2990 = vsel %vm1552, %v2958, -1e+30
        %v2991 = vsel %vm1553, %v2961, -1e+30
        %v2992 = vsel %vm1554, %v2966, -1e+30
        %v2993 = vsel %vm1555, %v2969, -1e+30
        %v2994 = vsel %vm1556, %v2974, -1e+30
        %v2995 = vsel %vm1557, %v2977, -1e+30
        %2996 = vmax.xlane.f32.xlu0 %v2980
        %v2997 = vpop.xlane.xlu0 %2996
        %2998 = vmax.xlane.f32.xlu0 %v2981
        %v2999 = vpop.xlane.xlu0 %2998
        %3000 = vmax.xlane.f32.xlu0 %v2982
        %v3001 = vpop.xlane.xlu0 %3000
        %3002 = vmax.xlane.f32.xlu0 %v2983
        %v3003 = vpop.xlane.xlu0 %3002
        %3004 = vmax.xlane.f32.xlu0 %v2984
        %v3005 = vpop.xlane.xlu0 %3004
        %3006 = vmax.xlane.f32.xlu0 %v2985
        %v3007 = vpop.xlane.xlu0 %3006
        %3008 = vmax.xlane.f32.xlu0 %v2986
        %v3009 = vpop.xlane.xlu0 %3008
        %3010 = vmax.xlane.f32.xlu0 %v2987
        %v3011 = vpop.xlane.xlu0 %3010
        %3012 = vmax.xlane.f32.xlu0 %v2988
        %v3013 = vpop.xlane.xlu0 %3012
        %3014 = vmax.xlane.f32.xlu0 %v2989
        %v3015 = vpop.xlane.xlu0 %3014
        %3016 = vmax.xlane.f32.xlu0 %v2990
        %v3017 = vpop.xlane.xlu0 %3016
        %3018 = vmax.xlane.f32.xlu0 %v2991
        %v3019 = vpop.xlane.xlu0 %3018
        %3020 = vmax.xlane.f32.xlu0 %v2992
        %v3021 = vpop.xlane.xlu0 %3020
        %3022 = vmax.xlane.f32.xlu0 %v2993
        %v3023 = vpop.xlane.xlu0 %3022
        %3024 = vmax.xlane.f32.xlu0 %v2994
        %v3025 = vpop.xlane.xlu0 %3024
        %3026 = vmax.xlane.f32.xlu0 %v2995
        %v3027 = vpop.xlane.xlu0 %3026
        %v3028 = vsub.f32 %v2980, %v2997
        %v3029 = vsub.f32 %v2981, %v2999
        %v3030 = vsub.f32 %v2982, %v3001
        %v3031 = vsub.f32 %v2983, %v3003
        %v3032 = vsub.f32 %v2984, %v3005
        %v3033 = vsub.f32 %v2985, %v3007
        %v3034 = vsub.f32 %v2986, %v3009
        %v3035 = vsub.f32 %v2987, %v3011
        %v3036 = vsub.f32 %v2988, %v3013
        %v3037 = vsub.f32 %v2989, %v3015
        %v3038 = vsub.f32 %v2990, %v3017
        %v3039 = vsub.f32 %v2991, %v3019
        %v3040 = vsub.f32 %v2992, %v3021
        %v3041 = vsub.f32 %v2993, %v3023
        %v3042 = vsub.f32 %v2994, %v3025
        %v3043 = vsub.f32 %v2995, %v3027
        %v3044 = vmul.f32 %v3028, 1.442695
        %v3045 = vpow.pop %v3044
        %v3046 = vmul.f32 %v3029, 1.442695
        %v3047 = vpow.pop %v3046
        %v3048 = vmul.f32 %v3030, 1.442695
        %v3049 = vpow.pop %v3048
        %v3050 = vmul.f32 %v3031, 1.442695
        %v3051 = vpow.pop %v3050
        %v3052 = vmul.f32 %v3032, 1.442695
        %v3053 = vpow.pop %v3052
        %v3054 = vmul.f32 %v3033, 1.442695
        %v3055 = vpow.pop %v3054
        %v3056 = vmul.f32 %v3034, 1.442695
        %v3057 = vpow.pop %v3056
        %v3058 = vmul.f32 %v3035, 1.442695
        %v3059 = vpow.pop %v3058
        %v3060 = vmul.f32 %v3036, 1.442695
        %v3061 = vpow.pop %v3060
        %v3062 = vmul.f32 %v3037, 1.442695
        %v3063 = vpow.pop %v3062
        %v3064 = vmul.f32 %v3038, 1.442695
        %v3065 = vpow.pop %v3064
        %v3066 = vmul.f32 %v3039, 1.442695
        %v3067 = vpow.pop %v3066
        %v3068 = vmul.f32 %v3040, 1.442695
        %v3069 = vpow.pop %v3068
        %v3070 = vmul.f32 %v3041, 1.442695
        %v3071 = vpow.pop %v3070
        %v3072 = vmul.f32 %v3042, 1.442695
        %v3073 = vpow.pop %v3072
        %v3074 = vmul.f32 %v3043, 1.442695
        %v3075 = vpow.pop %v3074
        %3076 = vadd.xlane.f32.xlu0 %v3045
        %v3077 = vpop.xlane.xlu0 %3076
        %3078 = vadd.xlane.f32.xlu0 %v3047
        %v3079 = vpop.xlane.xlu0 %3078
        %3080 = vadd.xlane.f32.xlu0 %v3049
        %v3081 = vpop.xlane.xlu0 %3080
        %3082 = vadd.xlane.f32.xlu0 %v3051
        %v3083 = vpop.xlane.xlu0 %3082
        %3084 = vadd.xlane.f32.xlu0 %v3053
        %v3085 = vpop.xlane.xlu0 %3084
        %3086 = vadd.xlane.f32.xlu0 %v3055
        %v3087 = vpop.xlane.xlu0 %3086
        %3088 = vadd.xlane.f32.xlu0 %v3057
        %v3089 = vpop.xlane.xlu0 %3088
        %3090 = vadd.xlane.f32.xlu0 %v3059
        %v3091 = vpop.xlane.xlu0 %3090
        %3092 = vadd.xlane.f32.xlu0 %v3061
        %v3093 = vpop.xlane.xlu0 %3092
        %3094 = vadd.xlane.f32.xlu0 %v3063
        %v3095 = vpop.xlane.xlu0 %3094
        %3096 = vadd.xlane.f32.xlu0 %v3065
        %v3097 = vpop.xlane.xlu0 %3096
        %3098 = vadd.xlane.f32.xlu0 %v3067
        %v3099 = vpop.xlane.xlu0 %3098
        %3100 = vadd.xlane.f32.xlu0 %v3069
        %v3101 = vpop.xlane.xlu0 %3100
        %3102 = vadd.xlane.f32.xlu0 %v3071
        %v3103 = vpop.xlane.xlu0 %3102
        %3104 = vadd.xlane.f32.xlu0 %v3073
        %v3105 = vpop.xlane.xlu0 %3104
        %3106 = vadd.xlane.f32.xlu0 %v3075
        %v3107 = vpop.xlane.xlu0 %3106
        %v3108 = vpack.c.bf16 %v3047, %v3045
        %v3109 = vpack.c.bf16 %v3051, %v3049
        %v3110 = vpack.c.bf16 %v3055, %v3053
        %v3111 = vpack.c.bf16 %v3059, %v3057
        %v3112 = vpack.c.bf16 %v3063, %v3061
        %v3113 = vpack.c.bf16 %v3067, %v3065
        %v3114 = vpack.c.bf16 %v3071, %v3069
        %v3115 = vpack.c.bf16 %v3075, %v3073
        %3116 = vrot.lane.b32.xlu0 %v1280, 32
        %v3117 = vpop.permute.xlu0 %3116
        %3118 = vrot.lane.b32.xlu0 %v1281, 32
        %v3119 = vpop.permute.xlu0 %3118
        %3120 = vrot.lane.b32.xlu0 %v1282, 32
        %v3121 = vpop.permute.xlu0 %3120
        %3122 = vrot.lane.b32.xlu0 %v1283, 32
        %v3123 = vpop.permute.xlu0 %3122
        %3124 = vrot.lane.b32.xlu0 %v1284, 32
        %v3125 = vpop.permute.xlu0 %3124
        %3126 = vrot.lane.b32.xlu0 %v1285, 32
        %v3127 = vpop.permute.xlu0 %3126
        %3128 = vrot.lane.b32.xlu0 %v1286, 32
        %v3129 = vpop.permute.xlu0 %3128
        %3130 = vrot.lane.b32.xlu0 %v1287, 32
        %v3131 = vpop.permute.xlu0 %3130
        %3140 = vmatprep.subr.bf16.mxu0 0
        %3141 = vmatpush1.bf16.msra.mxu0 %v3117
        %3142 = vmatprep.subr.bf16.mxu0 0
        %3143 = vmatpush1.bf16.msra.mxu0 %v3119
        %3144 = vmatprep.subr.bf16.mxu0 0
        %3145 = vmatpush1.bf16.msra.mxu0 %v3121
        %3146 = vmatprep.subr.bf16.mxu0 0
        %3147 = vmatpush1.bf16.msra.mxu0 %v3123
        %3148 = vmatprep.subr.bf16.mxu0 0
        %3149 = vmatpush1.bf16.msra.mxu0 %v3125
        %3150 = vmatprep.subr.bf16.mxu0 0
        %3151 = vmatpush1.bf16.msra.mxu0 %v3127
        %3152 = vmatprep.subr.bf16.mxu0 0
        %3153 = vmatpush1.bf16.msra.mxu0 %v3129
        %3154 = vmatprep.subr.bf16.mxu0 0
        %3155 = vmatpush1.bf16.msra.mxu0 %v3131
        %3156 = vmatprep.subr.bf16.mxu0 0
        %3157 = vmatpush1.bf16.msra.mxu0 0
        %3158 = vmatprep.subr.bf16.mxu0 0
        %3159 = vmatpush1.bf16.msra.mxu0 0
        %3160 = vmatprep.subr.bf16.mxu0 0
        %3161 = vmatpush1.bf16.msra.mxu0 0
        %3162 = vmatprep.subr.bf16.mxu0 0
        %3163 = vmatpush1.bf16.msra.mxu0 0
        %3164 = vmatprep.subr.bf16.mxu0 0
        %3165 = vmatpush1.bf16.msra.mxu0 0
        %3166 = vmatprep.subr.bf16.mxu0 0
        %3167 = vmatpush1.bf16.msra.mxu0 0
        %3168 = vmatprep.subr.bf16.mxu0 0
        %3169 = vmatpush1.bf16.msra.mxu0 0
        %3170 = vmatprep.subr.bf16.mxu0 0
        %3171 = vmatpush1.bf16.msra.mxu0 0
        %3172 = vmatprep.mubr.bf16.mxu0 0
        %3173 = vmatmul.mubr.bf16.gmra.mrb[0].mxu0 %v3108
        %v3174 = vpop.f32.mrb[0].mxu0
        %v3175 = vadd.f32 0.0, %v3174
        %v3176 = vpop.f32.mrb[0].mxu0
        %v3177 = vpop.f32.mrb[0].mxu0
        %v3178 = vadd.f32 0.0, %v3177
        %v3179 = vpop.f32.mrb[0].mxu0
        %3180 = vmatprep.mubr.bf16.mxu0 0
        %3181 = vmatmul.mubr.bf16.gmra.mrb[0].mxu0 %v3109
        %v3182 = vpop.f32.mrb[0].mxu0
        %v3183 = vadd.f32 0.0, %v3182
        %v3184 = vpop.f32.mrb[0].mxu0
        %v3185 = vpop.f32.mrb[0].mxu0
        %v3186 = vadd.f32 0.0, %v3185
        %v3187 = vpop.f32.mrb[0].mxu0
        %3188 = vmatprep.mubr.bf16.mxu0 0
        %3189 = vmatmul.mubr.bf16.gmra.mrb[0].mxu0 %v3110
        %v3190 = vpop.f32.mrb[0].mxu0
        %v3191 = vadd.f32 0.0, %v3190
        %v3192 = vpop.f32.mrb[0].mxu0
        %v3193 = vpop.f32.mrb[0].mxu0
        %v3194 = vadd.f32 0.0, %v3193
        %v3195 = vpop.f32.mrb[0].mxu0
        %3196 = vmatprep.mubr.bf16.mxu0 0
        %3197 = vmatmul.mubr.bf16.gmra.mrb[0].mxu0 %v3111
        %v3198 = vpop.f32.mrb[0].mxu0
        %v3199 = vadd.f32 0.0, %v3198
        %v3200 = vpop.f32.mrb[0].mxu0
        %v3201 = vpop.f32.mrb[0].mxu0
        %v3202 = vadd.f32 0.0, %v3201
        %v3203 = vpop.f32.mrb[0].mxu0
        %3204 = vmatprep.mubr.bf16.mxu0 0
        %3205 = vmatmul.mubr.bf16.gmra.mrb[0].mxu0 %v3112
        %v3206 = vpop.f32.mrb[0].mxu0
        %v3207 = vadd.f32 0.0, %v3206
        %v3208 = vpop.f32.mrb[0].mxu0
        %v3209 = vpop.f32.mrb[0].mxu0
        %v3210 = vadd.f32 0.0, %v3209
        %v3211 = vpop.f32.mrb[0].mxu0
        %3212 = vmatprep.mubr.bf16.mxu0 0
        %3213 = vmatmul.mubr.bf16.gmra.mrb[0].mxu0 %v3113
        %v3214 = vpop.f32.mrb[0].mxu0
        %v3215 = vadd.f32 0.0, %v3214
        %v3216 = vpop.f32.mrb[0].mxu0
        %v3217 = vpop.f32.mrb[0].mxu0
        %v3218 = vadd.f32 0.0, %v3217
        %v3219 = vpop.f32.mrb[0].mxu0
        %3220 = vmatprep.mubr.bf16.mxu0 0
        %3221 = vmatmul.mubr.bf16.gmra.mrb[0].mxu0 %v3114
        %v3222 = vpop.f32.mrb[0].mxu0
        %v3223 = vadd.f32 0.0, %v3222
        %v3224 = vpop.f32.mrb[0].mxu0
        %v3225 = vpop.f32.mrb[0].mxu0
        %v3226 = vadd.f32 0.0, %v3225
        %v3227 = vpop.f32.mrb[0].mxu0
        %3228 = vmatprep.mubr.bf16.mxu0 0
        %3229 = vmatmul.mubr.bf16.gmra.mrb[0].mxu0 %v3115
        %v3230 = vpop.f32.mrb[0].mxu0
        %v3231 = vadd.f32 0.0, %v3230
        %v3232 = vpop.f32.mrb[0].mxu0
        %v3233 = vpop.f32.mrb[0].mxu0
        %v3234 = vadd.f32 0.0, %v3233
        %v3235 = vpop.f32.mrb[0].mxu0
        %3236 = vdwg.mxu0
        %v3237 = vrcp.pop %v3077
        %v3238 = vrcp.pop %v3079
        %v3239 = vrcp.pop %v3081
        %v3240 = vrcp.pop %v3083
        %v3241 = vrcp.pop %v3085
        %v3242 = vrcp.pop %v3087
        %v3243 = vrcp.pop %v3089
        %v3244 = vrcp.pop %v3091
        %v3245 = vrcp.pop %v3093
        %v3246 = vrcp.pop %v3095
        %v3247 = vrcp.pop %v3097
        %v3248 = vrcp.pop %v3099
        %v3249 = vrcp.pop %v3101
        %v3250 = vrcp.pop %v3103
        %v3251 = vrcp.pop %v3105
        %v3252 = vrcp.pop %v3107
        %v3253 = vmul.f32 %v3175, %v3237
        %v3254 = vmul.f32 %v3178, %v3238
        %v3255 = vmul.f32 %v3183, %v3239
        %v3256 = vmul.f32 %v3186, %v3240
        %v3257 = vmul.f32 %v3191, %v3241
        %v3258 = vmul.f32 %v3194, %v3242
        %v3259 = vmul.f32 %v3199, %v3243
        %v3260 = vmul.f32 %v3202, %v3244
        %v3261 = vmul.f32 %v3207, %v3245
        %v3262 = vmul.f32 %v3210, %v3246
        %v3263 = vmul.f32 %v3215, %v3247
        %v3264 = vmul.f32 %v3218, %v3248
        %v3265 = vmul.f32 %v3223, %v3249
        %v3266 = vmul.f32 %v3226, %v3250
        %v3267 = vmul.f32 %v3231, %v3251
        %v3268 = vmul.f32 %v3234, %v3252
        %v3269 = vpack.c.bf16 %v3254, %v3253
        %v3270 = vpack.c.bf16 %v3256, %v3255
        %v3271 = vpack.c.bf16 %v3258, %v3257
        %v3272 = vpack.c.bf16 %v3260, %v3259
        %v3273 = vpack.c.bf16 %v3262, %v3261
        %v3274 = vpack.c.bf16 %v3264, %v3263
        %v3275 = vpack.c.bf16 %v3266, %v3265
        %v3276 = vpack.c.bf16 %v3268, %v3267
        %3285 = vrot.lane.b32.xlu0 %v2321, 32
        %v3286 = vpop.permute.xlu0 %3285
        %3287 = vrot.lane.b32.xlu0 %v2322, 32
        %v3288 = vpop.permute.xlu0 %3287
        %3289 = vrot.lane.b32.xlu0 %v2323, 32
        %v3290 = vpop.permute.xlu0 %3289
        %3291 = vrot.lane.b32.xlu0 %v2324, 32
        %v3292 = vpop.permute.xlu0 %3291
        %3293 = vrot.lane.b32.xlu0 %v2325, 32
        %v3294 = vpop.permute.xlu0 %3293
        %3295 = vrot.lane.b32.xlu0 %v2326, 32
        %v3296 = vpop.permute.xlu0 %3295
        %3297 = vrot.lane.b32.xlu0 %v2327, 32
        %v3298 = vpop.permute.xlu0 %3297
        %3299 = vrot.lane.b32.xlu0 %v2328, 32
        %v3300 = vpop.permute.xlu0 %3299
        %3309 = vrot.lane.b32.xlu0 %v2795, 64
        %v3310 = vpop.permute.xlu0 %3309
        %3311 = vrot.lane.b32.xlu0 %v2796, 64
        %v3312 = vpop.permute.xlu0 %3311
        %3313 = vrot.lane.b32.xlu0 %v2797, 64
        %v3314 = vpop.permute.xlu0 %3313
        %3315 = vrot.lane.b32.xlu0 %v2798, 64
        %v3316 = vpop.permute.xlu0 %3315
        %3317 = vrot.lane.b32.xlu0 %v2799, 64
        %v3318 = vpop.permute.xlu0 %3317
        %3319 = vrot.lane.b32.xlu0 %v2800, 64
        %v3320 = vpop.permute.xlu0 %3319
        %3321 = vrot.lane.b32.xlu0 %v2801, 64
        %v3322 = vpop.permute.xlu0 %3321
        %3323 = vrot.lane.b32.xlu0 %v2802, 64
        %v3324 = vpop.permute.xlu0 %3323
        %3333 = vrot.lane.b32.xlu0 %v3269, 96
        %v3334 = vpop.permute.xlu0 %3333
        %3335 = vrot.lane.b32.xlu0 %v3270, 96
        %v3336 = vpop.permute.xlu0 %3335
        %3337 = vrot.lane.b32.xlu0 %v3271, 96
        %v3338 = vpop.permute.xlu0 %3337
        %3339 = vrot.lane.b32.xlu0 %v3272, 96
        %v3340 = vpop.permute.xlu0 %3339
        %3341 = vrot.lane.b32.xlu0 %v3273, 96
        %v3342 = vpop.permute.xlu0 %3341
        %3343 = vrot.lane.b32.xlu0 %v3274, 96
        %v3344 = vpop.permute.xlu0 %3343
        %3345 = vrot.lane.b32.xlu0 %v3275, 96
        %v3346 = vpop.permute.xlu0 %3345
        %3347 = vrot.lane.b32.xlu0 %v3276, 96
        %v3348 = vpop.permute.xlu0 %3347
        %v3351 = vsel %vm1296, %v1823, %v3286
        %v3354 = vsel %vm1296, %v1824, %v3288
        %v3357 = vsel %vm1296, %v1825, %v3290
        %v3360 = vsel %vm1296, %v1826, %v3292
        %v3363 = vsel %vm1296, %v1827, %v3294
        %v3366 = vsel %vm1296, %v1828, %v3296
        %v3369 = vsel %vm1296, %v1829, %v3298
        %v3372 = vsel %vm1296, %v1830, %v3300
        %vm3373 = vcmask 523264
        %v3375 = vsel %vm3373, %v3351, %v3310
        %v3377 = vsel %vm3373, %v3354, %v3312
        %v3379 = vsel %vm3373, %v3357, %v3314
        %v3381 = vsel %vm3373, %v3360, %v3316
        %v3383 = vsel %vm3373, %v3363, %v3318
        %v3385 = vsel %vm3373, %v3366, %v3320
        %v3387 = vsel %vm3373, %v3369, %v3322
        %v3389 = vsel %vm3373, %v3372, %v3324
        %vm3390 = vcmask 785408
        %v3392 = vsel %vm3390, %v3375, %v3334
        %v3395 = vsel %vm3390, %v3377, %v3336
        %v3398 = vsel %vm3390, %v3379, %v3338
        %v3401 = vsel %vm3390, %v3381, %v3340
        %v3404 = vsel %vm3390, %v3383, %v3342
        %v3407 = vsel %vm3390, %v3385, %v3344
        %v3410 = vsel %vm3390, %v3387, %v3346
        %v3413 = vsel %vm3390, %v3389, %v3348
        %v3415 = vld [vmem:[#allocation14] sm:$0xf]
        %v3416 = vld [vmem:[#allocation14 + $0x4] sm:$0xf]
        %v3417 = vld [vmem:[#allocation14 + $0x8] sm:$0xf]
        %v3418 = vld [vmem:[#allocation14 + $0xc] sm:$0xf]
        %v3419 = vld [vmem:[#allocation14 + $0x10] sm:$0xf]
        %v3420 = vld [vmem:[#allocation14 + $0x14] sm:$0xf]
        %v3421 = vld [vmem:[#allocation14 + $0x18] sm:$0xf]
        %v3422 = vld [vmem:[#allocation14 + $0x1c] sm:$0xf]
        %v3423 = vld [vmem:[#allocation14 + $0x20] sm:$0xf]
        %v3424 = vld [vmem:[#allocation14 + $0x24] sm:$0xf]
        %v3425 = vld [vmem:[#allocation14 + $0x28] sm:$0xf]
        %v3426 = vld [vmem:[#allocation14 + $0x2c] sm:$0xf]
        %v3427 = vld [vmem:[#allocation14 + $0x30] sm:$0xf]
        %v3428 = vld [vmem:[#allocation14 + $0x34] sm:$0xf]
        %v3429 = vld [vmem:[#allocation14 + $0x38] sm:$0xf]
        %v3430 = vld [vmem:[#allocation14 + $0x3c] sm:$0xf]
        %v3447 = vunpack.c.l.b16 %v3415
        %v3448 = vunpack.c.l.b16 %v3416
        %v3449 = vunpack.c.l.b16 %v3417
        %v3450 = vunpack.c.l.b16 %v3418
        %v3451 = vunpack.c.l.b16 %v3419
        %v3452 = vunpack.c.l.b16 %v3420
        %v3453 = vunpack.c.l.b16 %v3421
        %v3454 = vunpack.c.l.b16 %v3422
        %v3455 = vunpack.c.l.b16 %v3423
        %v3456 = vunpack.c.l.b16 %v3424
        %v3457 = vunpack.c.l.b16 %v3425
        %v3458 = vunpack.c.l.b16 %v3426
        %v3459 = vunpack.c.l.b16 %v3427
        %v3460 = vunpack.c.l.b16 %v3428
        %v3461 = vunpack.c.l.b16 %v3429
        %v3462 = vunpack.c.l.b16 %v3430
        %v3463 = vpack.c.b16 %v3448, %v3447
        %v3464 = vpack.c.b16 %v3450, %v3449
        %v3465 = vpack.c.b16 %v3452, %v3451
        %v3466 = vpack.c.b16 %v3454, %v3453
        %v3467 = vpack.c.b16 %v3456, %v3455
        %v3468 = vpack.c.b16 %v3458, %v3457
        %v3469 = vpack.c.b16 %v3460, %v3459
        %v3470 = vpack.c.b16 %v3462, %v3461
        %3479 = vmatprep.subr.bf16.mxu0 0
        %3480 = vmatpush1.bf16.msra.mxu0 %v3463
        %3481 = vmatprep.subr.bf16.mxu0 0
        %3482 = vmatpush1.bf16.msra.mxu0 %v3464
        %3483 = vmatprep.subr.bf16.mxu0 0
        %3484 = vmatpush1.bf16.msra.mxu0 %v3465
        %3485 = vmatprep.subr.bf16.mxu0 0
        %3486 = vmatpush1.bf16.msra.mxu0 %v3466
        %3487 = vmatprep.subr.bf16.mxu0 0
        %3488 = vmatpush1.bf16.msra.mxu0 %v3467
        %3489 = vmatprep.subr.bf16.mxu0 0
        %3490 = vmatpush1.bf16.msra.mxu0 %v3468
        %3491 = vmatprep.subr.bf16.mxu0 0
        %3492 = vmatpush1.bf16.msra.mxu0 %v3469
        %3493 = vmatprep.subr.bf16.mxu0 0
        %3494 = vmatpush1.bf16.msra.mxu0 %v3470
        %3495 = vmatprep.subr.bf16.mxu0 0
        %3496 = vmatpush1.bf16.msra.mxu0 0
        %3497 = vmatprep.subr.bf16.mxu0 0
        %3498 = vmatpush1.bf16.msra.mxu0 0
        %3499 = vmatprep.subr.bf16.mxu0 0
        %3500 = vmatpush1.bf16.msra.mxu0 0
        %3501 = vmatprep.subr.bf16.mxu0 0
        %3502 = vmatpush1.bf16.msra.mxu0 0
        %3503 = vmatprep.subr.bf16.mxu0 0
        %3504 = vmatpush1.bf16.msra.mxu0 0
        %3505 = vmatprep.subr.bf16.mxu0 0
        %3506 = vmatpush1.bf16.msra.mxu0 0
        %3507 = vmatprep.subr.bf16.mxu0 0
        %3508 = vmatpush1.bf16.msra.mxu0 0
        %3509 = vmatprep.subr.bf16.mxu0 0
        %3510 = vmatpush1.bf16.msra.mxu0 0
        %3511 = vmatprep.mubr.bf16.mxu0 0
        %3512 = vmatmul.mubr.bf16.gmra.mrb[0].mxu0 %v3392
        %v3513 = vpop.f32.mrb[0].mxu0
        %v3514 = vadd.f32 0.0, %v3513
        %v3515 = vpop.f32.mrb[0].mxu0
        %v3516 = vpop.f32.mrb[0].mxu0
        %v3517 = vadd.f32 0.0, %v3516
        %v3518 = vpop.f32.mrb[0].mxu0
        %3519 = vmatprep.mubr.bf16.mxu0 0
        %3520 = vmatmul.mubr.bf16.gmra.mrb[0].mxu0 %v3395
        %v3521 = vpop.f32.mrb[0].mxu0
        %v3522 = vadd.f32 0.0, %v3521
        %v3523 = vpop.f32.mrb[0].mxu0
        %v3524 = vpop.f32.mrb[0].mxu0
        %v3525 = vadd.f32 0.0, %v3524
        %v3526 = vpop.f32.mrb[0].mxu0
        %3527 = vmatprep.mubr.bf16.mxu0 0
        %3528 = vmatmul.mubr.bf16.gmra.mrb[0].mxu0 %v3398
        %v3529 = vpop.f32.mrb[0].mxu0
        %v3530 = vadd.f32 0.0, %v3529
        %v3531 = vpop.f32.mrb[0].mxu0
        %v3532 = vpop.f32.mrb[0].mxu0
        %v3533 = vadd.f32 0.0, %v3532
        %v3534 = vpop.f32.mrb[0].mxu0
        %3535 = vmatprep.mubr.bf16.mxu0 0
        %3536 = vmatmul.mubr.bf16.gmra.mrb[0].mxu0 %v3401
        %v3537 = vpop.f32.mrb[0].mxu0
        %v3538 = vadd.f32 0.0, %v3537
        %v3539 = vpop.f32.mrb[0].mxu0
        %v3540 = vpop.f32.mrb[0].mxu0
        %v3541 = vadd.f32 0.0, %v3540
        %v3542 = vpop.f32.mrb[0].mxu0
        %3543 = vmatprep.mubr.bf16.mxu0 0
        %3544 = vmatmul.mubr.bf16.gmra.mrb[0].mxu0 %v3404
        %v3545 = vpop.f32.mrb[0].mxu0
        %v3546 = vadd.f32 0.0, %v3545
        %v3547 = vpop.f32.mrb[0].mxu0
        %v3548 = vpop.f32.mrb[0].mxu0
        %v3549 = vadd.f32 0.0, %v3548
        %v3550 = vpop.f32.mrb[0].mxu0
        %3551 = vmatprep.mubr.bf16.mxu0 0
        %3552 = vmatmul.mubr.bf16.gmra.mrb[0].mxu0 %v3407
        %v3553 = vpop.f32.mrb[0].mxu0
        %v3554 = vadd.f32 0.0, %v3553
        %v3555 = vpop.f32.mrb[0].mxu0
        %v3556 = vpop.f32.mrb[0].mxu0
        %v3557 = vadd.f32 0.0, %v3556
        %v3558 = vpop.f32.mrb[0].mxu0
        %3559 = vmatprep.mubr.bf16.mxu0 0
        %3560 = vmatmul.mubr.bf16.gmra.mrb[0].mxu0 %v3410
        %v3561 = vpop.f32.mrb[0].mxu0
        %v3562 = vadd.f32 0.0, %v3561
        %v3563 = vpop.f32.mrb[0].mxu0
        %v3564 = vpop.f32.mrb[0].mxu0
        %v3565 = vadd.f32 0.0, %v3564
        %v3566 = vpop.f32.mrb[0].mxu0
        %3567 = vmatprep.mubr.bf16.mxu0 0
        %3568 = vmatmul.mubr.bf16.gmra.mrb[0].mxu0 %v3413
        %v3569 = vpop.f32.mrb[0].mxu0
        %v3570 = vadd.f32 0.0, %v3569
        %v3571 = vpop.f32.mrb[0].mxu0
        %v3572 = vpop.f32.mrb[0].mxu0
        %v3573 = vadd.f32 0.0, %v3572
        %v3574 = vpop.f32.mrb[0].mxu0
        %3575 = vdwg.mxu0
        %3576 = vst [vmem:[%s439] sm:$0xff] %v3514
        %3577 = vst [vmem:[%s439 + $0x8] sm:$0xff] %v3517
        %3578 = vst [vmem:[%s439 + $0x10] sm:$0xff] %v3522
        %3579 = vst [vmem:[%s439 + $0x18] sm:$0xff] %v3525
        %3580 = vst [vmem:[%s439 + $0x20] sm:$0xff] %v3530
        %3581 = vst [vmem:[%s439 + $0x28] sm:$0xff] %v3533
        %3582 = vst [vmem:[%s439 + $0x30] sm:$0xff] %v3538
        %3583 = vst [vmem:[%s439 + $0x38] sm:$0xff] %v3541
        %3584 = vst [vmem:[%s439 + $0x40] sm:$0xff] %v3546
        %3585 = vst [vmem:[%s439 + $0x48] sm:$0xff] %v3549
        %3586 = vst [vmem:[%s439 + $0x50] sm:$0xff] %v3554
        %3587 = vst [vmem:[%s439 + $0x58] sm:$0xff] %v3557
        %3588 = vst [vmem:[%s439 + $0x60] sm:$0xff] %v3562
        %3589 = vst [vmem:[%s439 + $0x68] sm:$0xff] %v3565
        %3590 = vst [vmem:[%s439 + $0x70] sm:$0xff] %v3570
        %3591 = vst [vmem:[%s439 + $0x78] sm:$0xff] %v3573
        %s3592 = sand.u32 %s232, 1
        %s3593 = scalar_lea.sflag [#allocation7], %s3592
        %s3594 = sand.u32 %s232, 1
        %s3595 = smul.addr %s3594, 128
        %s3596 = scalar_lea.vmem [#allocation16], %s3595
        // Predicated region
        $region81: #{tpu_custom_call.1} parent=51 // pred_check
          %p3597 = pneg %p242
        $region82: #{tpu_custom_call.1} parent=51 // pred_check_branch
          %3599 = sbr.rel (%p3597) target = $region84
        $region83: #{tpu_custom_call.1} parent=51 // pred_region
          %s3600 = smul.u32 16, %s35
          %s3602 = ssub.s32 2048, 2048
          %3603 = vsyncadd %s3593, %s3602
          %s3604 = smul.addr %s34, 16
          %s3605 = sadd.s32 %s3600, %s3604
          %s3606 = smul.addr %s3605, 128
          %s3607 = scalar_lea.hbm %s8, %s3606
          %s3608 = sshll.u32 %s3596, 4
          %s3609 = int_to_ptr.vmem [resolvable:$true] %s3608
          %3614 = dma.vmem_to_hbm [thread:$0]  %s3609, 2048, %s3607, %s3593, 128, 128, 8
        $region84: #{tpu_custom_call.1} parent=51 // pred_fallthru
          _
      $region52: #{tpu_custom_call.1} parent=5 // pred_fallthru
        _
      %p3615 = scmp.le.s32.totalorder 2, %s25
      // Predicated region
      $region85: #{tpu_custom_call.1} parent=5 // pred_check
        %p3616 = pneg %p3615
      $region86: #{tpu_custom_call.1} parent=5 // pred_check_branch
        %3618 = sbr.rel (%p3616) target = $region88
      $region87: #{tpu_custom_call.1} parent=5 // pred_region
        %s3619 = ssub.s32 %s25, 2
        // Predicated region
        $region89: #{tpu_custom_call.1} parent=87 // pred_check
          %p3620 = pneg %p248
        $region90: #{tpu_custom_call.1} parent=87 // pred_check_branch
          %3622 = sbr.rel (%p3620) target = $region92
        $region91: #{tpu_custom_call.1} parent=87 // pred_region
          %s3623 = sand.u32 %s233, 1
          %s3624 = scalar_lea.sflag [#allocation7], %s3623
          %s3625 = sand.u32 %s233, 1
          %s3626 = smul.addr %s3625, 128
          %s3627 = scalar_lea.vmem [#allocation16], %s3626
          %3628 = dma.done %s3624, 2048
        $region92: #{tpu_custom_call.1} parent=87 // pred_fallthru
          _
      $region88: #{tpu_custom_call.1} parent=5 // pred_fallthru
        _
    $region6: #{tpu_custom_call.1} parent=1 // loop_footer
      %s29 = sadd.s32 1, %s25
    $region7: #{tpu_custom_call.1} parent=1 // loop_footer_branch
      %24 = sbr.rel target = $region3
    $region8: #{tpu_custom_call.1} parent=1 // loop_exit
      _
    %3629 = vsyncpa [#allocation6], 1
    %s3630 = scalar_lea.sflag [#allocation6], 1
    %3631 = vsyncpa %s3630, 1
    %3632 = vsyncpa [#allocation9], 1
    %s3633 = scalar_lea.sflag [#allocation9], 1
    %3634 = vsyncpa %s3633, 1
    %3635 = vsyncpa [#allocation12], 1
    %3636 = vsyncpa [#allocation15], 1
    %3637 = vsyncpa [#allocation7], 1
    %s3638 = scalar_lea.sflag [#allocation7], 1
    %3639 = vsyncpa %s3638, 1

</llo_original>
